<compile_context>
chip_gen: v5e
topology: v5e:2x2
jax: 0.10.0
libtpu: 0.0.40
codegen_flags: <defaults>
</compile_context>

<pallas_src>
import functools

import jax
import jax.numpy as jnp
import numpy as np
from jax.experimental import pallas as pl
from jax.experimental.pallas import tpu as pltpu


# ----------------------------- Pallas kernel --------------------------------

def _generator_kernel(gains_ref, biases_ref, x_ref, *rest, acts):
    """Fused 4-layer forward.  rest = (W0, M0, W1, M1, ..., out_ref).

    Layer math (per batch element, activation layout (C, H*W)):
        tmp = Wstack @ act                      # (k*k*Cout, HWin)  one MXU op
        y   = sum_j tmp[j-block] @ M[j]         # (Cout, HWout)     k*k MXU ops
        act = nonlinearity(gain * y + bias)
    """
    out_ref = rest[-1]
    layer_refs = rest[:-1]

    act = x_ref[0]                                  # (nz, HW0_pad), f32
    for l, act_name in enumerate(acts):
        w_ref = layer_refs[2 * l]                   # (k*k*Cout_p, Cin)
        m_ref = layer_refs[2 * l + 1]               # (k*k, HW_in, HW_out)
        kk, hw_in, hw_out = m_ref.shape
        cout = w_ref.shape[0] // kk                 # padded to a multiple of 8

        # Stage A: all k*k channel mixes in one matmul (K = Cin).
        tmp = jnp.dot(w_ref[...], act, preferred_element_type=jnp.float32)

        # Stage B: scatter each tap spatially with a constant 0/1 selection
        # matmul; accumulate in f32.  Output lanes = HW_out (lane dense).
        y = jnp.zeros((cout, hw_out), dtype=jnp.float32)
        for j in range(kk):
            tap = tmp[j * cout:(j + 1) * cout, :]   # (Cout_p, HW_in), aligned
            y = y + jnp.dot(tap, m_ref[j], preferred_element_type=jnp.float32)

        y = gains_ref[l] * y + biases_ref[l]        # SMEM scalars, VPU epilogue
        act = jnp.maximum(y, 0.0) if act_name == "relu" else jnp.tanh(y)

    out_ref[0] = act.astype(out_ref.dtype)          # (Cout_p_last, HW_out)


# --------------------------- host-side constants ------------------------------

_HW0_PAD = 8   # pad the 1x1 input spatial axis so every matmul has K,N >= 8


def _layer_geometry(k, stride, pad, hin, win):
    ho = (hin - 1) * stride + k - 2 * pad
    wo = (win - 1) * stride + k - 2 * pad
    return ho, wo


def _make_selection(k, stride, pad, hin, win, hw_in_pad):
    """0/1 scatter matrices M[j, h*win+w, ho*wo+wo'] for tap j=(kh,kw).

    Encodes: transposed conv == regular conv (flipped kernel) over the
    stride-dilated, (k-1-pad)-zero-padded input.
    """
    pp = k - 1 - pad
    ho, wo = _layer_geometry(k, stride, pad, hin, win)
    m = np.zeros((k * k, hw_in_pad, ho * wo), np.float32)
    for kh in range(k):
        for kw in range(k):
            j = kh * k + kw
            for h in range(hin):
                oy = pp + stride * h - kh
                if oy < 0 or oy >= ho:
                    continue
                for w in range(win):
                    ox = pp + stride * w - kw
                    if ox < 0 or ox >= wo:
                        continue
                    m[j, h * win + w, oy * wo + ox] = 1.0
    return m, ho, wo


def _make_tap_weights(w, cout_pad):
    """(Cin, Cout, k, k) torch ConvTranspose2d weight -> (k*k*cout_pad, Cin).

    Row order is (kh, kw, cout); the spatial flip converts the transposed conv
    into a regular conv over the dilated/padded input.
    """
    cin, cout, k, _ = w.shape
    wflip = jnp.flip(w, axis=(2, 3))                    # (cin, cout, k, k)
    wt = wflip.transpose(2, 3, 1, 0)                    # (k, k, cout, cin)
    wt = jnp.pad(wt, ((0, 0), (0, 0), (0, cout_pad - cout), (0, 0)))
    return wt.reshape(k * k * cout_pad, cin)


# ------------------------------ wrapper ---------------------------------------

def generator_forward(x, weights, gains, biases, strides, pads, acts):
    """x: (B, nz, 1, 1) NCHW -> (B, 3, Hout, Wout) NCHW, one pallas_call."""
    b, nz = x.shape[0], x.shape[1]

    # Host-side constant preprocessing (weights + tap-selection masks).
    w_mats, m_mats = [], []
    hin = win = 1
    hw_in_pad = _HW0_PAD
    cout_pad = None
    for i, w in enumerate(weights):
        cin, cout, k, _ = w.shape
        cout_pad = ((cout + 7) // 8) * 8
        m_np, ho, wo = _make_selection(k, strides[i], pads[i], hin, win,
                                       hw_in_pad)
        w_mats.append(_make_tap_weights(w, cout_pad))
        m_mats.append(jnp.asarray(m_np))
        hin, win = ho, wo
        hw_in_pad = ho * wo
    hw_out = hin * win
    cout_last = weights[-1].shape[1]

    # Lane-padded input: (B, nz, _HW0_PAD); only column 0 is the real pixel.
    x_pad = jnp.pad(x.reshape(b, nz, 1), ((0, 0), (0, 0), (0, _HW0_PAD - 1)))

    in_specs = [
        pl.BlockSpec(memory_space=pltpu.MemorySpace.SMEM),       # gains
        pl.BlockSpec(memory_space=pltpu.MemorySpace.SMEM),       # biases
        pl.BlockSpec((1, nz, _HW0_PAD), lambda i: (i, 0, 0)),    # x per batch
    ]
    operands = [gains.astype(jnp.float32), biases.astype(jnp.float32), x_pad]
    for wm, mm in zip(w_mats, m_mats):
        in_specs.append(pl.BlockSpec(wm.shape, lambda i: (0, 0)))
        in_specs.append(pl.BlockSpec(mm.shape, lambda i: (0, 0, 0)))
        operands.append(wm)
        operands.append(mm)

    kernel = functools.partial(_generator_kernel, acts=tuple(acts))
    out = pl.pallas_call(
        kernel,
        out_shape=jax.ShapeDtypeStruct((b, cout_pad, hw_out), jnp.float32),
        grid=(b,),
        in_specs=in_specs,
        out_specs=pl.BlockSpec((1, cout_pad, hw_out), lambda i: (i, 0, 0)),
        compiler_params=pltpu.CompilerParams(
            dimension_semantics=("parallel",)),      # v7x: batch across 2 TCs
    )(*operands)

    # Drop the padded output channels, un-flatten H*W (cheap metadata ops).
    return out[:, :cout_last, :].reshape(b, cout_last, hin, win)


# ----------------------------- synthetic params --------------------------------

def make_params(nz, n_scales, key):
    """Deterministic synthetic weights matching Generator_input_gain.__init__."""
    layer_shapes = [(nz, nz, 4, 4)]
    strides, pads, acts = [1], [0], ["relu"]
    nf, nc, min_f = nz, 3, 16
    for _ in range(n_scales):
        nfo = max(min_f, nf // 2)
        layer_shapes.append((nf, nfo, 4, 4))
        strides.append(2); pads.append(1); acts.append("relu")
        nf = nfo
    layer_shapes.append((nf, nc, 3, 3))
    strides.append(1); pads.append(1); acts.append("tanh")

    weights = []
    for shp in layer_shapes:
        key, sub = jax.random.split(key)
        weights.append(0.05 * jax.random.normal(sub, shp, dtype=jnp.float32))
    return weights, strides, pads, acts


# ----------------------------- reference ---------------------------------------

def _ref_conv_transpose(x, w, stride, padding):
    """ConvTranspose2d reference via lax.conv_general_dilated (lhs dilation)."""
    cin, cout, k, _ = w.shape
    w_conv = jnp.flip(w, axis=(2, 3)).transpose(1, 0, 2, 3)  # (Cout, Cin, k, k)
    return jax.lax.conv_general_dilated(
        x, w_conv, window_strides=(1, 1),
        padding=[(k - 1 - padding, k - 1 - padding)] * 2,
        lhs_dilation=(stride, stride),
        dimension_numbers=("NCHW", "OIHW", "NCHW"))


# ------------------------------- main -------------------------------------------

if __name__ == "__main__":
    batch, nz, n_scales = 2, 32, 2     # nz=32, 2 upsampling scales -> 16x16 out
    key = jax.random.PRNGKey(0)
    kx, kg, kb, kw = jax.random.split(key, 4)

    x = jax.random.normal(kx, (batch, nz, 1, 1), dtype=jnp.float32)
    weights, strides, pads, acts = make_params(nz, n_scales, kw)
    n_layers = len(weights)            # 1 + N_scales + 1 = 4
    gains = 1.0 + 0.1 * jax.random.normal(kg, (n_layers,), dtype=jnp.float32)
    biases = 0.1 * jax.random.normal(kb, (n_layers,), dtype=jnp.float32)

    fwd = jax.jit(lambda xx, ww, gg, bb: generator_forward(
        xx, ww, gg, bb, strides, pads, acts))
    out = jax.block_until_ready(fwd(x, weights, gains, biases))

    # Pure-JAX reference for correctness.
    xr = x
    for i, w in enumerate(weights):
        y = gains[i] * _ref_conv_transpose(xr, w, strides[i], pads[i]) + biases[i]
        xr = jnp.maximum(y, 0.0) if acts[i] == "relu" else jnp.tanh(y)

    side = 4 * (2 ** n_scales)
    assert out.shape == (batch, 3, side, side), out.shape
    assert np.allclose(np.asarray(out), np.asarray(xr), atol=5e-4, rtol=5e-4)
    print("KERNEL_OK")
</pallas_src>

<mosaic_0001>
module attributes {stable_mosaic.version = 11 : i64} {
  func.func @_generator_kernel(%arg0: i32, %arg1: memref<4xf32, #tpu.memory_space<smem>>, %arg2: memref<4xf32, #tpu.memory_space<smem>>, %arg3: memref<1x32x8xf32, #tpu.memory_space<vmem>>, %arg4: memref<512x32xf32, #tpu.memory_space<vmem>>, %arg5: memref<16x8x16xf32, #tpu.memory_space<vmem>>, %arg6: memref<256x32xf32, #tpu.memory_space<vmem>>, %arg7: memref<16x16x64xf32, #tpu.memory_space<vmem>>, %arg8: memref<256x16xf32, #tpu.memory_space<vmem>>, %arg9: memref<16x64x256xf32, #tpu.memory_space<vmem>>, %arg10: memref<72x16xf32, #tpu.memory_space<vmem>>, %arg11: memref<9x256x256xf32, #tpu.memory_space<vmem>>, %arg12: memref<1x8x256xf32, #tpu.memory_space<vmem>>) attributes {dimension_semantics = [#tpu.dimension_semantics<parallel>], iteration_bounds = array<i64: 2>, scalar_prefetch = 0 : i64, scratch_operands = 0 : i64, tpu.core_type = #tpu.core_type<tc>, window_params = [{transform_indices = @transform_0, window_bounds = array<i64: 4>}, {transform_indices = @transform_1, window_bounds = array<i64: 4>}, {transform_indices = @transform_2, window_bounds = array<i64: 1, 32, 8>}, {pipeline_mode = #tpu.pipeline_mode<synchronous>, transform_indices = @transform_3, window_bounds = array<i64: 512, 32>}, {pipeline_mode = #tpu.pipeline_mode<synchronous>, transform_indices = @transform_4, window_bounds = array<i64: 16, 8, 16>}, {pipeline_mode = #tpu.pipeline_mode<synchronous>, transform_indices = @transform_5, window_bounds = array<i64: 256, 32>}, {pipeline_mode = #tpu.pipeline_mode<synchronous>, transform_indices = @transform_6, window_bounds = array<i64: 16, 16, 64>}, {pipeline_mode = #tpu.pipeline_mode<synchronous>, transform_indices = @transform_7, window_bounds = array<i64: 256, 16>}, {pipeline_mode = #tpu.pipeline_mode<synchronous>, transform_indices = @transform_8, window_bounds = array<i64: 16, 64, 256>}, {pipeline_mode = #tpu.pipeline_mode<synchronous>, transform_indices = @transform_9, window_bounds = array<i64: 72, 16>}, {pipeline_mode = #tpu.pipeline_mode<synchronous>, transform_indices = @transform_10, window_bounds = array<i64: 9, 256, 256>}, {transform_indices = @transform_11, window_bounds = array<i64: 1, 8, 256>}]} {
    %c0 = arith.constant 0 : index
    %c0_0 = arith.constant 0 : index
    %c0_1 = arith.constant 0 : index
    %0 = vector.load %arg3[%c0, %c0_0, %c0_1] : memref<1x32x8xf32, #tpu.memory_space<vmem>>, vector<1x32x8xf32>
    %1 = vector.shape_cast %0 : vector<1x32x8xf32> to vector<32x8xf32>
    %c0_2 = arith.constant 0 : index
    %c0_3 = arith.constant 0 : index
    %2 = vector.load %arg4[%c0_2, %c0_3] : memref<512x32xf32, #tpu.memory_space<vmem>>, vector<512x32xf32>
    %cst = arith.constant dense<0.000000e+00> : vector<512x8xf32>
    %3 = tpu.matmul %2, %1, %cst {dimension_numbers = #tpu.dot_dimension_numbers<[1], [0], [0], [1], [0, 0, 1, 1], [], []>} : vector<512x32xf32>, vector<32x8xf32>, vector<512x8xf32> -> vector<512x8xf32>
    %cst_4 = arith.constant 0.000000e+00 : f32
    %4 = vector.broadcast %cst_4 : f32 to vector<32x16xf32>
    %5 = vector.extract_strided_slice %3 {offsets = [0, 0], sizes = [32, 8], strides = [1, 1]} : vector<512x8xf32> to vector<32x8xf32>
    %c0_5 = arith.constant 0 : index
    %c0_6 = arith.constant 0 : index
    %c0_7 = arith.constant 0 : index
    %6 = vector.load %arg5[%c0_5, %c0_6, %c0_7] : memref<16x8x16xf32, #tpu.memory_space<vmem>>, vector<1x8x16xf32>
    %7 = vector.shape_cast %6 : vector<1x8x16xf32> to vector<8x16xf32>
    %cst_8 = arith.constant dense<0.000000e+00> : vector<32x16xf32>
    %8 = tpu.matmul %5, %7, %cst_8 {dimension_numbers = #tpu.dot_dimension_numbers<[1], [0], [0], [1], [0, 0, 1, 1], [], []>} : vector<32x8xf32>, vector<8x16xf32>, vector<32x16xf32> -> vector<32x16xf32>
    %9 = arith.addf %4, %8 : vector<32x16xf32>
    %10 = vector.extract_strided_slice %3 {offsets = [32, 0], sizes = [32, 8], strides = [1, 1]} : vector<512x8xf32> to vector<32x8xf32>
    %c1 = arith.constant 1 : index
    %c0_9 = arith.constant 0 : index
    %c0_10 = arith.constant 0 : index
    %11 = vector.load %arg5[%c1, %c0_9, %c0_10] : memref<16x8x16xf32, #tpu.memory_space<vmem>>, vector<1x8x16xf32>
    %12 = vector.shape_cast %11 : vector<1x8x16xf32> to vector<8x16xf32>
    %cst_11 = arith.constant dense<0.000000e+00> : vector<32x16xf32>
    %13 = tpu.matmul %10, %12, %cst_11 {dimension_numbers = #tpu.dot_dimension_numbers<[1], [0], [0], [1], [0, 0, 1, 1], [], []>} : vector<32x8xf32>, vector<8x16xf32>, vector<32x16xf32> -> vector<32x16xf32>
    %14 = arith.addf %9, %13 : vector<32x16xf32>
    %15 = vector.extract_strided_slice %3 {offsets = [64, 0], sizes = [32, 8], strides = [1, 1]} : vector<512x8xf32> to vector<32x8xf32>
    %c2 = arith.constant 2 : index
    %c0_12 = arith.constant 0 : index
    %c0_13 = arith.constant 0 : index
    %16 = vector.load %arg5[%c2, %c0_12, %c0_13] : memref<16x8x16xf32, #tpu.memory_space<vmem>>, vector<1x8x16xf32>
    %17 = vector.shape_cast %16 : vector<1x8x16xf32> to vector<8x16xf32>
    %cst_14 = arith.constant dense<0.000000e+00> : vector<32x16xf32>
    %18 = tpu.matmul %15, %17, %cst_14 {dimension_numbers = #tpu.dot_dimension_numbers<[1], [0], [0], [1], [0, 0, 1, 1], [], []>} : vector<32x8xf32>, vector<8x16xf32>, vector<32x16xf32> -> vector<32x16xf32>
    %19 = arith.addf %14, %18 : vector<32x16xf32>
    %20 = vector.extract_strided_slice %3 {offsets = [96, 0], sizes = [32, 8], strides = [1, 1]} : vector<512x8xf32> to vector<32x8xf32>
    %c3 = arith.constant 3 : index
    %c0_15 = arith.constant 0 : index
    %c0_16 = arith.constant 0 : index
    %21 = vector.load %arg5[%c3, %c0_15, %c0_16] : memref<16x8x16xf32, #tpu.memory_space<vmem>>, vector<1x8x16xf32>
    %22 = vector.shape_cast %21 : vector<1x8x16xf32> to vector<8x16xf32>
    %cst_17 = arith.constant dense<0.000000e+00> : vector<32x16xf32>
    %23 = tpu.matmul %20, %22, %cst_17 {dimension_numbers = #tpu.dot_dimension_numbers<[1], [0], [0], [1], [0, 0, 1, 1], [], []>} : vector<32x8xf32>, vector<8x16xf32>, vector<32x16xf32> -> vector<32x16xf32>
    %24 = arith.addf %19, %23 : vector<32x16xf32>
    %25 = vector.extract_strided_slice %3 {offsets = [128, 0], sizes = [32, 8], strides = [1, 1]} : vector<512x8xf32> to vector<32x8xf32>
    %c4 = arith.constant 4 : index
    %c0_18 = arith.constant 0 : index
    %c0_19 = arith.constant 0 : index
    %26 = vector.load %arg5[%c4, %c0_18, %c0_19] : memref<16x8x16xf32, #tpu.memory_space<vmem>>, vector<1x8x16xf32>
    %27 = vector.shape_cast %26 : vector<1x8x16xf32> to vector<8x16xf32>
    %cst_20 = arith.constant dense<0.000000e+00> : vector<32x16xf32>
    %28 = tpu.matmul %25, %27, %cst_20 {dimension_numbers = #tpu.dot_dimension_numbers<[1], [0], [0], [1], [0, 0, 1, 1], [], []>} : vector<32x8xf32>, vector<8x16xf32>, vector<32x16xf32> -> vector<32x16xf32>
    %29 = arith.addf %24, %28 : vector<32x16xf32>
    %30 = vector.extract_strided_slice %3 {offsets = [160, 0], sizes = [32, 8], strides = [1, 1]} : vector<512x8xf32> to vector<32x8xf32>
    %c5 = arith.constant 5 : index
    %c0_21 = arith.constant 0 : index
    %c0_22 = arith.constant 0 : index
    %31 = vector.load %arg5[%c5, %c0_21, %c0_22] : memref<16x8x16xf32, #tpu.memory_space<vmem>>, vector<1x8x16xf32>
    %32 = vector.shape_cast %31 : vector<1x8x16xf32> to vector<8x16xf32>
    %cst_23 = arith.constant dense<0.000000e+00> : vector<32x16xf32>
    %33 = tpu.matmul %30, %32, %cst_23 {dimension_numbers = #tpu.dot_dimension_numbers<[1], [0], [0], [1], [0, 0, 1, 1], [], []>} : vector<32x8xf32>, vector<8x16xf32>, vector<32x16xf32> -> vector<32x16xf32>
    %34 = arith.addf %29, %33 : vector<32x16xf32>
    %35 = vector.extract_strided_slice %3 {offsets = [192, 0], sizes = [32, 8], strides = [1, 1]} : vector<512x8xf32> to vector<32x8xf32>
    %c6 = arith.constant 6 : index
    %c0_24 = arith.constant 0 : index
    %c0_25 = arith.constant 0 : index
    %36 = vector.load %arg5[%c6, %c0_24, %c0_25] : memref<16x8x16xf32, #tpu.memory_space<vmem>>, vector<1x8x16xf32>
    %37 = vector.shape_cast %36 : vector<1x8x16xf32> to vector<8x16xf32>
    %cst_26 = arith.constant dense<0.000000e+00> : vector<32x16xf32>
    %38 = tpu.matmul %35, %37, %cst_26 {dimension_numbers = #tpu.dot_dimension_numbers<[1], [0], [0], [1], [0, 0, 1, 1], [], []>} : vector<32x8xf32>, vector<8x16xf32>, vector<32x16xf32> -> vector<32x16xf32>
    %39 = arith.addf %34, %38 : vector<32x16xf32>
    %40 = vector.extract_strided_slice %3 {offsets = [224, 0], sizes = [32, 8], strides = [1, 1]} : vector<512x8xf32> to vector<32x8xf32>
    %c7 = arith.constant 7 : index
    %c0_27 = arith.constant 0 : index
    %c0_28 = arith.constant 0 : index
    %41 = vector.load %arg5[%c7, %c0_27, %c0_28] : memref<16x8x16xf32, #tpu.memory_space<vmem>>, vector<1x8x16xf32>
    %42 = vector.shape_cast %41 : vector<1x8x16xf32> to vector<8x16xf32>
    %cst_29 = arith.constant dense<0.000000e+00> : vector<32x16xf32>
    %43 = tpu.matmul %40, %42, %cst_29 {dimension_numbers = #tpu.dot_dimension_numbers<[1], [0], [0], [1], [0, 0, 1, 1], [], []>} : vector<32x8xf32>, vector<8x16xf32>, vector<32x16xf32> -> vector<32x16xf32>
    %44 = arith.addf %39, %43 : vector<32x16xf32>
    %45 = vector.extract_strided_slice %3 {offsets = [256, 0], sizes = [32, 8], strides = [1, 1]} : vector<512x8xf32> to vector<32x8xf32>
    %c8 = arith.constant 8 : index
    %c0_30 = arith.constant 0 : index
    %c0_31 = arith.constant 0 : index
    %46 = vector.load %arg5[%c8, %c0_30, %c0_31] : memref<16x8x16xf32, #tpu.memory_space<vmem>>, vector<1x8x16xf32>
    %47 = vector.shape_cast %46 : vector<1x8x16xf32> to vector<8x16xf32>
    %cst_32 = arith.constant dense<0.000000e+00> : vector<32x16xf32>
    %48 = tpu.matmul %45, %47, %cst_32 {dimension_numbers = #tpu.dot_dimension_numbers<[1], [0], [0], [1], [0, 0, 1, 1], [], []>} : vector<32x8xf32>, vector<8x16xf32>, vector<32x16xf32> -> vector<32x16xf32>
    %49 = arith.addf %44, %48 : vector<32x16xf32>
    %50 = vector.extract_strided_slice %3 {offsets = [288, 0], sizes = [32, 8], strides = [1, 1]} : vector<512x8xf32> to vector<32x8xf32>
    %c9 = arith.constant 9 : index
    %c0_33 = arith.constant 0 : index
    %c0_34 = arith.constant 0 : index
    %51 = vector.load %arg5[%c9, %c0_33, %c0_34] : memref<16x8x16xf32, #tpu.memory_space<vmem>>, vector<1x8x16xf32>
    %52 = vector.shape_cast %51 : vector<1x8x16xf32> to vector<8x16xf32>
    %cst_35 = arith.constant dense<0.000000e+00> : vector<32x16xf32>
    %53 = tpu.matmul %50, %52, %cst_35 {dimension_numbers = #tpu.dot_dimension_numbers<[1], [0], [0], [1], [0, 0, 1, 1], [], []>} : vector<32x8xf32>, vector<8x16xf32>, vector<32x16xf32> -> vector<32x16xf32>
    %54 = arith.addf %49, %53 : vector<32x16xf32>
    %55 = vector.extract_strided_slice %3 {offsets = [320, 0], sizes = [32, 8], strides = [1, 1]} : vector<512x8xf32> to vector<32x8xf32>
    %c10 = arith.constant 10 : index
    %c0_36 = arith.constant 0 : index
    %c0_37 = arith.constant 0 : index
    %56 = vector.load %arg5[%c10, %c0_36, %c0_37] : memref<16x8x16xf32, #tpu.memory_space<vmem>>, vector<1x8x16xf32>
    %57 = vector.shape_cast %56 : vector<1x8x16xf32> to vector<8x16xf32>
    %cst_38 = arith.constant dense<0.000000e+00> : vector<32x16xf32>
    %58 = tpu.matmul %55, %57, %cst_38 {dimension_numbers = #tpu.dot_dimension_numbers<[1], [0], [0], [1], [0, 0, 1, 1], [], []>} : vector<32x8xf32>, vector<8x16xf32>, vector<32x16xf32> -> vector<32x16xf32>
    %59 = arith.addf %54, %58 : vector<32x16xf32>
    %60 = vector.extract_strided_slice %3 {offsets = [352, 0], sizes = [32, 8], strides = [1, 1]} : vector<512x8xf32> to vector<32x8xf32>
    %c11 = arith.constant 11 : index
    %c0_39 = arith.constant 0 : index
    %c0_40 = arith.constant 0 : index
    %61 = vector.load %arg5[%c11, %c0_39, %c0_40] : memref<16x8x16xf32, #tpu.memory_space<vmem>>, vector<1x8x16xf32>
    %62 = vector.shape_cast %61 : vector<1x8x16xf32> to vector<8x16xf32>
    %cst_41 = arith.constant dense<0.000000e+00> : vector<32x16xf32>
    %63 = tpu.matmul %60, %62, %cst_41 {dimension_numbers = #tpu.dot_dimension_numbers<[1], [0], [0], [1], [0, 0, 1, 1], [], []>} : vector<32x8xf32>, vector<8x16xf32>, vector<32x16xf32> -> vector<32x16xf32>
    %64 = arith.addf %59, %63 : vector<32x16xf32>
    %65 = vector.extract_strided_slice %3 {offsets = [384, 0], sizes = [32, 8], strides = [1, 1]} : vector<512x8xf32> to vector<32x8xf32>
    %c12 = arith.constant 12 : index
    %c0_42 = arith.constant 0 : index
    %c0_43 = arith.constant 0 : index
    %66 = vector.load %arg5[%c12, %c0_42, %c0_43] : memref<16x8x16xf32, #tpu.memory_space<vmem>>, vector<1x8x16xf32>
    %67 = vector.shape_cast %66 : vector<1x8x16xf32> to vector<8x16xf32>
    %cst_44 = arith.constant dense<0.000000e+00> : vector<32x16xf32>
    %68 = tpu.matmul %65, %67, %cst_44 {dimension_numbers = #tpu.dot_dimension_numbers<[1], [0], [0], [1], [0, 0, 1, 1], [], []>} : vector<32x8xf32>, vector<8x16xf32>, vector<32x16xf32> -> vector<32x16xf32>
    %69 = arith.addf %64, %68 : vector<32x16xf32>
    %70 = vector.extract_strided_slice %3 {offsets = [416, 0], sizes = [32, 8], strides = [1, 1]} : vector<512x8xf32> to vector<32x8xf32>
    %c13 = arith.constant 13 : index
    %c0_45 = arith.constant 0 : index
    %c0_46 = arith.constant 0 : index
    %71 = vector.load %arg5[%c13, %c0_45, %c0_46] : memref<16x8x16xf32, #tpu.memory_space<vmem>>, vector<1x8x16xf32>
    %72 = vector.shape_cast %71 : vector<1x8x16xf32> to vector<8x16xf32>
    %cst_47 = arith.constant dense<0.000000e+00> : vector<32x16xf32>
    %73 = tpu.matmul %70, %72, %cst_47 {dimension_numbers = #tpu.dot_dimension_numbers<[1], [0], [0], [1], [0, 0, 1, 1], [], []>} : vector<32x8xf32>, vector<8x16xf32>, vector<32x16xf32> -> vector<32x16xf32>
    %74 = arith.addf %69, %73 : vector<32x16xf32>
    %75 = vector.extract_strided_slice %3 {offsets = [448, 0], sizes = [32, 8], strides = [1, 1]} : vector<512x8xf32> to vector<32x8xf32>
    %c14 = arith.constant 14 : index
    %c0_48 = arith.constant 0 : index
    %c0_49 = arith.constant 0 : index
    %76 = vector.load %arg5[%c14, %c0_48, %c0_49] : memref<16x8x16xf32, #tpu.memory_space<vmem>>, vector<1x8x16xf32>
    %77 = vector.shape_cast %76 : vector<1x8x16xf32> to vector<8x16xf32>
    %cst_50 = arith.constant dense<0.000000e+00> : vector<32x16xf32>
    %78 = tpu.matmul %75, %77, %cst_50 {dimension_numbers = #tpu.dot_dimension_numbers<[1], [0], [0], [1], [0, 0, 1, 1], [], []>} : vector<32x8xf32>, vector<8x16xf32>, vector<32x16xf32> -> vector<32x16xf32>
    %79 = arith.addf %74, %78 : vector<32x16xf32>
    %80 = vector.extract_strided_slice %3 {offsets = [480, 0], sizes = [32, 8], strides = [1, 1]} : vector<512x8xf32> to vector<32x8xf32>
    %c15 = arith.constant 15 : index
    %c0_51 = arith.constant 0 : index
    %c0_52 = arith.constant 0 : index
    %81 = vector.load %arg5[%c15, %c0_51, %c0_52] : memref<16x8x16xf32, #tpu.memory_space<vmem>>, vector<1x8x16xf32>
    %82 = vector.shape_cast %81 : vector<1x8x16xf32> to vector<8x16xf32>
    %cst_53 = arith.constant dense<0.000000e+00> : vector<32x16xf32>
    %83 = tpu.matmul %80, %82, %cst_53 {dimension_numbers = #tpu.dot_dimension_numbers<[1], [0], [0], [1], [0, 0, 1, 1], [], []>} : vector<32x8xf32>, vector<8x16xf32>, vector<32x16xf32> -> vector<32x16xf32>
    %84 = arith.addf %79, %83 : vector<32x16xf32>
    %c0_54 = arith.constant 0 : index
    %85 = memref.load %arg1[%c0_54] : memref<4xf32, #tpu.memory_space<smem>>
    %86 = vector.broadcast %85 : f32 to vector<32x16xf32>
    %87 = arith.mulf %86, %84 : vector<32x16xf32>
    %c0_55 = arith.constant 0 : index
    %88 = memref.load %arg2[%c0_55] : memref<4xf32, #tpu.memory_space<smem>>
    %89 = vector.broadcast %88 : f32 to vector<32x16xf32>
    %90 = arith.addf %87, %89 : vector<32x16xf32>
    %cst_56 = arith.constant 0.000000e+00 : f32
    %91 = vector.broadcast %cst_56 : f32 to vector<32x16xf32>
    %92 = arith.maximumf %90, %91 : vector<32x16xf32>
    %c0_57 = arith.constant 0 : index
    %c0_58 = arith.constant 0 : index
    %93 = vector.load %arg6[%c0_57, %c0_58] : memref<256x32xf32, #tpu.memory_space<vmem>>, vector<256x32xf32>
    %cst_59 = arith.constant dense<0.000000e+00> : vector<256x16xf32>
    %94 = tpu.matmul %93, %92, %cst_59 {dimension_numbers = #tpu.dot_dimension_numbers<[1], [0], [0], [1], [0, 0, 1, 1], [], []>} : vector<256x32xf32>, vector<32x16xf32>, vector<256x16xf32> -> vector<256x16xf32>
    %cst_60 = arith.constant 0.000000e+00 : f32
    %95 = vector.broadcast %cst_60 : f32 to vector<16x64xf32>
    %96 = vector.extract_strided_slice %94 {offsets = [0, 0], sizes = [16, 16], strides = [1, 1]} : vector<256x16xf32> to vector<16x16xf32>
    %c0_61 = arith.constant 0 : index
    %c0_62 = arith.constant 0 : index
    %c0_63 = arith.constant 0 : index
    %97 = vector.load %arg7[%c0_61, %c0_62, %c0_63] : memref<16x16x64xf32, #tpu.memory_space<vmem>>, vector<1x16x64xf32>
    %98 = vector.shape_cast %97 : vector<1x16x64xf32> to vector<16x64xf32>
    %cst_64 = arith.constant dense<0.000000e+00> : vector<16x64xf32>
    %99 = tpu.matmul %96, %98, %cst_64 {dimension_numbers = #tpu.dot_dimension_numbers<[1], [0], [0], [1], [0, 0, 1, 1], [], []>} : vector<16x16xf32>, vector<16x64xf32>, vector<16x64xf32> -> vector<16x64xf32>
    %100 = arith.addf %95, %99 : vector<16x64xf32>
    %101 = vector.extract_strided_slice %94 {offsets = [16, 0], sizes = [16, 16], strides = [1, 1]} : vector<256x16xf32> to vector<16x16xf32>
    %c1_65 = arith.constant 1 : index
    %c0_66 = arith.constant 0 : index
    %c0_67 = arith.constant 0 : index
    %102 = vector.load %arg7[%c1_65, %c0_66, %c0_67] : memref<16x16x64xf32, #tpu.memory_space<vmem>>, vector<1x16x64xf32>
    %103 = vector.shape_cast %102 : vector<1x16x64xf32> to vector<16x64xf32>
    %cst_68 = arith.constant dense<0.000000e+00> : vector<16x64xf32>
    %104 = tpu.matmul %101, %103, %cst_68 {dimension_numbers = #tpu.dot_dimension_numbers<[1], [0], [0], [1], [0, 0, 1, 1], [], []>} : vector<16x16xf32>, vector<16x64xf32>, vector<16x64xf32> -> vector<16x64xf32>
    %105 = arith.addf %100, %104 : vector<16x64xf32>
    %106 = vector.extract_strided_slice %94 {offsets = [32, 0], sizes = [16, 16], strides = [1, 1]} : vector<256x16xf32> to vector<16x16xf32>
    %c2_69 = arith.constant 2 : index
    %c0_70 = arith.constant 0 : index
    %c0_71 = arith.constant 0 : index
    %107 = vector.load %arg7[%c2_69, %c0_70, %c0_71] : memref<16x16x64xf32, #tpu.memory_space<vmem>>, vector<1x16x64xf32>
    %108 = vector.shape_cast %107 : vector<1x16x64xf32> to vector<16x64xf32>
    %cst_72 = arith.constant dense<0.000000e+00> : vector<16x64xf32>
    %109 = tpu.matmul %106, %108, %cst_72 {dimension_numbers = #tpu.dot_dimension_numbers<[1], [0], [0], [1], [0, 0, 1, 1], [], []>} : vector<16x16xf32>, vector<16x64xf32>, vector<16x64xf32> -> vector<16x64xf32>
    %110 = arith.addf %105, %109 : vector<16x64xf32>
    %111 = vector.extract_strided_slice %94 {offsets = [48, 0], sizes = [16, 16], strides = [1, 1]} : vector<256x16xf32> to vector<16x16xf32>
    %c3_73 = arith.constant 3 : index
    %c0_74 = arith.constant 0 : index
    %c0_75 = arith.constant 0 : index
    %112 = vector.load %arg7[%c3_73, %c0_74, %c0_75] : memref<16x16x64xf32, #tpu.memory_space<vmem>>, vector<1x16x64xf32>
    %113 = vector.shape_cast %112 : vector<1x16x64xf32> to vector<16x64xf32>
    %cst_76 = arith.constant dense<0.000000e+00> : vector<16x64xf32>
    %114 = tpu.matmul %111, %113, %cst_76 {dimension_numbers = #tpu.dot_dimension_numbers<[1], [0], [0], [1], [0, 0, 1, 1], [], []>} : vector<16x16xf32>, vector<16x64xf32>, vector<16x64xf32> -> vector<16x64xf32>
    %115 = arith.addf %110, %114 : vector<16x64xf32>
    %116 = vector.extract_strided_slice %94 {offsets = [64, 0], sizes = [16, 16], strides = [1, 1]} : vector<256x16xf32> to vector<16x16xf32>
    %c4_77 = arith.constant 4 : index
    %c0_78 = arith.constant 0 : index
    %c0_79 = arith.constant 0 : index
    %117 = vector.load %arg7[%c4_77, %c0_78, %c0_79] : memref<16x16x64xf32, #tpu.memory_space<vmem>>, vector<1x16x64xf32>
    %118 = vector.shape_cast %117 : vector<1x16x64xf32> to vector<16x64xf32>
    %cst_80 = arith.constant dense<0.000000e+00> : vector<16x64xf32>
    %119 = tpu.matmul %116, %118, %cst_80 {dimension_numbers = #tpu.dot_dimension_numbers<[1], [0], [0], [1], [0, 0, 1, 1], [], []>} : vector<16x16xf32>, vector<16x64xf32>, vector<16x64xf32> -> vector<16x64xf32>
    %120 = arith.addf %115, %119 : vector<16x64xf32>
    %121 = vector.extract_strided_slice %94 {offsets = [80, 0], sizes = [16, 16], strides = [1, 1]} : vector<256x16xf32> to vector<16x16xf32>
    %c5_81 = arith.constant 5 : index
    %c0_82 = arith.constant 0 : index
    %c0_83 = arith.constant 0 : index
    %122 = vector.load %arg7[%c5_81, %c0_82, %c0_83] : memref<16x16x64xf32, #tpu.memory_space<vmem>>, vector<1x16x64xf32>
    %123 = vector.shape_cast %122 : vector<1x16x64xf32> to vector<16x64xf32>
    %cst_84 = arith.constant dense<0.000000e+00> : vector<16x64xf32>
    %124 = tpu.matmul %121, %123, %cst_84 {dimension_numbers = #tpu.dot_dimension_numbers<[1], [0], [0], [1], [0, 0, 1, 1], [], []>} : vector<16x16xf32>, vector<16x64xf32>, vector<16x64xf32> -> vector<16x64xf32>
    %125 = arith.addf %120, %124 : vector<16x64xf32>
    %126 = vector.extract_strided_slice %94 {offsets = [96, 0], sizes = [16, 16], strides = [1, 1]} : vector<256x16xf32> to vector<16x16xf32>
    %c6_85 = arith.constant 6 : index
    %c0_86 = arith.constant 0 : index
    %c0_87 = arith.constant 0 : index
    %127 = vector.load %arg7[%c6_85, %c0_86, %c0_87] : memref<16x16x64xf32, #tpu.memory_space<vmem>>, vector<1x16x64xf32>
    %128 = vector.shape_cast %127 : vector<1x16x64xf32> to vector<16x64xf32>
    %cst_88 = arith.constant dense<0.000000e+00> : vector<16x64xf32>
    %129 = tpu.matmul %126, %128, %cst_88 {dimension_numbers = #tpu.dot_dimension_numbers<[1], [0], [0], [1], [0, 0, 1, 1], [], []>} : vector<16x16xf32>, vector<16x64xf32>, vector<16x64xf32> -> vector<16x64xf32>
    %130 = arith.addf %125, %129 : vector<16x64xf32>
    %131 = vector.extract_strided_slice %94 {offsets = [112, 0], sizes = [16, 16], strides = [1, 1]} : vector<256x16xf32> to vector<16x16xf32>
    %c7_89 = arith.constant 7 : index
    %c0_90 = arith.constant 0 : index
    %c0_91 = arith.constant 0 : index
    %132 = vector.load %arg7[%c7_89, %c0_90, %c0_91] : memref<16x16x64xf32, #tpu.memory_space<vmem>>, vector<1x16x64xf32>
    %133 = vector.shape_cast %132 : vector<1x16x64xf32> to vector<16x64xf32>
    %cst_92 = arith.constant dense<0.000000e+00> : vector<16x64xf32>
    %134 = tpu.matmul %131, %133, %cst_92 {dimension_numbers = #tpu.dot_dimension_numbers<[1], [0], [0], [1], [0, 0, 1, 1], [], []>} : vector<16x16xf32>, vector<16x64xf32>, vector<16x64xf32> -> vector<16x64xf32>
    %135 = arith.addf %130, %134 : vector<16x64xf32>
    %136 = vector.extract_strided_slice %94 {offsets = [128, 0], sizes = [16, 16], strides = [1, 1]} : vector<256x16xf32> to vector<16x16xf32>
    %c8_93 = arith.constant 8 : index
    %c0_94 = arith.constant 0 : index
    %c0_95 = arith.constant 0 : index
    %137 = vector.load %arg7[%c8_93, %c0_94, %c0_95] : memref<16x16x64xf32, #tpu.memory_space<vmem>>, vector<1x16x64xf32>
    %138 = vector.shape_cast %137 : vector<1x16x64xf32> to vector<16x64xf32>
    %cst_96 = arith.constant dense<0.000000e+00> : vector<16x64xf32>
    %139 = tpu.matmul %136, %138, %cst_96 {dimension_numbers = #tpu.dot_dimension_numbers<[1], [0], [0], [1], [0, 0, 1, 1], [], []>} : vector<16x16xf32>, vector<16x64xf32>, vector<16x64xf32> -> vector<16x64xf32>
    %140 = arith.addf %135, %139 : vector<16x64xf32>
    %141 = vector.extract_strided_slice %94 {offsets = [144, 0], sizes = [16, 16], strides = [1, 1]} : vector<256x16xf32> to vector<16x16xf32>
    %c9_97 = arith.constant 9 : index
    %c0_98 = arith.constant 0 : index
    %c0_99 = arith.constant 0 : index
    %142 = vector.load %arg7[%c9_97, %c0_98, %c0_99] : memref<16x16x64xf32, #tpu.memory_space<vmem>>, vector<1x16x64xf32>
    %143 = vector.shape_cast %142 : vector<1x16x64xf32> to vector<16x64xf32>
    %cst_100 = arith.constant dense<0.000000e+00> : vector<16x64xf32>
    %144 = tpu.matmul %141, %143, %cst_100 {dimension_numbers = #tpu.dot_dimension_numbers<[1], [0], [0], [1], [0, 0, 1, 1], [], []>} : vector<16x16xf32>, vector<16x64xf32>, vector<16x64xf32> -> vector<16x64xf32>
    %145 = arith.addf %140, %144 : vector<16x64xf32>
    %146 = vector.extract_strided_slice %94 {offsets = [160, 0], sizes = [16, 16], strides = [1, 1]} : vector<256x16xf32> to vector<16x16xf32>
    %c10_101 = arith.constant 10 : index
    %c0_102 = arith.constant 0 : index
    %c0_103 = arith.constant 0 : index
    %147 = vector.load %arg7[%c10_101, %c0_102, %c0_103] : memref<16x16x64xf32, #tpu.memory_space<vmem>>, vector<1x16x64xf32>
    %148 = vector.shape_cast %147 : vector<1x16x64xf32> to vector<16x64xf32>
    %cst_104 = arith.constant dense<0.000000e+00> : vector<16x64xf32>
    %149 = tpu.matmul %146, %148, %cst_104 {dimension_numbers = #tpu.dot_dimension_numbers<[1], [0], [0], [1], [0, 0, 1, 1], [], []>} : vector<16x16xf32>, vector<16x64xf32>, vector<16x64xf32> -> vector<16x64xf32>
    %150 = arith.addf %145, %149 : vector<16x64xf32>
    %151 = vector.extract_strided_slice %94 {offsets = [176, 0], sizes = [16, 16], strides = [1, 1]} : vector<256x16xf32> to vector<16x16xf32>
    %c11_105 = arith.constant 11 : index
    %c0_106 = arith.constant 0 : index
    %c0_107 = arith.constant 0 : index
    %152 = vector.load %arg7[%c11_105, %c0_106, %c0_107] : memref<16x16x64xf32, #tpu.memory_space<vmem>>, vector<1x16x64xf32>
    %153 = vector.shape_cast %152 : vector<1x16x64xf32> to vector<16x64xf32>
    %cst_108 = arith.constant dense<0.000000e+00> : vector<16x64xf32>
    %154 = tpu.matmul %151, %153, %cst_108 {dimension_numbers = #tpu.dot_dimension_numbers<[1], [0], [0], [1], [0, 0, 1, 1], [], []>} : vector<16x16xf32>, vector<16x64xf32>, vector<16x64xf32> -> vector<16x64xf32>
    %155 = arith.addf %150, %154 : vector<16x64xf32>
    %156 = vector.extract_strided_slice %94 {offsets = [192, 0], sizes = [16, 16], strides = [1, 1]} : vector<256x16xf32> to vector<16x16xf32>
    %c12_109 = arith.constant 12 : index
    %c0_110 = arith.constant 0 : index
    %c0_111 = arith.constant 0 : index
    %157 = vector.load %arg7[%c12_109, %c0_110, %c0_111] : memref<16x16x64xf32, #tpu.memory_space<vmem>>, vector<1x16x64xf32>
    %158 = vector.shape_cast %157 : vector<1x16x64xf32> to vector<16x64xf32>
    %cst_112 = arith.constant dense<0.000000e+00> : vector<16x64xf32>
    %159 = tpu.matmul %156, %158, %cst_112 {dimension_numbers = #tpu.dot_dimension_numbers<[1], [0], [0], [1], [0, 0, 1, 1], [], []>} : vector<16x16xf32>, vector<16x64xf32>, vector<16x64xf32> -> vector<16x64xf32>
    %160 = arith.addf %155, %159 : vector<16x64xf32>
    %161 = vector.extract_strided_slice %94 {offsets = [208, 0], sizes = [16, 16], strides = [1, 1]} : vector<256x16xf32> to vector<16x16xf32>
    %c13_113 = arith.constant 13 : index
    %c0_114 = arith.constant 0 : index
    %c0_115 = arith.constant 0 : index
    %162 = vector.load %arg7[%c13_113, %c0_114, %c0_115] : memref<16x16x64xf32, #tpu.memory_space<vmem>>, vector<1x16x64xf32>
    %163 = vector.shape_cast %162 : vector<1x16x64xf32> to vector<16x64xf32>
    %cst_116 = arith.constant dense<0.000000e+00> : vector<16x64xf32>
    %164 = tpu.matmul %161, %163, %cst_116 {dimension_numbers = #tpu.dot_dimension_numbers<[1], [0], [0], [1], [0, 0, 1, 1], [], []>} : vector<16x16xf32>, vector<16x64xf32>, vector<16x64xf32> -> vector<16x64xf32>
    %165 = arith.addf %160, %164 : vector<16x64xf32>
    %166 = vector.extract_strided_slice %94 {offsets = [224, 0], sizes = [16, 16], strides = [1, 1]} : vector<256x16xf32> to vector<16x16xf32>
    %c14_117 = arith.constant 14 : index
    %c0_118 = arith.constant 0 : index
    %c0_119 = arith.constant 0 : index
    %167 = vector.load %arg7[%c14_117, %c0_118, %c0_119] : memref<16x16x64xf32, #tpu.memory_space<vmem>>, vector<1x16x64xf32>
    %168 = vector.shape_cast %167 : vector<1x16x64xf32> to vector<16x64xf32>
    %cst_120 = arith.constant dense<0.000000e+00> : vector<16x64xf32>
    %169 = tpu.matmul %166, %168, %cst_120 {dimension_numbers = #tpu.dot_dimension_numbers<[1], [0], [0], [1], [0, 0, 1, 1], [], []>} : vector<16x16xf32>, vector<16x64xf32>, vector<16x64xf32> -> vector<16x64xf32>
    %170 = arith.addf %165, %169 : vector<16x64xf32>
    %171 = vector.extract_strided_slice %94 {offsets = [240, 0], sizes = [16, 16], strides = [1, 1]} : vector<256x16xf32> to vector<16x16xf32>
    %c15_121 = arith.constant 15 : index
    %c0_122 = arith.constant 0 : index
    %c0_123 = arith.constant 0 : index
    %172 = vector.load %arg7[%c15_121, %c0_122, %c0_123] : memref<16x16x64xf32, #tpu.memory_space<vmem>>, vector<1x16x64xf32>
    %173 = vector.shape_cast %172 : vector<1x16x64xf32> to vector<16x64xf32>
    %cst_124 = arith.constant dense<0.000000e+00> : vector<16x64xf32>
    %174 = tpu.matmul %171, %173, %cst_124 {dimension_numbers = #tpu.dot_dimension_numbers<[1], [0], [0], [1], [0, 0, 1, 1], [], []>} : vector<16x16xf32>, vector<16x64xf32>, vector<16x64xf32> -> vector<16x64xf32>
    %175 = arith.addf %170, %174 : vector<16x64xf32>
    %c1_125 = arith.constant 1 : index
    %176 = memref.load %arg1[%c1_125] : memref<4xf32, #tpu.memory_space<smem>>
    %177 = vector.broadcast %176 : f32 to vector<16x64xf32>
    %178 = arith.mulf %177, %175 : vector<16x64xf32>
    %c1_126 = arith.constant 1 : index
    %179 = memref.load %arg2[%c1_126] : memref<4xf32, #tpu.memory_space<smem>>
    %180 = vector.broadcast %179 : f32 to vector<16x64xf32>
    %181 = arith.addf %178, %180 : vector<16x64xf32>
    %cst_127 = arith.constant 0.000000e+00 : f32
    %182 = vector.broadcast %cst_127 : f32 to vector<16x64xf32>
    %183 = arith.maximumf %181, %182 : vector<16x64xf32>
    %c0_128 = arith.constant 0 : index
    %c0_129 = arith.constant 0 : index
    %184 = vector.load %arg8[%c0_128, %c0_129] : memref<256x16xf32, #tpu.memory_space<vmem>>, vector<256x16xf32>
    %cst_130 = arith.constant dense<0.000000e+00> : vector<256x64xf32>
    %185 = tpu.matmul %184, %183, %cst_130 {dimension_numbers = #tpu.dot_dimension_numbers<[1], [0], [0], [1], [0, 0, 1, 1], [], []>} : vector<256x16xf32>, vector<16x64xf32>, vector<256x64xf32> -> vector<256x64xf32>
    %cst_131 = arith.constant 0.000000e+00 : f32
    %186 = vector.broadcast %cst_131 : f32 to vector<16x256xf32>
    %187 = vector.extract_strided_slice %185 {offsets = [0, 0], sizes = [16, 64], strides = [1, 1]} : vector<256x64xf32> to vector<16x64xf32>
    %c0_132 = arith.constant 0 : index
    %c0_133 = arith.constant 0 : index
    %c0_134 = arith.constant 0 : index
    %188 = vector.load %arg9[%c0_132, %c0_133, %c0_134] : memref<16x64x256xf32, #tpu.memory_space<vmem>>, vector<1x64x256xf32>
    %189 = vector.shape_cast %188 : vector<1x64x256xf32> to vector<64x256xf32>
    %cst_135 = arith.constant dense<0.000000e+00> : vector<16x256xf32>
    %190 = tpu.matmul %187, %189, %cst_135 {dimension_numbers = #tpu.dot_dimension_numbers<[1], [0], [0], [1], [0, 0, 1, 1], [], []>} : vector<16x64xf32>, vector<64x256xf32>, vector<16x256xf32> -> vector<16x256xf32>
    %191 = arith.addf %186, %190 : vector<16x256xf32>
    %192 = vector.extract_strided_slice %185 {offsets = [16, 0], sizes = [16, 64], strides = [1, 1]} : vector<256x64xf32> to vector<16x64xf32>
    %c1_136 = arith.constant 1 : index
    %c0_137 = arith.constant 0 : index
    %c0_138 = arith.constant 0 : index
    %193 = vector.load %arg9[%c1_136, %c0_137, %c0_138] : memref<16x64x256xf32, #tpu.memory_space<vmem>>, vector<1x64x256xf32>
    %194 = vector.shape_cast %193 : vector<1x64x256xf32> to vector<64x256xf32>
    %cst_139 = arith.constant dense<0.000000e+00> : vector<16x256xf32>
    %195 = tpu.matmul %192, %194, %cst_139 {dimension_numbers = #tpu.dot_dimension_numbers<[1], [0], [0], [1], [0, 0, 1, 1], [], []>} : vector<16x64xf32>, vector<64x256xf32>, vector<16x256xf32> -> vector<16x256xf32>
    %196 = arith.addf %191, %195 : vector<16x256xf32>
    %197 = vector.extract_strided_slice %185 {offsets = [32, 0], sizes = [16, 64], strides = [1, 1]} : vector<256x64xf32> to vector<16x64xf32>
    %c2_140 = arith.constant 2 : index
    %c0_141 = arith.constant 0 : index
    %c0_142 = arith.constant 0 : index
    %198 = vector.load %arg9[%c2_140, %c0_141, %c0_142] : memref<16x64x256xf32, #tpu.memory_space<vmem>>, vector<1x64x256xf32>
    %199 = vector.shape_cast %198 : vector<1x64x256xf32> to vector<64x256xf32>
    %cst_143 = arith.constant dense<0.000000e+00> : vector<16x256xf32>
    %200 = tpu.matmul %197, %199, %cst_143 {dimension_numbers = #tpu.dot_dimension_numbers<[1], [0], [0], [1], [0, 0, 1, 1], [], []>} : vector<16x64xf32>, vector<64x256xf32>, vector<16x256xf32> -> vector<16x256xf32>
    %201 = arith.addf %196, %200 : vector<16x256xf32>
    %202 = vector.extract_strided_slice %185 {offsets = [48, 0], sizes = [16, 64], strides = [1, 1]} : vector<256x64xf32> to vector<16x64xf32>
    %c3_144 = arith.constant 3 : index
    %c0_145 = arith.constant 0 : index
    %c0_146 = arith.constant 0 : index
    %203 = vector.load %arg9[%c3_144, %c0_145, %c0_146] : memref<16x64x256xf32, #tpu.memory_space<vmem>>, vector<1x64x256xf32>
    %204 = vector.shape_cast %203 : vector<1x64x256xf32> to vector<64x256xf32>
    %cst_147 = arith.constant dense<0.000000e+00> : vector<16x256xf32>
    %205 = tpu.matmul %202, %204, %cst_147 {dimension_numbers = #tpu.dot_dimension_numbers<[1], [0], [0], [1], [0, 0, 1, 1], [], []>} : vector<16x64xf32>, vector<64x256xf32>, vector<16x256xf32> -> vector<16x256xf32>
    %206 = arith.addf %201, %205 : vector<16x256xf32>
    %207 = vector.extract_strided_slice %185 {offsets = [64, 0], sizes = [16, 64], strides = [1, 1]} : vector<256x64xf32> to vector<16x64xf32>
    %c4_148 = arith.constant 4 : index
    %c0_149 = arith.constant 0 : index
    %c0_150 = arith.constant 0 : index
    %208 = vector.load %arg9[%c4_148, %c0_149, %c0_150] : memref<16x64x256xf32, #tpu.memory_space<vmem>>, vector<1x64x256xf32>
    %209 = vector.shape_cast %208 : vector<1x64x256xf32> to vector<64x256xf32>
    %cst_151 = arith.constant dense<0.000000e+00> : vector<16x256xf32>
    %210 = tpu.matmul %207, %209, %cst_151 {dimension_numbers = #tpu.dot_dimension_numbers<[1], [0], [0], [1], [0, 0, 1, 1], [], []>} : vector<16x64xf32>, vector<64x256xf32>, vector<16x256xf32> -> vector<16x256xf32>
    %211 = arith.addf %206, %210 : vector<16x256xf32>
    %212 = vector.extract_strided_slice %185 {offsets = [80, 0], sizes = [16, 64], strides = [1, 1]} : vector<256x64xf32> to vector<16x64xf32>
    %c5_152 = arith.constant 5 : index
    %c0_153 = arith.constant 0 : index
    %c0_154 = arith.constant 0 : index
    %213 = vector.load %arg9[%c5_152, %c0_153, %c0_154] : memref<16x64x256xf32, #tpu.memory_space<vmem>>, vector<1x64x256xf32>
    %214 = vector.shape_cast %213 : vector<1x64x256xf32> to vector<64x256xf32>
    %cst_155 = arith.constant dense<0.000000e+00> : vector<16x256xf32>
    %215 = tpu.matmul %212, %214, %cst_155 {dimension_numbers = #tpu.dot_dimension_numbers<[1], [0], [0], [1], [0, 0, 1, 1], [], []>} : vector<16x64xf32>, vector<64x256xf32>, vector<16x256xf32> -> vector<16x256xf32>
    %216 = arith.addf %211, %215 : vector<16x256xf32>
    %217 = vector.extract_strided_slice %185 {offsets = [96, 0], sizes = [16, 64], strides = [1, 1]} : vector<256x64xf32> to vector<16x64xf32>
    %c6_156 = arith.constant 6 : index
    %c0_157 = arith.constant 0 : index
    %c0_158 = arith.constant 0 : index
    %218 = vector.load %arg9[%c6_156, %c0_157, %c0_158] : memref<16x64x256xf32, #tpu.memory_space<vmem>>, vector<1x64x256xf32>
    %219 = vector.shape_cast %218 : vector<1x64x256xf32> to vector<64x256xf32>
    %cst_159 = arith.constant dense<0.000000e+00> : vector<16x256xf32>
    %220 = tpu.matmul %217, %219, %cst_159 {dimension_numbers = #tpu.dot_dimension_numbers<[1], [0], [0], [1], [0, 0, 1, 1], [], []>} : vector<16x64xf32>, vector<64x256xf32>, vector<16x256xf32> -> vector<16x256xf32>
    %221 = arith.addf %216, %220 : vector<16x256xf32>
    %222 = vector.extract_strided_slice %185 {offsets = [112, 0], sizes = [16, 64], strides = [1, 1]} : vector<256x64xf32> to vector<16x64xf32>
    %c7_160 = arith.constant 7 : index
    %c0_161 = arith.constant 0 : index
    %c0_162 = arith.constant 0 : index
    %223 = vector.load %arg9[%c7_160, %c0_161, %c0_162] : memref<16x64x256xf32, #tpu.memory_space<vmem>>, vector<1x64x256xf32>
    %224 = vector.shape_cast %223 : vector<1x64x256xf32> to vector<64x256xf32>
    %cst_163 = arith.constant dense<0.000000e+00> : vector<16x256xf32>
    %225 = tpu.matmul %222, %224, %cst_163 {dimension_numbers = #tpu.dot_dimension_numbers<[1], [0], [0], [1], [0, 0, 1, 1], [], []>} : vector<16x64xf32>, vector<64x256xf32>, vector<16x256xf32> -> vector<16x256xf32>
    %226 = arith.addf %221, %225 : vector<16x256xf32>
    %227 = vector.extract_strided_slice %185 {offsets = [128, 0], sizes = [16, 64], strides = [1, 1]} : vector<256x64xf32> to vector<16x64xf32>
    %c8_164 = arith.constant 8 : index
    %c0_165 = arith.constant 0 : index
    %c0_166 = arith.constant 0 : index
    %228 = vector.load %arg9[%c8_164, %c0_165, %c0_166] : memref<16x64x256xf32, #tpu.memory_space<vmem>>, vector<1x64x256xf32>
    %229 = vector.shape_cast %228 : vector<1x64x256xf32> to vector<64x256xf32>
    %cst_167 = arith.constant dense<0.000000e+00> : vector<16x256xf32>
    %230 = tpu.matmul %227, %229, %cst_167 {dimension_numbers = #tpu.dot_dimension_numbers<[1], [0], [0], [1], [0, 0, 1, 1], [], []>} : vector<16x64xf32>, vector<64x256xf32>, vector<16x256xf32> -> vector<16x256xf32>
    %231 = arith.addf %226, %230 : vector<16x256xf32>
    %232 = vector.extract_strided_slice %185 {offsets = [144, 0], sizes = [16, 64], strides = [1, 1]} : vector<256x64xf32> to vector<16x64xf32>
    %c9_168 = arith.constant 9 : index
    %c0_169 = arith.constant 0 : index
    %c0_170 = arith.constant 0 : index
    %233 = vector.load %arg9[%c9_168, %c0_169, %c0_170] : memref<16x64x256xf32, #tpu.memory_space<vmem>>, vector<1x64x256xf32>
    %234 = vector.shape_cast %233 : vector<1x64x256xf32> to vector<64x256xf32>
    %cst_171 = arith.constant dense<0.000000e+00> : vector<16x256xf32>
    %235 = tpu.matmul %232, %234, %cst_171 {dimension_numbers = #tpu.dot_dimension_numbers<[1], [0], [0], [1], [0, 0, 1, 1], [], []>} : vector<16x64xf32>, vector<64x256xf32>, vector<16x256xf32> -> vector<16x256xf32>
    %236 = arith.addf %231, %235 : vector<16x256xf32>
    %237 = vector.extract_strided_slice %185 {offsets = [160, 0], sizes = [16, 64], strides = [1, 1]} : vector<256x64xf32> to vector<16x64xf32>
    %c10_172 = arith.constant 10 : index
    %c0_173 = arith.constant 0 : index
    %c0_174 = arith.constant 0 : index
    %238 = vector.load %arg9[%c10_172, %c0_173, %c0_174] : memref<16x64x256xf32, #tpu.memory_space<vmem>>, vector<1x64x256xf32>
    %239 = vector.shape_cast %238 : vector<1x64x256xf32> to vector<64x256xf32>
    %cst_175 = arith.constant dense<0.000000e+00> : vector<16x256xf32>
    %240 = tpu.matmul %237, %239, %cst_175 {dimension_numbers = #tpu.dot_dimension_numbers<[1], [0], [0], [1], [0, 0, 1, 1], [], []>} : vector<16x64xf32>, vector<64x256xf32>, vector<16x256xf32> -> vector<16x256xf32>
    %241 = arith.addf %236, %240 : vector<16x256xf32>
    %242 = vector.extract_strided_slice %185 {offsets = [176, 0], sizes = [16, 64], strides = [1, 1]} : vector<256x64xf32> to vector<16x64xf32>
    %c11_176 = arith.constant 11 : index
    %c0_177 = arith.constant 0 : index
    %c0_178 = arith.constant 0 : index
    %243 = vector.load %arg9[%c11_176, %c0_177, %c0_178] : memref<16x64x256xf32, #tpu.memory_space<vmem>>, vector<1x64x256xf32>
    %244 = vector.shape_cast %243 : vector<1x64x256xf32> to vector<64x256xf32>
    %cst_179 = arith.constant dense<0.000000e+00> : vector<16x256xf32>
    %245 = tpu.matmul %242, %244, %cst_179 {dimension_numbers = #tpu.dot_dimension_numbers<[1], [0], [0], [1], [0, 0, 1, 1], [], []>} : vector<16x64xf32>, vector<64x256xf32>, vector<16x256xf32> -> vector<16x256xf32>
    %246 = arith.addf %241, %245 : vector<16x256xf32>
    %247 = vector.extract_strided_slice %185 {offsets = [192, 0], sizes = [16, 64], strides = [1, 1]} : vector<256x64xf32> to vector<16x64xf32>
    %c12_180 = arith.constant 12 : index
    %c0_181 = arith.constant 0 : index
    %c0_182 = arith.constant 0 : index
    %248 = vector.load %arg9[%c12_180, %c0_181, %c0_182] : memref<16x64x256xf32, #tpu.memory_space<vmem>>, vector<1x64x256xf32>
    %249 = vector.shape_cast %248 : vector<1x64x256xf32> to vector<64x256xf32>
    %cst_183 = arith.constant dense<0.000000e+00> : vector<16x256xf32>
    %250 = tpu.matmul %247, %249, %cst_183 {dimension_numbers = #tpu.dot_dimension_numbers<[1], [0], [0], [1], [0, 0, 1, 1], [], []>} : vector<16x64xf32>, vector<64x256xf32>, vector<16x256xf32> -> vector<16x256xf32>
    %251 = arith.addf %246, %250 : vector<16x256xf32>
    %252 = vector.extract_strided_slice %185 {offsets = [208, 0], sizes = [16, 64], strides = [1, 1]} : vector<256x64xf32> to vector<16x64xf32>
    %c13_184 = arith.constant 13 : index
    %c0_185 = arith.constant 0 : index
    %c0_186 = arith.constant 0 : index
    %253 = vector.load %arg9[%c13_184, %c0_185, %c0_186] : memref<16x64x256xf32, #tpu.memory_space<vmem>>, vector<1x64x256xf32>
    %254 = vector.shape_cast %253 : vector<1x64x256xf32> to vector<64x256xf32>
    %cst_187 = arith.constant dense<0.000000e+00> : vector<16x256xf32>
    %255 = tpu.matmul %252, %254, %cst_187 {dimension_numbers = #tpu.dot_dimension_numbers<[1], [0], [0], [1], [0, 0, 1, 1], [], []>} : vector<16x64xf32>, vector<64x256xf32>, vector<16x256xf32> -> vector<16x256xf32>
    %256 = arith.addf %251, %255 : vector<16x256xf32>
    %257 = vector.extract_strided_slice %185 {offsets = [224, 0], sizes = [16, 64], strides = [1, 1]} : vector<256x64xf32> to vector<16x64xf32>
    %c14_188 = arith.constant 14 : index
    %c0_189 = arith.constant 0 : index
    %c0_190 = arith.constant 0 : index
    %258 = vector.load %arg9[%c14_188, %c0_189, %c0_190] : memref<16x64x256xf32, #tpu.memory_space<vmem>>, vector<1x64x256xf32>
    %259 = vector.shape_cast %258 : vector<1x64x256xf32> to vector<64x256xf32>
    %cst_191 = arith.constant dense<0.000000e+00> : vector<16x256xf32>
    %260 = tpu.matmul %257, %259, %cst_191 {dimension_numbers = #tpu.dot_dimension_numbers<[1], [0], [0], [1], [0, 0, 1, 1], [], []>} : vector<16x64xf32>, vector<64x256xf32>, vector<16x256xf32> -> vector<16x256xf32>
    %261 = arith.addf %256, %260 : vector<16x256xf32>
    %262 = vector.extract_strided_slice %185 {offsets = [240, 0], sizes = [16, 64], strides = [1, 1]} : vector<256x64xf32> to vector<16x64xf32>
    %c15_192 = arith.constant 15 : index
    %c0_193 = arith.constant 0 : index
    %c0_194 = arith.constant 0 : index
    %263 = vector.load %arg9[%c15_192, %c0_193, %c0_194] : memref<16x64x256xf32, #tpu.memory_space<vmem>>, vector<1x64x256xf32>
    %264 = vector.shape_cast %263 : vector<1x64x256xf32> to vector<64x256xf32>
    %cst_195 = arith.constant dense<0.000000e+00> : vector<16x256xf32>
    %265 = tpu.matmul %262, %264, %cst_195 {dimension_numbers = #tpu.dot_dimension_numbers<[1], [0], [0], [1], [0, 0, 1, 1], [], []>} : vector<16x64xf32>, vector<64x256xf32>, vector<16x256xf32> -> vector<16x256xf32>
    %266 = arith.addf %261, %265 : vector<16x256xf32>
    %c2_196 = arith.constant 2 : index
    %267 = memref.load %arg1[%c2_196] : memref<4xf32, #tpu.memory_space<smem>>
    %268 = vector.broadcast %267 : f32 to vector<16x256xf32>
    %269 = arith.mulf %268, %266 : vector<16x256xf32>
    %c2_197 = arith.constant 2 : index
    %270 = memref.load %arg2[%c2_197] : memref<4xf32, #tpu.memory_space<smem>>
    %271 = vector.broadcast %270 : f32 to vector<16x256xf32>
    %272 = arith.addf %269, %271 : vector<16x256xf32>
    %cst_198 = arith.constant 0.000000e+00 : f32
    %273 = vector.broadcast %cst_198 : f32 to vector<16x256xf32>
    %274 = arith.maximumf %272, %273 : vector<16x256xf32>
    %c0_199 = arith.constant 0 : index
    %c0_200 = arith.constant 0 : index
    %275 = vector.load %arg10[%c0_199, %c0_200] : memref<72x16xf32, #tpu.memory_space<vmem>>, vector<72x16xf32>
    %cst_201 = arith.constant dense<0.000000e+00> : vector<72x256xf32>
    %276 = tpu.matmul %275, %274, %cst_201 {dimension_numbers = #tpu.dot_dimension_numbers<[1], [0], [0], [1], [0, 0, 1, 1], [], []>} : vector<72x16xf32>, vector<16x256xf32>, vector<72x256xf32> -> vector<72x256xf32>
    %cst_202 = arith.constant 0.000000e+00 : f32
    %277 = vector.broadcast %cst_202 : f32 to vector<8x256xf32>
    %278 = vector.extract_strided_slice %276 {offsets = [0, 0], sizes = [8, 256], strides = [1, 1]} : vector<72x256xf32> to vector<8x256xf32>
    %c0_203 = arith.constant 0 : index
    %c0_204 = arith.constant 0 : index
    %c0_205 = arith.constant 0 : index
    %279 = vector.load %arg11[%c0_203, %c0_204, %c0_205] : memref<9x256x256xf32, #tpu.memory_space<vmem>>, vector<1x256x256xf32>
    %280 = vector.shape_cast %279 : vector<1x256x256xf32> to vector<256x256xf32>
    %cst_206 = arith.constant dense<0.000000e+00> : vector<8x256xf32>
    %281 = tpu.matmul %278, %280, %cst_206 {dimension_numbers = #tpu.dot_dimension_numbers<[1], [0], [0], [1], [0, 0, 1, 1], [], []>} : vector<8x256xf32>, vector<256x256xf32>, vector<8x256xf32> -> vector<8x256xf32>
    %282 = arith.addf %277, %281 : vector<8x256xf32>
    %283 = vector.extract_strided_slice %276 {offsets = [8, 0], sizes = [8, 256], strides = [1, 1]} : vector<72x256xf32> to vector<8x256xf32>
    %c1_207 = arith.constant 1 : index
    %c0_208 = arith.constant 0 : index
    %c0_209 = arith.constant 0 : index
    %284 = vector.load %arg11[%c1_207, %c0_208, %c0_209] : memref<9x256x256xf32, #tpu.memory_space<vmem>>, vector<1x256x256xf32>
    %285 = vector.shape_cast %284 : vector<1x256x256xf32> to vector<256x256xf32>
    %cst_210 = arith.constant dense<0.000000e+00> : vector<8x256xf32>
    %286 = tpu.matmul %283, %285, %cst_210 {dimension_numbers = #tpu.dot_dimension_numbers<[1], [0], [0], [1], [0, 0, 1, 1], [], []>} : vector<8x256xf32>, vector<256x256xf32>, vector<8x256xf32> -> vector<8x256xf32>
    %287 = arith.addf %282, %286 : vector<8x256xf32>
    %288 = vector.extract_strided_slice %276 {offsets = [16, 0], sizes = [8, 256], strides = [1, 1]} : vector<72x256xf32> to vector<8x256xf32>
    %c2_211 = arith.constant 2 : index
    %c0_212 = arith.constant 0 : index
    %c0_213 = arith.constant 0 : index
    %289 = vector.load %arg11[%c2_211, %c0_212, %c0_213] : memref<9x256x256xf32, #tpu.memory_space<vmem>>, vector<1x256x256xf32>
    %290 = vector.shape_cast %289 : vector<1x256x256xf32> to vector<256x256xf32>
    %cst_214 = arith.constant dense<0.000000e+00> : vector<8x256xf32>
    %291 = tpu.matmul %288, %290, %cst_214 {dimension_numbers = #tpu.dot_dimension_numbers<[1], [0], [0], [1], [0, 0, 1, 1], [], []>} : vector<8x256xf32>, vector<256x256xf32>, vector<8x256xf32> -> vector<8x256xf32>
    %292 = arith.addf %287, %291 : vector<8x256xf32>
    %293 = vector.extract_strided_slice %276 {offsets = [24, 0], sizes = [8, 256], strides = [1, 1]} : vector<72x256xf32> to vector<8x256xf32>
    %c3_215 = arith.constant 3 : index
    %c0_216 = arith.constant 0 : index
    %c0_217 = arith.constant 0 : index
    %294 = vector.load %arg11[%c3_215, %c0_216, %c0_217] : memref<9x256x256xf32, #tpu.memory_space<vmem>>, vector<1x256x256xf32>
    %295 = vector.shape_cast %294 : vector<1x256x256xf32> to vector<256x256xf32>
    %cst_218 = arith.constant dense<0.000000e+00> : vector<8x256xf32>
    %296 = tpu.matmul %293, %295, %cst_218 {dimension_numbers = #tpu.dot_dimension_numbers<[1], [0], [0], [1], [0, 0, 1, 1], [], []>} : vector<8x256xf32>, vector<256x256xf32>, vector<8x256xf32> -> vector<8x256xf32>
    %297 = arith.addf %292, %296 : vector<8x256xf32>
    %298 = vector.extract_strided_slice %276 {offsets = [32, 0], sizes = [8, 256], strides = [1, 1]} : vector<72x256xf32> to vector<8x256xf32>
    %c4_219 = arith.constant 4 : index
    %c0_220 = arith.constant 0 : index
    %c0_221 = arith.constant 0 : index
    %299 = vector.load %arg11[%c4_219, %c0_220, %c0_221] : memref<9x256x256xf32, #tpu.memory_space<vmem>>, vector<1x256x256xf32>
    %300 = vector.shape_cast %299 : vector<1x256x256xf32> to vector<256x256xf32>
    %cst_222 = arith.constant dense<0.000000e+00> : vector<8x256xf32>
    %301 = tpu.matmul %298, %300, %cst_222 {dimension_numbers = #tpu.dot_dimension_numbers<[1], [0], [0], [1], [0, 0, 1, 1], [], []>} : vector<8x256xf32>, vector<256x256xf32>, vector<8x256xf32> -> vector<8x256xf32>
    %302 = arith.addf %297, %301 : vector<8x256xf32>
    %303 = vector.extract_strided_slice %276 {offsets = [40, 0], sizes = [8, 256], strides = [1, 1]} : vector<72x256xf32> to vector<8x256xf32>
    %c5_223 = arith.constant 5 : index
    %c0_224 = arith.constant 0 : index
    %c0_225 = arith.constant 0 : index
    %304 = vector.load %arg11[%c5_223, %c0_224, %c0_225] : memref<9x256x256xf32, #tpu.memory_space<vmem>>, vector<1x256x256xf32>
    %305 = vector.shape_cast %304 : vector<1x256x256xf32> to vector<256x256xf32>
    %cst_226 = arith.constant dense<0.000000e+00> : vector<8x256xf32>
    %306 = tpu.matmul %303, %305, %cst_226 {dimension_numbers = #tpu.dot_dimension_numbers<[1], [0], [0], [1], [0, 0, 1, 1], [], []>} : vector<8x256xf32>, vector<256x256xf32>, vector<8x256xf32> -> vector<8x256xf32>
    %307 = arith.addf %302, %306 : vector<8x256xf32>
    %308 = vector.extract_strided_slice %276 {offsets = [48, 0], sizes = [8, 256], strides = [1, 1]} : vector<72x256xf32> to vector<8x256xf32>
    %c6_227 = arith.constant 6 : index
    %c0_228 = arith.constant 0 : index
    %c0_229 = arith.constant 0 : index
    %309 = vector.load %arg11[%c6_227, %c0_228, %c0_229] : memref<9x256x256xf32, #tpu.memory_space<vmem>>, vector<1x256x256xf32>
    %310 = vector.shape_cast %309 : vector<1x256x256xf32> to vector<256x256xf32>
    %cst_230 = arith.constant dense<0.000000e+00> : vector<8x256xf32>
    %311 = tpu.matmul %308, %310, %cst_230 {dimension_numbers = #tpu.dot_dimension_numbers<[1], [0], [0], [1], [0, 0, 1, 1], [], []>} : vector<8x256xf32>, vector<256x256xf32>, vector<8x256xf32> -> vector<8x256xf32>
    %312 = arith.addf %307, %311 : vector<8x256xf32>
    %313 = vector.extract_strided_slice %276 {offsets = [56, 0], sizes = [8, 256], strides = [1, 1]} : vector<72x256xf32> to vector<8x256xf32>
    %c7_231 = arith.constant 7 : index
    %c0_232 = arith.constant 0 : index
    %c0_233 = arith.constant 0 : index
    %314 = vector.load %arg11[%c7_231, %c0_232, %c0_233] : memref<9x256x256xf32, #tpu.memory_space<vmem>>, vector<1x256x256xf32>
    %315 = vector.shape_cast %314 : vector<1x256x256xf32> to vector<256x256xf32>
    %cst_234 = arith.constant dense<0.000000e+00> : vector<8x256xf32>
    %316 = tpu.matmul %313, %315, %cst_234 {dimension_numbers = #tpu.dot_dimension_numbers<[1], [0], [0], [1], [0, 0, 1, 1], [], []>} : vector<8x256xf32>, vector<256x256xf32>, vector<8x256xf32> -> vector<8x256xf32>
    %317 = arith.addf %312, %316 : vector<8x256xf32>
    %318 = vector.extract_strided_slice %276 {offsets = [64, 0], sizes = [8, 256], strides = [1, 1]} : vector<72x256xf32> to vector<8x256xf32>
    %c8_235 = arith.constant 8 : index
    %c0_236 = arith.constant 0 : index
    %c0_237 = arith.constant 0 : index
    %319 = vector.load %arg11[%c8_235, %c0_236, %c0_237] : memref<9x256x256xf32, #tpu.memory_space<vmem>>, vector<1x256x256xf32>
    %320 = vector.shape_cast %319 : vector<1x256x256xf32> to vector<256x256xf32>
    %cst_238 = arith.constant dense<0.000000e+00> : vector<8x256xf32>
    %321 = tpu.matmul %318, %320, %cst_238 {dimension_numbers = #tpu.dot_dimension_numbers<[1], [0], [0], [1], [0, 0, 1, 1], [], []>} : vector<8x256xf32>, vector<256x256xf32>, vector<8x256xf32> -> vector<8x256xf32>
    %322 = arith.addf %317, %321 : vector<8x256xf32>
    %c3_239 = arith.constant 3 : index
    %323 = memref.load %arg1[%c3_239] : memref<4xf32, #tpu.memory_space<smem>>
    %324 = vector.broadcast %323 : f32 to vector<8x256xf32>
    %325 = arith.mulf %324, %322 : vector<8x256xf32>
    %c3_240 = arith.constant 3 : index
    %326 = memref.load %arg2[%c3_240] : memref<4xf32, #tpu.memory_space<smem>>
    %327 = vector.broadcast %326 : f32 to vector<8x256xf32>
    %328 = arith.addf %325, %327 : vector<8x256xf32>
    %329 = math.tanh %328 : vector<8x256xf32>
    %c0_241 = arith.constant 0 : index
    %c0_242 = arith.constant 0 : index
    %c0_243 = arith.constant 0 : index
    %330 = vector.load %arg12[%c0_241, %c0_242, %c0_243] : memref<1x8x256xf32, #tpu.memory_space<vmem>>, vector<1x8x256xf32>
    %331 = vector.shape_cast %330 : vector<1x8x256xf32> to vector<8x256xf32>
    %332 = vector.shape_cast %329 : vector<8x256xf32> to vector<1x8x256xf32>
    tpu.vector_store %arg12[%c0_241, %c0_242, %c0_243], %332 {strides = array<i32>} : memref<1x8x256xf32, #tpu.memory_space<vmem>>, vector<1x8x256xf32>,
    return
  }
  func.func @transform_0(%arg0: i32) -> i32 {
    %c0_i32 = arith.constant 0 : i32
    %c0_i32_0 = arith.constant 0 : i32
    return %c0_i32 : i32
  }
  func.func @transform_1(%arg0: i32) -> i32 {
    %c0_i32 = arith.constant 0 : i32
    %c0_i32_0 = arith.constant 0 : i32
    return %c0_i32 : i32
  }
  func.func @transform_2(%arg0: i32) -> (i32, i32, i32) {
    %c0_i32 = arith.constant 0 : i32
    %c0_i32_0 = arith.constant 0 : i32
    %c0_i32_1 = arith.constant 0 : i32
    return %arg0, %c0_i32, %c0_i32_0 : i32, i32, i32
  }
  func.func @transform_3(%arg0: i32) -> (i32, i32) {
    %c0_i32 = arith.constant 0 : i32
    %c0_i32_0 = arith.constant 0 : i32
    %c0_i32_1 = arith.constant 0 : i32
    return %c0_i32, %c0_i32_0 : i32, i32
  }
  func.func @transform_4(%arg0: i32) -> (i32, i32, i32) {
    %c0_i32 = arith.constant 0 : i32
    %c0_i32_0 = arith.constant 0 : i32
    %c0_i32_1 = arith.constant 0 : i32
    %c0_i32_2 = arith.constant 0 : i32
    return %c0_i32, %c0_i32_0, %c0_i32_1 : i32, i32, i32
  }
  func.func @transform_5(%arg0: i32) -> (i32, i32) {
    %c0_i32 = arith.constant 0 : i32
    %c0_i32_0 = arith.constant 0 : i32
    %c0_i32_1 = arith.constant 0 : i32
    return %c0_i32, %c0_i32_0 : i32, i32
  }
  func.func @transform_6(%arg0: i32) -> (i32, i32, i32) {
    %c0_i32 = arith.constant 0 : i32
    %c0_i32_0 = arith.constant 0 : i32
    %c0_i32_1 = arith.constant 0 : i32
    %c0_i32_2 = arith.constant 0 : i32
    return %c0_i32, %c0_i32_0, %c0_i32_1 : i32, i32, i32
  }
  func.func @transform_7(%arg0: i32) -> (i32, i32) {
    %c0_i32 = arith.constant 0 : i32
    %c0_i32_0 = arith.constant 0 : i32
    %c0_i32_1 = arith.constant 0 : i32
    return %c0_i32, %c0_i32_0 : i32, i32
  }
  func.func @transform_8(%arg0: i32) -> (i32, i32, i32) {
    %c0_i32 = arith.constant 0 : i32
    %c0_i32_0 = arith.constant 0 : i32
    %c0_i32_1 = arith.constant 0 : i32
    %c0_i32_2 = arith.constant 0 : i32
    return %c0_i32, %c0_i32_0, %c0_i32_1 : i32, i32, i32
  }
  func.func @transform_9(%arg0: i32) -> (i32, i32) {
    %c0_i32 = arith.constant 0 : i32
    %c0_i32_0 = arith.constant 0 : i32
    %c0_i32_1 = arith.constant 0 : i32
    return %c0_i32, %c0_i32_0 : i32, i32
  }
  func.func @transform_10(%arg0: i32) -> (i32, i32, i32) {
    %c0_i32 = arith.constant 0 : i32
    %c0_i32_0 = arith.constant 0 : i32
    %c0_i32_1 = arith.constant 0 : i32
    %c0_i32_2 = arith.constant 0 : i32
    return %c0_i32, %c0_i32_0, %c0_i32_1 : i32, i32, i32
  }
  func.func @transform_11(%arg0: i32) -> (i32, i32, i32) {
    %c0_i32 = arith.constant 0 : i32
    %c0_i32_0 = arith.constant 0 : i32
    %c0_i32_1 = arith.constant 0 : i32
    return %arg0, %c0_i32, %c0_i32_0 : i32, i32, i32
  }
}

</mosaic_0001>

<llo_original>
// kernel: _lambda_.1
$region0: #{_lambda_.1}
  #allocation0 [shape = 'u32[]', space=smem, size = 0x4, offset = 0x4, fixed_abs, tag = 'smem constant byte address 0x4 - core index']
  #allocation1 [shape = 'u32[72,128]{1,0:T(1,128)}', space=vmem, size = 0x9000, scoped, tag = 'internal scratch']
  %s0 = inlined_call_operand.hbm [shape: f32[4], index: 0, kind: input, shape index: {}]
  %s1 = inlined_call_operand.hbm [shape: f32[4], index: 1, kind: input, shape index: {}]
  %s2 = inlined_call_operand.vmem [shape: f32[2,32,8], index: 2, kind: input, shape index: {}]
  %s3 = inlined_call_operand.vmem [shape: f32[512,32], index: 3, kind: input, shape index: {}]
  %s4 = inlined_call_operand.hbm [shape: f32[16,8,16], index: 4, kind: input, shape index: {}]
  %s5 = inlined_call_operand.vmem [shape: f32[256,32], index: 5, kind: input, shape index: {}]
  %s6 = inlined_call_operand.hbm [shape: f32[16,16,64], index: 6, kind: input, shape index: {}]
  %s7 = inlined_call_operand.vmem [shape: f32[256,16], index: 7, kind: input, shape index: {}]
  %s8 = inlined_call_operand.hbm [shape: f32[16,64,256], index: 8, kind: input, shape index: {}]
  %s9 = inlined_call_operand.vmem [shape: f32[72,16], index: 9, kind: input, shape index: {}]
  %s10 = inlined_call_operand.hbm [shape: f32[9,256,256], index: 10, kind: input, shape index: {}]
  %s11 = inlined_call_operand.vmem [shape: f32[2,8,256], index: 11, kind: output, shape index: {}]
  %s12 = sld [smem:[#allocation0]]
  $region101: #{_lambda_.1} parent=0
    _
  %s14 = ssub.s32 1, %s12
  %s15 = scalar_select 0, %s14, %s12
  $region1: #{_lambda_.1} parent=0
    #allocation2 [shape = 'u8[512]{0}', space=smem, size = 0x200, scoped, tag = 'input window, operand 0, single buffered']
    #allocation3 [shape = 's32[2]{0}', space=sflag, size = 0x8, scoped, tag = 'scoped memory for _lambda_.1']
    #allocation4 [shape = 's32[2]{0}', space=sflag, size = 0x8, scoped, tag = 'scoped memory for _lambda_.1']
    #allocation5 [shape = 'u8[512]{0}', space=smem, size = 0x200, scoped, tag = 'input window, operand 1, single buffered']
    #allocation6 [shape = 's32[1]{0}', space=sflag, size = 0x4, scoped, tag = 'scoped memory for _lambda_.1']
    #allocation7 [shape = 'u8[65536]{0}', space=vmem, size = 0x10000, scoped, tag = 'input window, operand 4, single buffered']
    #allocation8 [shape = 'u8[131072]{0}', space=vmem, size = 0x20000, scoped, tag = 'input window, operand 6, single buffered']
    #allocation9 [shape = 's32[1]{0}', space=sflag, size = 0x4, scoped, tag = 'scoped memory for _lambda_.1']
    #allocation10 [shape = 'u8[1048576]{0}', space=vmem, size = 0x100000, scoped, tag = 'input window, operand 8, single buffered']
    #allocation11 [shape = 'u8[2359296]{0}', space=vmem, size = 0x240000, scoped, tag = 'input window, operand 10, single buffered']
    #allocation12 [shape = 's32[1]{0}', space=sflag, size = 0x4, scoped, tag = 'scoped memory for _lambda_.1']
    %16 = vsyncpa [#allocation4], 0
    %17 = vsyncpa [#allocation6], 0
    %18 = vsyncpa [#allocation3], 0
    %19 = vsyncpa [#allocation9], 0
    %20 = vsyncpa [#allocation12], 0
    loop: start=0, step=1, limit=4
    $region2: #{_lambda_.1} parent=1 // loop_pre_header
      _
    $region3: #{_lambda_.1} parent=1 // loop_header
      %s22 = sphi 0, %s26
      %p23 = scmp.ge.s32.totalorder %s22, 4
      %s30 = sphi 0, %s30
      %s32 = sphi 0, %s30
      %s33 = sphi 0, %s32
      %s47 = sphi 0, %s33
      %s51 = sphi 0, %s51
      %s53 = sphi 0, %s51
      %s54 = sphi 0, %s53
      %s68 = sphi 0, %s54
      %s74 = sphi 0, %s76
      %s77 = sphi 0, %s74
      %s78 = sphi 0, %s77
      %s94 = sphi 0, %s78
      %s98 = sphi 0, %s98
      %s100 = sphi 0, %s98
      %s101 = sphi 0, %s100
      %s115 = sphi 0, %s101
      %s119 = sphi 0, %s119
      %s121 = sphi 0, %s119
      %s122 = sphi 0, %s121
      %s136 = sphi 0, %s122
      %s140 = sphi 0, %s140
      %s142 = sphi 0, %s140
      %s143 = sphi 0, %s142
      %s157 = sphi 0, %s143
      %s161 = sphi 0, %s161
      %s163 = sphi 0, %s161
      %s164 = sphi 0, %s163
      %s178 = sphi 0, %s164
      %s182 = sphi 0, %s182
      %s184 = sphi 0, %s182
      %s185 = sphi 0, %s184
      %s199 = sphi 0, %s185
      %s203 = sphi 0, %s203
      %s205 = sphi 0, %s203
      %s206 = sphi 0, %s205
      %s220 = sphi 0, %s206
      %s224 = sphi 0, %s224
      %s226 = sphi 0, %s224
      %s227 = sphi 0, %s226
      %s241 = sphi 0, %s227
      %s245 = sphi 0, %s245
      %s247 = sphi 0, %s245
      %s248 = sphi 0, %s247
      %s262 = sphi 0, %s248
      %s268 = sphi 0, %s270
      %s271 = sphi 0, %s268
      %s272 = sphi 0, %s271
      %s288 = sphi 0, %s272
    $region4: #{_lambda_.1} parent=1 // loop_header_branch
      %25 = sbr.rel (%p23) target = $region8
    $region5: #{_lambda_.1} parent=1 // loop_body
      %s27 = ssub.s32 %s22, 1
      %s28 = ssub.s32 %s22, 2
      %s29 = sadd.s32 %s22, 1
      %s31 = sadd.s32 %s30, 1
      %p34 = scmp.eq.s32.totalorder %s22, 1
      %p35 = scmp.ne.s32.totalorder %s30, %s32
      %p36 = scmp.eq.s32.totalorder %s22, 0
      %p37 = por %p35, %p36
      %p38 = scmp.ne.s32.totalorder %s30, %s32
      %p39 = scmp.eq.s32.totalorder %s27, 1
      %p40 = por %p38, %p39
      %p41 = scmp.ne.s32.totalorder %s32, %s33
      %p42 = scmp.eq.s32.totalorder %s27, 0
      %p43 = por %p41, %p42
      %p44 = scmp.ne.s32.totalorder %s32, %s33
      %p45 = scmp.eq.s32.totalorder %s28, 1
      %p46 = por %p44, %p45
      %p48 = scmp.ne.s32.totalorder %s33, %s47
      %p49 = scmp.eq.s32.totalorder %s28, 0
      %p50 = por %p48, %p49
      %s52 = sadd.s32 %s51, 1
      %p55 = scmp.eq.s32.totalorder %s22, 1
      %p56 = scmp.ne.s32.totalorder %s51, %s53
      %p57 = scmp.eq.s32.totalorder %s22, 0
      %p58 = por %p56, %p57
      %p59 = scmp.ne.s32.totalorder %s51, %s53
      %p60 = scmp.eq.s32.totalorder %s27, 1
      %p61 = por %p59, %p60
      %p62 = scmp.ne.s32.totalorder %s53, %s54
      %p63 = scmp.eq.s32.totalorder %s27, 0
      %p64 = por %p62, %p63
      %p65 = scmp.ne.s32.totalorder %s53, %s54
      %p66 = scmp.eq.s32.totalorder %s28, 1
      %p67 = por %p65, %p66
      %p69 = scmp.ne.s32.totalorder %s54, %s68
      %p70 = scmp.eq.s32.totalorder %s28, 0
      %p71 = por %p69, %p70
      %s72 = ssub.s32 %s22, %s29
      %p73 = scmp.eq.s32.totalorder %s72, 0
      %s75 = sadd.s32 %s74, 1
      %s76 = scalar_select %p73, %s74, %s75
      %p79 = pneg %p73
      %p80 = scmp.eq.s32.totalorder %s22, 1
      %p81 = por %p79, %p80
      %p82 = scmp.ne.s32.totalorder %s74, %s77
      %p83 = scmp.eq.s32.totalorder %s22, 0
      %p84 = por %p82, %p83
      %p85 = scmp.ne.s32.totalorder %s74, %s77
      %p86 = scmp.eq.s32.totalorder %s27, 1
      %p87 = por %p85, %p86
      %p88 = scmp.ne.s32.totalorder %s77, %s78
      %p89 = scmp.eq.s32.totalorder %s27, 0
      %p90 = por %p88, %p89
      %p91 = scmp.ne.s32.totalorder %s77, %s78
      %p92 = scmp.eq.s32.totalorder %s28, 1
      %p93 = por %p91, %p92
      %p95 = scmp.ne.s32.totalorder %s78, %s94
      %p96 = scmp.eq.s32.totalorder %s28, 0
      %p97 = por %p95, %p96
      %s99 = sadd.s32 %s98, 1
      %p102 = scmp.eq.s32.totalorder %s22, 1
      %p103 = scmp.ne.s32.totalorder %s98, %s100
      %p104 = scmp.eq.s32.totalorder %s22, 0
      %p105 = por %p103, %p104
      %p106 = scmp.ne.s32.totalorder %s98, %s100
      %p107 = scmp.eq.s32.totalorder %s27, 1
      %p108 = por %p106, %p107
      %p109 = scmp.ne.s32.totalorder %s100, %s101
      %p110 = scmp.eq.s32.totalorder %s27, 0
      %p111 = por %p109, %p110
      %p112 = scmp.ne.s32.totalorder %s100, %s101
      %p113 = scmp.eq.s32.totalorder %s28, 1
      %p114 = por %p112, %p113
      %p116 = scmp.ne.s32.totalorder %s101, %s115
      %p117 = scmp.eq.s32.totalorder %s28, 0
      %p118 = por %p116, %p117
      %s120 = sadd.s32 %s119, 1
      %p123 = scmp.eq.s32.totalorder %s22, 1
      %p124 = scmp.ne.s32.totalorder %s119, %s121
      %p125 = scmp.eq.s32.totalorder %s22, 0
      %p126 = por %p124, %p125
      %p127 = scmp.ne.s32.totalorder %s119, %s121
      %p128 = scmp.eq.s32.totalorder %s27, 1
      %p129 = por %p127, %p128
      %p130 = scmp.ne.s32.totalorder %s121, %s122
      %p131 = scmp.eq.s32.totalorder %s27, 0
      %p132 = por %p130, %p131
      %p133 = scmp.ne.s32.totalorder %s121, %s122
      %p134 = scmp.eq.s32.totalorder %s28, 1
      %p135 = por %p133, %p134
      %p137 = scmp.ne.s32.totalorder %s122, %s136
      %p138 = scmp.eq.s32.totalorder %s28, 0
      %p139 = por %p137, %p138
      %s141 = sadd.s32 %s140, 1
      %p144 = scmp.eq.s32.totalorder %s22, 1
      %p145 = scmp.ne.s32.totalorder %s140, %s142
      %p146 = scmp.eq.s32.totalorder %s22, 0
      %p147 = por %p145, %p146
      %p148 = scmp.ne.s32.totalorder %s140, %s142
      %p149 = scmp.eq.s32.totalorder %s27, 1
      %p150 = por %p148, %p149
      %p151 = scmp.ne.s32.totalorder %s142, %s143
      %p152 = scmp.eq.s32.totalorder %s27, 0
      %p153 = por %p151, %p152
      %p154 = scmp.ne.s32.totalorder %s142, %s143
      %p155 = scmp.eq.s32.totalorder %s28, 1
      %p156 = por %p154, %p155
      %p158 = scmp.ne.s32.totalorder %s143, %s157
      %p159 = scmp.eq.s32.totalorder %s28, 0
      %p160 = por %p158, %p159
      %s162 = sadd.s32 %s161, 1
      %p165 = scmp.eq.s32.totalorder %s22, 1
      %p166 = scmp.ne.s32.totalorder %s161, %s163
      %p167 = scmp.eq.s32.totalorder %s22, 0
      %p168 = por %p166, %p167
      %p169 = scmp.ne.s32.totalorder %s161, %s163
      %p170 = scmp.eq.s32.totalorder %s27, 1
      %p171 = por %p169, %p170
      %p172 = scmp.ne.s32.totalorder %s163, %s164
      %p173 = scmp.eq.s32.totalorder %s27, 0
      %p174 = por %p172, %p173
      %p175 = scmp.ne.s32.totalorder %s163, %s164
      %p176 = scmp.eq.s32.totalorder %s28, 1
      %p177 = por %p175, %p176
      %p179 = scmp.ne.s32.totalorder %s164, %s178
      %p180 = scmp.eq.s32.totalorder %s28, 0
      %p181 = por %p179, %p180
      %s183 = sadd.s32 %s182, 1
      %p186 = scmp.eq.s32.totalorder %s22, 1
      %p187 = scmp.ne.s32.totalorder %s182, %s184
      %p188 = scmp.eq.s32.totalorder %s22, 0
      %p189 = por %p187, %p188
      %p190 = scmp.ne.s32.totalorder %s182, %s184
      %p191 = scmp.eq.s32.totalorder %s27, 1
      %p192 = por %p190, %p191
      %p193 = scmp.ne.s32.totalorder %s184, %s185
      %p194 = scmp.eq.s32.totalorder %s27, 0
      %p195 = por %p193, %p194
      %p196 = scmp.ne.s32.totalorder %s184, %s185
      %p197 = scmp.eq.s32.totalorder %s28, 1
      %p198 = por %p196, %p197
      %p200 = scmp.ne.s32.totalorder %s185, %s199
      %p201 = scmp.eq.s32.totalorder %s28, 0
      %p202 = por %p200, %p201
      %s204 = sadd.s32 %s203, 1
      %p207 = scmp.eq.s32.totalorder %s22, 1
      %p208 = scmp.ne.s32.totalorder %s203, %s205
      %p209 = scmp.eq.s32.totalorder %s22, 0
      %p210 = por %p208, %p209
      %p211 = scmp.ne.s32.totalorder %s203, %s205
      %p212 = scmp.eq.s32.totalorder %s27, 1
      %p213 = por %p211, %p212
      %p214 = scmp.ne.s32.totalorder %s205, %s206
      %p215 = scmp.eq.s32.totalorder %s27, 0
      %p216 = por %p214, %p215
      %p217 = scmp.ne.s32.totalorder %s205, %s206
      %p218 = scmp.eq.s32.totalorder %s28, 1
      %p219 = por %p217, %p218
      %p221 = scmp.ne.s32.totalorder %s206, %s220
      %p222 = scmp.eq.s32.totalorder %s28, 0
      %p223 = por %p221, %p222
      %s225 = sadd.s32 %s224, 1
      %p228 = scmp.eq.s32.totalorder %s22, 1
      %p229 = scmp.ne.s32.totalorder %s224, %s226
      %p230 = scmp.eq.s32.totalorder %s22, 0
      %p231 = por %p229, %p230
      %p232 = scmp.ne.s32.totalorder %s224, %s226
      %p233 = scmp.eq.s32.totalorder %s27, 1
      %p234 = por %p232, %p233
      %p235 = scmp.ne.s32.totalorder %s226, %s227
      %p236 = scmp.eq.s32.totalorder %s27, 0
      %p237 = por %p235, %p236
      %p238 = scmp.ne.s32.totalorder %s226, %s227
      %p239 = scmp.eq.s32.totalorder %s28, 1
      %p240 = por %p238, %p239
      %p242 = scmp.ne.s32.totalorder %s227, %s241
      %p243 = scmp.eq.s32.totalorder %s28, 0
      %p244 = por %p242, %p243
      %s246 = sadd.s32 %s245, 1
      %p249 = scmp.eq.s32.totalorder %s22, 1
      %p250 = scmp.ne.s32.totalorder %s245, %s247
      %p251 = scmp.eq.s32.totalorder %s22, 0
      %p252 = por %p250, %p251
      %p253 = scmp.ne.s32.totalorder %s245, %s247
      %p254 = scmp.eq.s32.totalorder %s27, 1
      %p255 = por %p253, %p254
      %p256 = scmp.ne.s32.totalorder %s247, %s248
      %p257 = scmp.eq.s32.totalorder %s27, 0
      %p258 = por %p256, %p257
      %p259 = scmp.ne.s32.totalorder %s247, %s248
      %p260 = scmp.eq.s32.totalorder %s28, 1
      %p261 = por %p259, %p260
      %p263 = scmp.ne.s32.totalorder %s248, %s262
      %p264 = scmp.eq.s32.totalorder %s28, 0
      %p265 = por %p263, %p264
      %s266 = ssub.s32 %s22, %s29
      %p267 = scmp.eq.s32.totalorder %s266, 0
      %s269 = sadd.s32 %s268, 1
      %s270 = scalar_select %p267, %s268, %s269
      %p273 = pneg %p267
      %p274 = scmp.eq.s32.totalorder %s22, 1
      %p275 = por %p273, %p274
      %p276 = scmp.ne.s32.totalorder %s268, %s271
      %p277 = scmp.eq.s32.totalorder %s22, 0
      %p278 = por %p276, %p277
      %p279 = scmp.ne.s32.totalorder %s268, %s271
      %p280 = scmp.eq.s32.totalorder %s27, 1
      %p281 = por %p279, %p280
      %p282 = scmp.ne.s32.totalorder %s271, %s272
      %p283 = scmp.eq.s32.totalorder %s27, 0
      %p284 = por %p282, %p283
      %p285 = scmp.ne.s32.totalorder %s271, %s272
      %p286 = scmp.eq.s32.totalorder %s28, 1
      %p287 = por %p285, %p286
      %p289 = scmp.ne.s32.totalorder %s272, %s288
      %p290 = scmp.eq.s32.totalorder %s28, 0
      %p291 = por %p289, %p290
      %p292 = scmp.le.s32.totalorder 1, %s22
      %p293 = scmp.lt.s32.totalorder %s22, 3
      %p294 = pnand %p292, %p293
      %p295 = pneg %p294
      // Predicated region
      $region9: #{_lambda_.1} parent=5 // pred_check
        _
      $region10: #{_lambda_.1} parent=5 // pred_check_branch
        %297 = sbr.rel (%p294) target = $region12
      $region11: #{_lambda_.1} parent=5 // pred_region
        %s298 = ssub.s32 %s22, 1
        // Predicated region
        $region13: #{_lambda_.1} parent=11 // pred_check
          %p299 = pneg %p43
        $region14: #{_lambda_.1} parent=11 // pred_check_branch
          %301 = sbr.rel (%p299) target = $region16
        $region15: #{_lambda_.1} parent=11 // pred_region
          %303 = vsyncadd [#allocation4], 0
          %s305 = sshll.u32 %s0, 4
          %s306 = int_to_ptr.hbm [resolvable:$true] %s305
          %308 = dma.hbm_to_smem %s306, 16, [#allocation2], [#allocation4]
        $region16: #{_lambda_.1} parent=11 // pred_fallthru
          _
        // Predicated region
        $region17: #{_lambda_.1} parent=11 // pred_check
          %p309 = pneg %p64
        $region18: #{_lambda_.1} parent=11 // pred_check_branch
          %311 = sbr.rel (%p309) target = $region20
        $region19: #{_lambda_.1} parent=11 // pred_region
          %313 = vsyncadd [#allocation6], 0
          %s315 = sshll.u32 %s1, 4
          %s316 = int_to_ptr.hbm [resolvable:$true] %s315
          %318 = dma.hbm_to_smem %s316, 16, [#allocation5], [#allocation6]
        $region20: #{_lambda_.1} parent=11 // pred_fallthru
          _
        // Predicated region
        $region21: #{_lambda_.1} parent=11 // pred_check
          %p319 = pneg %p111
        $region22: #{_lambda_.1} parent=11 // pred_check_branch
          %321 = sbr.rel (%p319) target = $region24
        $region23: #{_lambda_.1} parent=11 // pred_region
          _
        $region24: #{_lambda_.1} parent=11 // pred_fallthru
          _
        // Predicated region
        $region25: #{_lambda_.1} parent=11 // pred_check
          %p322 = pneg %p132
        $region26: #{_lambda_.1} parent=11 // pred_check_branch
          %324 = sbr.rel (%p322) target = $region28
        $region27: #{_lambda_.1} parent=11 // pred_region
          %326 = vsyncadd [#allocation3], 0
          %s327 = sshll.u32 %s4, 4
          %s328 = int_to_ptr.hbm [resolvable:$true] %s327
          %s329 = sshll.u32 [#allocation7], 4
          %s330 = int_to_ptr.vmem [resolvable:$true] %s329
          %335 = dma.hbm_to_vmem [thread:$0]  %s328, 2048, %s330, [#allocation3], 128, 128, 8
        $region28: #{_lambda_.1} parent=11 // pred_fallthru
          _
        // Predicated region
        $region29: #{_lambda_.1} parent=11 // pred_check
          %p336 = pneg %p153
        $region30: #{_lambda_.1} parent=11 // pred_check_branch
          %338 = sbr.rel (%p336) target = $region32
        $region31: #{_lambda_.1} parent=11 // pred_region
          _
        $region32: #{_lambda_.1} parent=11 // pred_fallthru
          _
        // Predicated region
        $region33: #{_lambda_.1} parent=11 // pred_check
          %p339 = pneg %p174
        $region34: #{_lambda_.1} parent=11 // pred_check_branch
          %341 = sbr.rel (%p339) target = $region36
        $region35: #{_lambda_.1} parent=11 // pred_region
          %343 = vsyncadd [#allocation9], 0
          %s344 = sshll.u32 %s6, 4
          %s345 = int_to_ptr.hbm [resolvable:$true] %s344
          %s346 = sshll.u32 [#allocation8], 4
          %s347 = int_to_ptr.vmem [resolvable:$true] %s346
          %352 = dma.hbm_to_vmem [thread:$0]  %s345, 4096, %s347, [#allocation9], 128, 128, 8
        $region36: #{_lambda_.1} parent=11 // pred_fallthru
          _
        // Predicated region
        $region37: #{_lambda_.1} parent=11 // pred_check
          %p353 = pneg %p195
        $region38: #{_lambda_.1} parent=11 // pred_check_branch
          %355 = sbr.rel (%p353) target = $region40
        $region39: #{_lambda_.1} parent=11 // pred_region
          _
        $region40: #{_lambda_.1} parent=11 // pred_fallthru
          _
        // Predicated region
        $region41: #{_lambda_.1} parent=11 // pred_check
          %p356 = pneg %p216
        $region42: #{_lambda_.1} parent=11 // pred_check_branch
          %358 = sbr.rel (%p356) target = $region44
        $region43: #{_lambda_.1} parent=11 // pred_region
          %360 = vsyncadd [#allocation9], 0
          %s361 = sshll.u32 %s8, 4
          %s362 = int_to_ptr.hbm [resolvable:$true] %s361
          %s363 = sshll.u32 [#allocation10], 4
          %s364 = int_to_ptr.vmem [resolvable:$true] %s363
          %369 = dma.hbm_to_vmem [thread:$0]  %s362, 32768, %s364, [#allocation9], 256, 256, 16
        $region44: #{_lambda_.1} parent=11 // pred_fallthru
          _
        // Predicated region
        $region45: #{_lambda_.1} parent=11 // pred_check
          %p370 = pneg %p237
        $region46: #{_lambda_.1} parent=11 // pred_check_branch
          %372 = sbr.rel (%p370) target = $region48
        $region47: #{_lambda_.1} parent=11 // pred_region
          _
        $region48: #{_lambda_.1} parent=11 // pred_fallthru
          _
        // Predicated region
        $region49: #{_lambda_.1} parent=11 // pred_check
          %p373 = pneg %p258
        $region50: #{_lambda_.1} parent=11 // pred_check_branch
          %375 = sbr.rel (%p373) target = $region52
        $region51: #{_lambda_.1} parent=11 // pred_region
          %377 = vsyncadd [#allocation12], 0
          %s378 = sshll.u32 %s10, 4
          %s379 = int_to_ptr.hbm [resolvable:$true] %s378
          %s380 = sshll.u32 [#allocation11], 4
          %s381 = int_to_ptr.vmem [resolvable:$true] %s380
          %386 = dma.hbm_to_vmem [thread:$0]  %s379, 73728, %s381, [#allocation12], 256, 256, 16
        $region52: #{_lambda_.1} parent=11 // pred_fallthru
          _
      $region12: #{_lambda_.1} parent=5 // pred_fallthru
        _
      %p387 = scmp.lt.s32.totalorder %s22, 2
      // Predicated region
      $region53: #{_lambda_.1} parent=5 // pred_check
        %p388 = pneg %p387
      $region54: #{_lambda_.1} parent=5 // pred_check_branch
        %390 = sbr.rel (%p388) target = $region56
      $region55: #{_lambda_.1} parent=5 // pred_region
        // Predicated region
        $region57: #{_lambda_.1} parent=55 // pred_check
          %p391 = pneg %p84
        $region58: #{_lambda_.1} parent=55 // pred_check_branch
          %393 = sbr.rel (%p391) target = $region60
        $region59: #{_lambda_.1} parent=55 // pred_region
          %p394 = scmp.lt.s32.totalorder %s22, 1
          %s395 = scalar_select %p394, %s22, 1
          %s396 = smul.addr %s395, 4
          %s397 = smul.addr %s396, 8
          %s398 = scalar_lea.vmem %s2, %s397
        $region60: #{_lambda_.1} parent=55 // pred_fallthru
          _
      $region56: #{_lambda_.1} parent=5 // pred_fallthru
        _
      %p399 = scmp.le.s32.totalorder 1, %s22
      %p400 = scmp.lt.s32.totalorder %s22, 3
      %p401 = pnand %p399, %p400
      %p402 = pneg %p401
      // Predicated region
      $region61: #{_lambda_.1} parent=5 // pred_check
        _
      $region62: #{_lambda_.1} parent=5 // pred_check_branch
        %404 = sbr.rel (%p401) target = $region64
      $region63: #{_lambda_.1} parent=5 // pred_region
        %s405 = ssub.s32 %s22, 1
        // Predicated region
        $region65: #{_lambda_.1} parent=63 // pred_check
          %p406 = pneg %p43
        $region66: #{_lambda_.1} parent=63 // pred_check_branch
          %408 = sbr.rel (%p406) target = $region68
        $region67: #{_lambda_.1} parent=63 // pred_region
          %410 = dma.done [#allocation4], 16
        $region68: #{_lambda_.1} parent=63 // pred_fallthru
          _
        // Predicated region
        $region69: #{_lambda_.1} parent=63 // pred_check
          %p411 = pneg %p64
        $region70: #{_lambda_.1} parent=63 // pred_check_branch
          %413 = sbr.rel (%p411) target = $region72
        $region71: #{_lambda_.1} parent=63 // pred_region
          %415 = dma.done [#allocation6], 16
        $region72: #{_lambda_.1} parent=63 // pred_fallthru
          _
        // Predicated region
        $region73: #{_lambda_.1} parent=63 // pred_check
          %p416 = pneg %p132
        $region74: #{_lambda_.1} parent=63 // pred_check_branch
          %418 = sbr.rel (%p416) target = $region76
        $region75: #{_lambda_.1} parent=63 // pred_region
          %420 = dma.done [#allocation3], 2048
        $region76: #{_lambda_.1} parent=63 // pred_fallthru
          _
        // Predicated region
        $region77: #{_lambda_.1} parent=63 // pred_check
          %p421 = pneg %p174
        $region78: #{_lambda_.1} parent=63 // pred_check_branch
          %423 = sbr.rel (%p421) target = $region80
        $region79: #{_lambda_.1} parent=63 // pred_region
          %425 = dma.done [#allocation9], 4096
        $region80: #{_lambda_.1} parent=63 // pred_fallthru
          _
        // Predicated region
        $region81: #{_lambda_.1} parent=63 // pred_check
          %p426 = pneg %p216
        $region82: #{_lambda_.1} parent=63 // pred_check_branch
          %428 = sbr.rel (%p426) target = $region84
        $region83: #{_lambda_.1} parent=63 // pred_region
          %430 = dma.done [#allocation9], 32768
        $region84: #{_lambda_.1} parent=63 // pred_fallthru
          _
        // Predicated region
        $region85: #{_lambda_.1} parent=63 // pred_check
          %p431 = pneg %p258
        $region86: #{_lambda_.1} parent=63 // pred_check_branch
          %433 = sbr.rel (%p431) target = $region88
        $region87: #{_lambda_.1} parent=63 // pred_region
          %435 = dma.done [#allocation12], 73728
        $region88: #{_lambda_.1} parent=63 // pred_fallthru
          _
        %436 = sfence
        %p437 = pneg %p43
        %p438 = pneg %p40
        %p439 = pneg %p64
        %p440 = pneg %p61
        %p441 = scmp.lt.s32.totalorder %s27, 1
        %s442 = scalar_select %p441, %s27, 1
        %s443 = smul.addr %s442, 4
        %s444 = smul.addr %s443, 8
        %s445 = scalar_lea.vmem %s2, %s444
        %p446 = pneg %p90
        %p447 = pneg %p87
        %p448 = pneg %p111
        %p449 = pneg %p108
        %p450 = pneg %p132
        %p451 = pneg %p129
        %p452 = pneg %p153
        %p453 = pneg %p150
        %p454 = pneg %p174
        %p455 = pneg %p171
        %p456 = pneg %p195
        %p457 = pneg %p192
        %p458 = pneg %p216
        %p459 = pneg %p213
        %p460 = pneg %p237
        %p461 = pneg %p234
        %p462 = pneg %p258
        %p463 = pneg %p255
        %p464 = pneg %p284
        %p465 = pneg %p281
        %p466 = scmp.lt.s32.totalorder %s27, 1
        %s467 = scalar_select %p466, %s27, 1
        %s468 = smul.addr %s467, 2
        %s469 = smul.addr %s468, 8
        %s470 = scalar_lea.vmem %s11, %s469
        %p471 = scmp.lt.s32.totalorder %s27, 1
        %s472 = scalar_select %p471, %s27, 1
        %s473 = smul.addr %s472, 4
        %s474 = smul.addr %s473, 8
        %s475 = scalar_lea.vmem %s2, %s474
        %p476 = scmp.lt.s32.totalorder %s27, 1
        %s477 = scalar_select %p476, %s27, 1
        %s478 = smul.addr %s477, 2
        %s479 = smul.addr %s478, 8
        %s480 = scalar_lea.vmem %s11, %s479
        %v481 = vld [vmem:[%s475] sm:$0xff]
        %v482 = vld [vmem:[%s475 + $0x8] sm:$0xff]
        %v483 = vld [vmem:[%s475 + $0x10] sm:$0xff]
        %v484 = vld [vmem:[%s475 + $0x18] sm:$0xff]
        %v485 = vld [vmem:[%s3] sm:$0xff]
        %v486 = vld [vmem:[%s3 + $0x8] sm:$0xff]
        %v487 = vld [vmem:[%s3 + $0x10] sm:$0xff]
        %v488 = vld [vmem:[%s3 + $0x18] sm:$0xff]
        %v489 = vld [vmem:[%s3 + $0x20] sm:$0xff]
        %v490 = vld [vmem:[%s3 + $0x28] sm:$0xff]
        %v491 = vld [vmem:[%s3 + $0x30] sm:$0xff]
        %v492 = vld [vmem:[%s3 + $0x38] sm:$0xff]
        %v493 = vld [vmem:[%s3 + $0x40] sm:$0xff]
        %v494 = vld [vmem:[%s3 + $0x48] sm:$0xff]
        %v495 = vld [vmem:[%s3 + $0x50] sm:$0xff]
        %v496 = vld [vmem:[%s3 + $0x58] sm:$0xff]
        %v497 = vld [vmem:[%s3 + $0x60] sm:$0xff]
        %v498 = vld [vmem:[%s3 + $0x68] sm:$0xff]
        %v499 = vld [vmem:[%s3 + $0x70] sm:$0xff]
        %v500 = vld [vmem:[%s3 + $0x78] sm:$0xff]
        %v501 = vld [vmem:[%s3 + $0x80] sm:$0xff]
        %v502 = vld [vmem:[%s3 + $0x88] sm:$0xff]
        %v503 = vld [vmem:[%s3 + $0x90] sm:$0xff]
        %v504 = vld [vmem:[%s3 + $0x98] sm:$0xff]
        %v505 = vld [vmem:[%s3 + $0xa0] sm:$0xff]
        %v506 = vld [vmem:[%s3 + $0xa8] sm:$0xff]
        %v507 = vld [vmem:[%s3 + $0xb0] sm:$0xff]
        %v508 = vld [vmem:[%s3 + $0xb8] sm:$0xff]
        %v509 = vld [vmem:[%s3 + $0xc0] sm:$0xff]
        %v510 = vld [vmem:[%s3 + $0xc8] sm:$0xff]
        %v511 = vld [vmem:[%s3 + $0xd0] sm:$0xff]
        %v512 = vld [vmem:[%s3 + $0xd8] sm:$0xff]
        %v513 = vld [vmem:[%s3 + $0xe0] sm:$0xff]
        %v514 = vld [vmem:[%s3 + $0xe8] sm:$0xff]
        %v515 = vld [vmem:[%s3 + $0xf0] sm:$0xff]
        %v516 = vld [vmem:[%s3 + $0xf8] sm:$0xff]
        %v517 = vld [vmem:[%s3 + $0x100] sm:$0xff]
        %v518 = vld [vmem:[%s3 + $0x108] sm:$0xff]
        %v519 = vld [vmem:[%s3 + $0x110] sm:$0xff]
        %v520 = vld [vmem:[%s3 + $0x118] sm:$0xff]
        %v521 = vld [vmem:[%s3 + $0x120] sm:$0xff]
        %v522 = vld [vmem:[%s3 + $0x128] sm:$0xff]
        %v523 = vld [vmem:[%s3 + $0x130] sm:$0xff]
        %v524 = vld [vmem:[%s3 + $0x138] sm:$0xff]
        %v525 = vld [vmem:[%s3 + $0x140] sm:$0xff]
        %v526 = vld [vmem:[%s3 + $0x148] sm:$0xff]
        %v527 = vld [vmem:[%s3 + $0x150] sm:$0xff]
        %v528 = vld [vmem:[%s3 + $0x158] sm:$0xff]
        %v529 = vld [vmem:[%s3 + $0x160] sm:$0xff]
        %v530 = vld [vmem:[%s3 + $0x168] sm:$0xff]
        %v531 = vld [vmem:[%s3 + $0x170] sm:$0xff]
        %v532 = vld [vmem:[%s3 + $0x178] sm:$0xff]
        %v533 = vld [vmem:[%s3 + $0x180] sm:$0xff]
        %v534 = vld [vmem:[%s3 + $0x188] sm:$0xff]
        %v535 = vld [vmem:[%s3 + $0x190] sm:$0xff]
        %v536 = vld [vmem:[%s3 + $0x198] sm:$0xff]
        %v537 = vld [vmem:[%s3 + $0x1a0] sm:$0xff]
        %v538 = vld [vmem:[%s3 + $0x1a8] sm:$0xff]
        %v539 = vld [vmem:[%s3 + $0x1b0] sm:$0xff]
        %v540 = vld [vmem:[%s3 + $0x1b8] sm:$0xff]
        %v541 = vld [vmem:[%s3 + $0x1c0] sm:$0xff]
        %v542 = vld [vmem:[%s3 + $0x1c8] sm:$0xff]
        %v543 = vld [vmem:[%s3 + $0x1d0] sm:$0xff]
        %v544 = vld [vmem:[%s3 + $0x1d8] sm:$0xff]
        %v545 = vld [vmem:[%s3 + $0x1e0] sm:$0xff]
        %v546 = vld [vmem:[%s3 + $0x1e8] sm:$0xff]
        %v547 = vld [vmem:[%s3 + $0x1f0] sm:$0xff]
        %v548 = vld [vmem:[%s3 + $0x1f8] sm:$0xff]
        %vm549 = vcmask 261120
        %v551 = vsel %vm549, %v485, 0
        %v554 = vsel %vm549, %v486, 0
        %v557 = vsel %vm549, %v487, 0
        %v560 = vsel %vm549, %v488, 0
        %v563 = vsel %vm549, %v489, 0
        %v566 = vsel %vm549, %v490, 0
        %v569 = vsel %vm549, %v491, 0
        %v572 = vsel %vm549, %v492, 0
        %v575 = vsel %vm549, %v493, 0
        %v578 = vsel %vm549, %v494, 0
        %v581 = vsel %vm549, %v495, 0
        %v584 = vsel %vm549, %v496, 0
        %v587 = vsel %vm549, %v497, 0
        %v590 = vsel %vm549, %v498, 0
        %v593 = vsel %vm549, %v499, 0
        %v596 = vsel %vm549, %v500, 0
        %v599 = vsel %vm549, %v501, 0
        %v602 = vsel %vm549, %v502, 0
        %v605 = vsel %vm549, %v503, 0
        %v608 = vsel %vm549, %v504, 0
        %v611 = vsel %vm549, %v505, 0
        %v614 = vsel %vm549, %v506, 0
        %v617 = vsel %vm549, %v507, 0
        %v620 = vsel %vm549, %v508, 0
        %v623 = vsel %vm549, %v509, 0
        %v626 = vsel %vm549, %v510, 0
        %v629 = vsel %vm549, %v511, 0
        %v632 = vsel %vm549, %v512, 0
        %v635 = vsel %vm549, %v513, 0
        %v638 = vsel %vm549, %v514, 0
        %v641 = vsel %vm549, %v515, 0
        %v644 = vsel %vm549, %v516, 0
        %v647 = vsel %vm549, %v517, 0
        %v650 = vsel %vm549, %v518, 0
        %v653 = vsel %vm549, %v519, 0
        %v656 = vsel %vm549, %v520, 0
        %v659 = vsel %vm549, %v521, 0
        %v662 = vsel %vm549, %v522, 0
        %v665 = vsel %vm549, %v523, 0
        %v668 = vsel %vm549, %v524, 0
        %v671 = vsel %vm549, %v525, 0
        %v674 = vsel %vm549, %v526, 0
        %v677 = vsel %vm549, %v527, 0
        %v680 = vsel %vm549, %v528, 0
        %v683 = vsel %vm549, %v529, 0
        %v686 = vsel %vm549, %v530, 0
        %v689 = vsel %vm549, %v531, 0
        %v692 = vsel %vm549, %v532, 0
        %v695 = vsel %vm549, %v533, 0
        %v698 = vsel %vm549, %v534, 0
        %v701 = vsel %vm549, %v535, 0
        %v704 = vsel %vm549, %v536, 0
        %v707 = vsel %vm549, %v537, 0
        %v710 = vsel %vm549, %v538, 0
        %v713 = vsel %vm549, %v539, 0
        %v716 = vsel %vm549, %v540, 0
        %v719 = vsel %vm549, %v541, 0
        %v722 = vsel %vm549, %v542, 0
        %v725 = vsel %vm549, %v543, 0
        %v728 = vsel %vm549, %v544, 0
        %v731 = vsel %vm549, %v545, 0
        %v734 = vsel %vm549, %v546, 0
        %v737 = vsel %vm549, %v547, 0
        %v740 = vsel %vm549, %v548, 0
        %742 = vmatpush.msra.mxu0 0.0
        %743 = vmatpush.msra.mxu0 0.0
        %744 = vmatpush.msra.mxu0 0.0
        %745 = vmatpush.msra.mxu0 0.0
        %746 = vmatpush.msra.mxu0 0.0
        %747 = vmatpush.msra.mxu0 0.0
        %748 = vmatpush.msra.mxu0 0.0
        %749 = vmatpush.msra.mxu0 0.0
        %750 = vmatpush.msra.mxu0 0.0
        %751 = vmatpush.msra.mxu0 0.0
        %752 = vmatpush.msra.mxu0 0.0
        %753 = vmatpush.msra.mxu0 0.0
        %754 = vmatpush.msra.mxu0 %v484
        %755 = vmatpush.msra.mxu0 %v483
        %756 = vmatpush.msra.mxu0 %v482
        %757 = vmatpush.msra.mxu0 %v481
        %758 = vmatmul.f32.gmra.mxu0 %v551
        %v759 = vpop.f32.mrf.mxu0
        %v760 = vadd.f32 0.0, %v759
        %761 = vmatmul.f32.gmra.mxu0 %v554
        %v762 = vpop.f32.mrf.mxu0
        %v763 = vadd.f32 0.0, %v762
        %764 = vmatmul.f32.gmra.mxu0 %v557
        %v765 = vpop.f32.mrf.mxu0
        %v766 = vadd.f32 0.0, %v765
        %767 = vmatmul.f32.gmra.mxu0 %v560
        %v768 = vpop.f32.mrf.mxu0
        %v769 = vadd.f32 0.0, %v768
        %770 = vmatmul.f32.gmra.mxu0 %v563
        %v771 = vpop.f32.mrf.mxu0
        %v772 = vadd.f32 0.0, %v771
        %773 = vmatmul.f32.gmra.mxu0 %v566
        %v774 = vpop.f32.mrf.mxu0
        %v775 = vadd.f32 0.0, %v774
        %776 = vmatmul.f32.gmra.mxu0 %v569
        %v777 = vpop.f32.mrf.mxu0
        %v778 = vadd.f32 0.0, %v777
        %779 = vmatmul.f32.gmra.mxu0 %v572
        %v780 = vpop.f32.mrf.mxu0
        %v781 = vadd.f32 0.0, %v780
        %782 = vmatmul.f32.gmra.mxu0 %v575
        %v783 = vpop.f32.mrf.mxu0
        %v784 = vadd.f32 0.0, %v783
        %785 = vmatmul.f32.gmra.mxu0 %v578
        %v786 = vpop.f32.mrf.mxu0
        %v787 = vadd.f32 0.0, %v786
        %788 = vmatmul.f32.gmra.mxu0 %v581
        %v789 = vpop.f32.mrf.mxu0
        %v790 = vadd.f32 0.0, %v789
        %791 = vmatmul.f32.gmra.mxu0 %v584
        %v792 = vpop.f32.mrf.mxu0
        %v793 = vadd.f32 0.0, %v792
        %794 = vmatmul.f32.gmra.mxu0 %v587
        %v795 = vpop.f32.mrf.mxu0
        %v796 = vadd.f32 0.0, %v795
        %797 = vmatmul.f32.gmra.mxu0 %v590
        %v798 = vpop.f32.mrf.mxu0
        %v799 = vadd.f32 0.0, %v798
        %800 = vmatmul.f32.gmra.mxu0 %v593
        %v801 = vpop.f32.mrf.mxu0
        %v802 = vadd.f32 0.0, %v801
        %803 = vmatmul.f32.gmra.mxu0 %v596
        %v804 = vpop.f32.mrf.mxu0
        %v805 = vadd.f32 0.0, %v804
        %806 = vmatmul.f32.gmra.mxu0 %v599
        %v807 = vpop.f32.mrf.mxu0
        %v808 = vadd.f32 0.0, %v807
        %809 = vmatmul.f32.gmra.mxu0 %v602
        %v810 = vpop.f32.mrf.mxu0
        %v811 = vadd.f32 0.0, %v810
        %812 = vmatmul.f32.gmra.mxu0 %v605
        %v813 = vpop.f32.mrf.mxu0
        %v814 = vadd.f32 0.0, %v813
        %815 = vmatmul.f32.gmra.mxu0 %v608
        %v816 = vpop.f32.mrf.mxu0
        %v817 = vadd.f32 0.0, %v816
        %818 = vmatmul.f32.gmra.mxu0 %v611
        %v819 = vpop.f32.mrf.mxu0
        %v820 = vadd.f32 0.0, %v819
        %821 = vmatmul.f32.gmra.mxu0 %v614
        %v822 = vpop.f32.mrf.mxu0
        %v823 = vadd.f32 0.0, %v822
        %824 = vmatmul.f32.gmra.mxu0 %v617
        %v825 = vpop.f32.mrf.mxu0
        %v826 = vadd.f32 0.0, %v825
        %827 = vmatmul.f32.gmra.mxu0 %v620
        %v828 = vpop.f32.mrf.mxu0
        %v829 = vadd.f32 0.0, %v828
        %830 = vmatmul.f32.gmra.mxu0 %v623
        %v831 = vpop.f32.mrf.mxu0
        %v832 = vadd.f32 0.0, %v831
        %833 = vmatmul.f32.gmra.mxu0 %v626
        %v834 = vpop.f32.mrf.mxu0
        %v835 = vadd.f32 0.0, %v834
        %836 = vmatmul.f32.gmra.mxu0 %v629
        %v837 = vpop.f32.mrf.mxu0
        %v838 = vadd.f32 0.0, %v837
        %839 = vmatmul.f32.gmra.mxu0 %v632
        %v840 = vpop.f32.mrf.mxu0
        %v841 = vadd.f32 0.0, %v840
        %842 = vmatmul.f32.gmra.mxu0 %v635
        %v843 = vpop.f32.mrf.mxu0
        %v844 = vadd.f32 0.0, %v843
        %845 = vmatmul.f32.gmra.mxu0 %v638
        %v846 = vpop.f32.mrf.mxu0
        %v847 = vadd.f32 0.0, %v846
        %848 = vmatmul.f32.gmra.mxu0 %v641
        %v849 = vpop.f32.mrf.mxu0
        %v850 = vadd.f32 0.0, %v849
        %851 = vmatmul.f32.gmra.mxu0 %v644
        %v852 = vpop.f32.mrf.mxu0
        %v853 = vadd.f32 0.0, %v852
        %854 = vmatmul.f32.gmra.mxu0 %v647
        %v855 = vpop.f32.mrf.mxu0
        %v856 = vadd.f32 0.0, %v855
        %857 = vmatmul.f32.gmra.mxu0 %v650
        %v858 = vpop.f32.mrf.mxu0
        %v859 = vadd.f32 0.0, %v858
        %860 = vmatmul.f32.gmra.mxu0 %v653
        %v861 = vpop.f32.mrf.mxu0
        %v862 = vadd.f32 0.0, %v861
        %863 = vmatmul.f32.gmra.mxu0 %v656
        %v864 = vpop.f32.mrf.mxu0
        %v865 = vadd.f32 0.0, %v864
        %866 = vmatmul.f32.gmra.mxu0 %v659
        %v867 = vpop.f32.mrf.mxu0
        %v868 = vadd.f32 0.0, %v867
        %869 = vmatmul.f32.gmra.mxu0 %v662
        %v870 = vpop.f32.mrf.mxu0
        %v871 = vadd.f32 0.0, %v870
        %872 = vmatmul.f32.gmra.mxu0 %v665
        %v873 = vpop.f32.mrf.mxu0
        %v874 = vadd.f32 0.0, %v873
        %875 = vmatmul.f32.gmra.mxu0 %v668
        %v876 = vpop.f32.mrf.mxu0
        %v877 = vadd.f32 0.0, %v876
        %878 = vmatmul.f32.gmra.mxu0 %v671
        %v879 = vpop.f32.mrf.mxu0
        %v880 = vadd.f32 0.0, %v879
        %881 = vmatmul.f32.gmra.mxu0 %v674
        %v882 = vpop.f32.mrf.mxu0
        %v883 = vadd.f32 0.0, %v882
        %884 = vmatmul.f32.gmra.mxu0 %v677
        %v885 = vpop.f32.mrf.mxu0
        %v886 = vadd.f32 0.0, %v885
        %887 = vmatmul.f32.gmra.mxu0 %v680
        %v888 = vpop.f32.mrf.mxu0
        %v889 = vadd.f32 0.0, %v888
        %890 = vmatmul.f32.gmra.mxu0 %v683
        %v891 = vpop.f32.mrf.mxu0
        %v892 = vadd.f32 0.0, %v891
        %893 = vmatmul.f32.gmra.mxu0 %v686
        %v894 = vpop.f32.mrf.mxu0
        %v895 = vadd.f32 0.0, %v894
        %896 = vmatmul.f32.gmra.mxu0 %v689
        %v897 = vpop.f32.mrf.mxu0
        %v898 = vadd.f32 0.0, %v897
        %899 = vmatmul.f32.gmra.mxu0 %v692
        %v900 = vpop.f32.mrf.mxu0
        %v901 = vadd.f32 0.0, %v900
        %902 = vmatmul.f32.gmra.mxu0 %v695
        %v903 = vpop.f32.mrf.mxu0
        %v904 = vadd.f32 0.0, %v903
        %905 = vmatmul.f32.gmra.mxu0 %v698
        %v906 = vpop.f32.mrf.mxu0
        %v907 = vadd.f32 0.0, %v906
        %908 = vmatmul.f32.gmra.mxu0 %v701
        %v909 = vpop.f32.mrf.mxu0
        %v910 = vadd.f32 0.0, %v909
        %911 = vmatmul.f32.gmra.mxu0 %v704
        %v912 = vpop.f32.mrf.mxu0
        %v913 = vadd.f32 0.0, %v912
        %914 = vmatmul.f32.gmra.mxu0 %v707
        %v915 = vpop.f32.mrf.mxu0
        %v916 = vadd.f32 0.0, %v915
        %917 = vmatmul.f32.gmra.mxu0 %v710
        %v918 = vpop.f32.mrf.mxu0
        %v919 = vadd.f32 0.0, %v918
        %920 = vmatmul.f32.gmra.mxu0 %v713
        %v921 = vpop.f32.mrf.mxu0
        %v922 = vadd.f32 0.0, %v921
        %923 = vmatmul.f32.gmra.mxu0 %v716
        %v924 = vpop.f32.mrf.mxu0
        %v925 = vadd.f32 0.0, %v924
        %926 = vmatmul.f32.gmra.mxu0 %v719
        %v927 = vpop.f32.mrf.mxu0
        %v928 = vadd.f32 0.0, %v927
        %929 = vmatmul.f32.gmra.mxu0 %v722
        %v930 = vpop.f32.mrf.mxu0
        %v931 = vadd.f32 0.0, %v930
        %932 = vmatmul.f32.gmra.mxu0 %v725
        %v933 = vpop.f32.mrf.mxu0
        %v934 = vadd.f32 0.0, %v933
        %935 = vmatmul.f32.gmra.mxu0 %v728
        %v936 = vpop.f32.mrf.mxu0
        %v937 = vadd.f32 0.0, %v936
        %938 = vmatmul.f32.gmra.mxu0 %v731
        %v939 = vpop.f32.mrf.mxu0
        %v940 = vadd.f32 0.0, %v939
        %941 = vmatmul.f32.gmra.mxu0 %v734
        %v942 = vpop.f32.mrf.mxu0
        %v943 = vadd.f32 0.0, %v942
        %944 = vmatmul.f32.gmra.mxu0 %v737
        %v945 = vpop.f32.mrf.mxu0
        %v946 = vadd.f32 0.0, %v945
        %947 = vmatmul.f32.gmra.mxu0 %v740
        %v948 = vpop.f32.mrf.mxu0
        %v949 = vadd.f32 0.0, %v948
        %950 = vdwg.mxu0
        %v951 = vld [vmem:[#allocation7] sm:$0xff]
        %s952 = scalar_lea.vmem [#allocation7], 8
        %v953 = vld [vmem:[%s952] sm:$0xff]
        %vm954 = vcmask 64512
        %v956 = vsel %vm954, %v772, 0
        %v959 = vsel %vm954, %v775, 0
        %v962 = vsel %vm954, %v778, 0
        %v965 = vsel %vm954, %v781, 0
        %967 = vmatpush.msra.mxu0 0.0
        %968 = vmatpush.msra.mxu0 0.0
        %969 = vmatpush.msra.mxu0 0.0
        %970 = vmatpush.msra.mxu0 0.0
        %971 = vmatpush.msra.mxu0 0.0
        %972 = vmatpush.msra.mxu0 0.0
        %973 = vmatpush.msra.mxu0 0.0
        %974 = vmatpush.msra.mxu0 0.0
        %975 = vmatpush.msra.mxu0 0.0
        %976 = vmatpush.msra.mxu0 0.0
        %977 = vmatpush.msra.mxu0 0.0
        %978 = vmatpush.msra.mxu0 0.0
        %979 = vmatpush.msra.mxu0 0.0
        %980 = vmatpush.msra.mxu0 0.0
        %981 = vmatpush.msra.mxu0 0.0
        %982 = vmatpush.msra.mxu0 %v953
        %983 = vmatmul.f32.gmra.mxu0 %v956
        %v984 = vpop.f32.mrf.mxu0
        %v985 = vadd.f32 0.0, %v984
        %986 = vmatmul.f32.gmra.mxu0 %v959
        %v987 = vpop.f32.mrf.mxu0
        %v988 = vadd.f32 0.0, %v987
        %989 = vmatmul.f32.gmra.mxu0 %v962
        %v990 = vpop.f32.mrf.mxu0
        %v991 = vadd.f32 0.0, %v990
        %992 = vmatmul.f32.gmra.mxu0 %v965
        %v993 = vpop.f32.mrf.mxu0
        %v994 = vadd.f32 0.0, %v993
        %995 = vdwg.mxu0
        %v997 = vsel %vm954, %v760, 0
        %v1000 = vsel %vm954, %v763, 0
        %v1003 = vsel %vm954, %v766, 0
        %v1006 = vsel %vm954, %v769, 0
        %1008 = vmatpush.msra.mxu0 0.0
        %1009 = vmatpush.msra.mxu0 0.0
        %1010 = vmatpush.msra.mxu0 0.0
        %1011 = vmatpush.msra.mxu0 0.0
        %1012 = vmatpush.msra.mxu0 0.0
        %1013 = vmatpush.msra.mxu0 0.0
        %1014 = vmatpush.msra.mxu0 0.0
        %1015 = vmatpush.msra.mxu0 0.0
        %1016 = vmatpush.msra.mxu0 0.0
        %1017 = vmatpush.msra.mxu0 0.0
        %1018 = vmatpush.msra.mxu0 0.0
        %1019 = vmatpush.msra.mxu0 0.0
        %1020 = vmatpush.msra.mxu0 0.0
        %1021 = vmatpush.msra.mxu0 0.0
        %1022 = vmatpush.msra.mxu0 0.0
        %1023 = vmatpush.msra.mxu0 %v951
        %1024 = vmatmul.f32.gmra.mxu0 %v997
        %v1025 = vpop.f32.mrf.mxu0
        %v1026 = vadd.f32 %v985, %v1025
        %1027 = vmatmul.f32.gmra.mxu0 %v1000
        %v1028 = vpop.f32.mrf.mxu0
        %v1029 = vadd.f32 %v988, %v1028
        %1030 = vmatmul.f32.gmra.mxu0 %v1003
        %v1031 = vpop.f32.mrf.mxu0
        %v1032 = vadd.f32 %v991, %v1031
        %1033 = vmatmul.f32.gmra.mxu0 %v1006
        %v1034 = vpop.f32.mrf.mxu0
        %v1035 = vadd.f32 %v994, %v1034
        %1036 = vdwg.mxu0
        %s1037 = scalar_lea.vmem [#allocation7], 16
        %v1038 = vld [vmem:[%s1037] sm:$0xff]
        %v1040 = vsel %vm954, %v784, 0
        %v1043 = vsel %vm954, %v787, 0
        %v1046 = vsel %vm954, %v790, 0
        %v1049 = vsel %vm954, %v793, 0
        %1051 = vmatpush.msra.mxu0 0.0
        %1052 = vmatpush.msra.mxu0 0.0
        %1053 = vmatpush.msra.mxu0 0.0
        %1054 = vmatpush.msra.mxu0 0.0
        %1055 = vmatpush.msra.mxu0 0.0
        %1056 = vmatpush.msra.mxu0 0.0
        %1057 = vmatpush.msra.mxu0 0.0
        %1058 = vmatpush.msra.mxu0 0.0
        %1059 = vmatpush.msra.mxu0 0.0
        %1060 = vmatpush.msra.mxu0 0.0
        %1061 = vmatpush.msra.mxu0 0.0
        %1062 = vmatpush.msra.mxu0 0.0
        %1063 = vmatpush.msra.mxu0 0.0
        %1064 = vmatpush.msra.mxu0 0.0
        %1065 = vmatpush.msra.mxu0 0.0
        %1066 = vmatpush.msra.mxu0 %v1038
        %1067 = vmatmul.f32.gmra.mxu0 %v1040
        %v1068 = vpop.f32.mrf.mxu0
        %v1069 = vadd.f32 0.0, %v1068
        %1070 = vmatmul.f32.gmra.mxu0 %v1043
        %v1071 = vpop.f32.mrf.mxu0
        %v1072 = vadd.f32 0.0, %v1071
        %1073 = vmatmul.f32.gmra.mxu0 %v1046
        %v1074 = vpop.f32.mrf.mxu0
        %v1075 = vadd.f32 0.0, %v1074
        %1076 = vmatmul.f32.gmra.mxu0 %v1049
        %v1077 = vpop.f32.mrf.mxu0
        %v1078 = vadd.f32 0.0, %v1077
        %1079 = vdwg.mxu0
        %v1080 = vadd.f32 %v1026, %v1069
        %v1081 = vadd.f32 %v1029, %v1072
        %v1082 = vadd.f32 %v1032, %v1075
        %v1083 = vadd.f32 %v1035, %v1078
        %s1084 = scalar_lea.vmem [#allocation7], 24
        %v1085 = vld [vmem:[%s1084] sm:$0xff]
        %v1087 = vsel %vm954, %v796, 0
        %v1090 = vsel %vm954, %v799, 0
        %v1093 = vsel %vm954, %v802, 0
        %v1096 = vsel %vm954, %v805, 0
        %1098 = vmatpush.msra.mxu0 0.0
        %1099 = vmatpush.msra.mxu0 0.0
        %1100 = vmatpush.msra.mxu0 0.0
        %1101 = vmatpush.msra.mxu0 0.0
        %1102 = vmatpush.msra.mxu0 0.0
        %1103 = vmatpush.msra.mxu0 0.0
        %1104 = vmatpush.msra.mxu0 0.0
        %1105 = vmatpush.msra.mxu0 0.0
        %1106 = vmatpush.msra.mxu0 0.0
        %1107 = vmatpush.msra.mxu0 0.0
        %1108 = vmatpush.msra.mxu0 0.0
        %1109 = vmatpush.msra.mxu0 0.0
        %1110 = vmatpush.msra.mxu0 0.0
        %1111 = vmatpush.msra.mxu0 0.0
        %1112 = vmatpush.msra.mxu0 0.0
        %1113 = vmatpush.msra.mxu0 %v1085
        %1114 = vmatmul.f32.gmra.mxu0 %v1087
        %v1115 = vpop.f32.mrf.mxu0
        %v1116 = vadd.f32 0.0, %v1115
        %1117 = vmatmul.f32.gmra.mxu0 %v1090
        %v1118 = vpop.f32.mrf.mxu0
        %v1119 = vadd.f32 0.0, %v1118
        %1120 = vmatmul.f32.gmra.mxu0 %v1093
        %v1121 = vpop.f32.mrf.mxu0
        %v1122 = vadd.f32 0.0, %v1121
        %1123 = vmatmul.f32.gmra.mxu0 %v1096
        %v1124 = vpop.f32.mrf.mxu0
        %v1125 = vadd.f32 0.0, %v1124
        %1126 = vdwg.mxu0
        %v1127 = vadd.f32 %v1080, %v1116
        %v1128 = vadd.f32 %v1081, %v1119
        %v1129 = vadd.f32 %v1082, %v1122
        %v1130 = vadd.f32 %v1083, %v1125
        %s1131 = scalar_lea.vmem [#allocation7], 32
        %v1132 = vld [vmem:[%s1131] sm:$0xff]
        %v1134 = vsel %vm954, %v808, 0
        %v1137 = vsel %vm954, %v811, 0
        %v1140 = vsel %vm954, %v814, 0
        %v1143 = vsel %vm954, %v817, 0
        %1145 = vmatpush.msra.mxu0 0.0
        %1146 = vmatpush.msra.mxu0 0.0
        %1147 = vmatpush.msra.mxu0 0.0
        %1148 = vmatpush.msra.mxu0 0.0
        %1149 = vmatpush.msra.mxu0 0.0
        %1150 = vmatpush.msra.mxu0 0.0
        %1151 = vmatpush.msra.mxu0 0.0
        %1152 = vmatpush.msra.mxu0 0.0
        %1153 = vmatpush.msra.mxu0 0.0
        %1154 = vmatpush.msra.mxu0 0.0
        %1155 = vmatpush.msra.mxu0 0.0
        %1156 = vmatpush.msra.mxu0 0.0
        %1157 = vmatpush.msra.mxu0 0.0
        %1158 = vmatpush.msra.mxu0 0.0
        %1159 = vmatpush.msra.mxu0 0.0
        %1160 = vmatpush.msra.mxu0 %v1132
        %1161 = vmatmul.f32.gmra.mxu0 %v1134
        %v1162 = vpop.f32.mrf.mxu0
        %v1163 = vadd.f32 0.0, %v1162
        %1164 = vmatmul.f32.gmra.mxu0 %v1137
        %v1165 = vpop.f32.mrf.mxu0
        %v1166 = vadd.f32 0.0, %v1165
        %1167 = vmatmul.f32.gmra.mxu0 %v1140
        %v1168 = vpop.f32.mrf.mxu0
        %v1169 = vadd.f32 0.0, %v1168
        %1170 = vmatmul.f32.gmra.mxu0 %v1143
        %v1171 = vpop.f32.mrf.mxu0
        %v1172 = vadd.f32 0.0, %v1171
        %1173 = vdwg.mxu0
        %v1174 = vadd.f32 %v1127, %v1163
        %v1175 = vadd.f32 %v1128, %v1166
        %v1176 = vadd.f32 %v1129, %v1169
        %v1177 = vadd.f32 %v1130, %v1172
        %s1178 = scalar_lea.vmem [#allocation7], 40
        %v1179 = vld [vmem:[%s1178] sm:$0xff]
        %v1181 = vsel %vm954, %v820, 0
        %v1184 = vsel %vm954, %v823, 0
        %v1187 = vsel %vm954, %v826, 0
        %v1190 = vsel %vm954, %v829, 0
        %1192 = vmatpush.msra.mxu0 0.0
        %1193 = vmatpush.msra.mxu0 0.0
        %1194 = vmatpush.msra.mxu0 0.0
        %1195 = vmatpush.msra.mxu0 0.0
        %1196 = vmatpush.msra.mxu0 0.0
        %1197 = vmatpush.msra.mxu0 0.0
        %1198 = vmatpush.msra.mxu0 0.0
        %1199 = vmatpush.msra.mxu0 0.0
        %1200 = vmatpush.msra.mxu0 0.0
        %1201 = vmatpush.msra.mxu0 0.0
        %1202 = vmatpush.msra.mxu0 0.0
        %1203 = vmatpush.msra.mxu0 0.0
        %1204 = vmatpush.msra.mxu0 0.0
        %1205 = vmatpush.msra.mxu0 0.0
        %1206 = vmatpush.msra.mxu0 0.0
        %1207 = vmatpush.msra.mxu0 %v1179
        %1208 = vmatmul.f32.gmra.mxu0 %v1181
        %v1209 = vpop.f32.mrf.mxu0
        %v1210 = vadd.f32 0.0, %v1209
        %1211 = vmatmul.f32.gmra.mxu0 %v1184
        %v1212 = vpop.f32.mrf.mxu0
        %v1213 = vadd.f32 0.0, %v1212
        %1214 = vmatmul.f32.gmra.mxu0 %v1187
        %v1215 = vpop.f32.mrf.mxu0
        %v1216 = vadd.f32 0.0, %v1215
        %1217 = vmatmul.f32.gmra.mxu0 %v1190
        %v1218 = vpop.f32.mrf.mxu0
        %v1219 = vadd.f32 0.0, %v1218
        %1220 = vdwg.mxu0
        %v1221 = vadd.f32 %v1174, %v1210
        %v1222 = vadd.f32 %v1175, %v1213
        %v1223 = vadd.f32 %v1176, %v1216
        %v1224 = vadd.f32 %v1177, %v1219
        %s1225 = scalar_lea.vmem [#allocation7], 48
        %v1226 = vld [vmem:[%s1225] sm:$0xff]
        %v1228 = vsel %vm954, %v832, 0
        %v1231 = vsel %vm954, %v835, 0
        %v1234 = vsel %vm954, %v838, 0
        %v1237 = vsel %vm954, %v841, 0
        %1239 = vmatpush.msra.mxu0 0.0
        %1240 = vmatpush.msra.mxu0 0.0
        %1241 = vmatpush.msra.mxu0 0.0
        %1242 = vmatpush.msra.mxu0 0.0
        %1243 = vmatpush.msra.mxu0 0.0
        %1244 = vmatpush.msra.mxu0 0.0
        %1245 = vmatpush.msra.mxu0 0.0
        %1246 = vmatpush.msra.mxu0 0.0
        %1247 = vmatpush.msra.mxu0 0.0
        %1248 = vmatpush.msra.mxu0 0.0
        %1249 = vmatpush.msra.mxu0 0.0
        %1250 = vmatpush.msra.mxu0 0.0
        %1251 = vmatpush.msra.mxu0 0.0
        %1252 = vmatpush.msra.mxu0 0.0
        %1253 = vmatpush.msra.mxu0 0.0
        %1254 = vmatpush.msra.mxu0 %v1226
        %1255 = vmatmul.f32.gmra.mxu0 %v1228
        %v1256 = vpop.f32.mrf.mxu0
        %v1257 = vadd.f32 0.0, %v1256
        %1258 = vmatmul.f32.gmra.mxu0 %v1231
        %v1259 = vpop.f32.mrf.mxu0
        %v1260 = vadd.f32 0.0, %v1259
        %1261 = vmatmul.f32.gmra.mxu0 %v1234
        %v1262 = vpop.f32.mrf.mxu0
        %v1263 = vadd.f32 0.0, %v1262
        %1264 = vmatmul.f32.gmra.mxu0 %v1237
        %v1265 = vpop.f32.mrf.mxu0
        %v1266 = vadd.f32 0.0, %v1265
        %1267 = vdwg.mxu0
        %v1268 = vadd.f32 %v1221, %v1257
        %v1269 = vadd.f32 %v1222, %v1260
        %v1270 = vadd.f32 %v1223, %v1263
        %v1271 = vadd.f32 %v1224, %v1266
        %s1272 = scalar_lea.vmem [#allocation7], 56
        %v1273 = vld [vmem:[%s1272] sm:$0xff]
        %v1275 = vsel %vm954, %v844, 0
        %v1278 = vsel %vm954, %v847, 0
        %v1281 = vsel %vm954, %v850, 0
        %v1284 = vsel %vm954, %v853, 0
        %1286 = vmatpush.msra.mxu0 0.0
        %1287 = vmatpush.msra.mxu0 0.0
        %1288 = vmatpush.msra.mxu0 0.0
        %1289 = vmatpush.msra.mxu0 0.0
        %1290 = vmatpush.msra.mxu0 0.0
        %1291 = vmatpush.msra.mxu0 0.0
        %1292 = vmatpush.msra.mxu0 0.0
        %1293 = vmatpush.msra.mxu0 0.0
        %1294 = vmatpush.msra.mxu0 0.0
        %1295 = vmatpush.msra.mxu0 0.0
        %1296 = vmatpush.msra.mxu0 0.0
        %1297 = vmatpush.msra.mxu0 0.0
        %1298 = vmatpush.msra.mxu0 0.0
        %1299 = vmatpush.msra.mxu0 0.0
        %1300 = vmatpush.msra.mxu0 0.0
        %1301 = vmatpush.msra.mxu0 %v1273
        %1302 = vmatmul.f32.gmra.mxu0 %v1275
        %v1303 = vpop.f32.mrf.mxu0
        %v1304 = vadd.f32 0.0, %v1303
        %1305 = vmatmul.f32.gmra.mxu0 %v1278
        %v1306 = vpop.f32.mrf.mxu0
        %v1307 = vadd.f32 0.0, %v1306
        %1308 = vmatmul.f32.gmra.mxu0 %v1281
        %v1309 = vpop.f32.mrf.mxu0
        %v1310 = vadd.f32 0.0, %v1309
        %1311 = vmatmul.f32.gmra.mxu0 %v1284
        %v1312 = vpop.f32.mrf.mxu0
        %v1313 = vadd.f32 0.0, %v1312
        %1314 = vdwg.mxu0
        %v1315 = vadd.f32 %v1268, %v1304
        %v1316 = vadd.f32 %v1269, %v1307
        %v1317 = vadd.f32 %v1270, %v1310
        %v1318 = vadd.f32 %v1271, %v1313
        %s1319 = scalar_lea.vmem [#allocation7], 64
        %v1320 = vld [vmem:[%s1319] sm:$0xff]
        %v1322 = vsel %vm954, %v856, 0
        %v1325 = vsel %vm954, %v859, 0
        %v1328 = vsel %vm954, %v862, 0
        %v1331 = vsel %vm954, %v865, 0
        %1333 = vmatpush.msra.mxu0 0.0
        %1334 = vmatpush.msra.mxu0 0.0
        %1335 = vmatpush.msra.mxu0 0.0
        %1336 = vmatpush.msra.mxu0 0.0
        %1337 = vmatpush.msra.mxu0 0.0
        %1338 = vmatpush.msra.mxu0 0.0
        %1339 = vmatpush.msra.mxu0 0.0
        %1340 = vmatpush.msra.mxu0 0.0
        %1341 = vmatpush.msra.mxu0 0.0
        %1342 = vmatpush.msra.mxu0 0.0
        %1343 = vmatpush.msra.mxu0 0.0
        %1344 = vmatpush.msra.mxu0 0.0
        %1345 = vmatpush.msra.mxu0 0.0
        %1346 = vmatpush.msra.mxu0 0.0
        %1347 = vmatpush.msra.mxu0 0.0
        %1348 = vmatpush.msra.mxu0 %v1320
        %1349 = vmatmul.f32.gmra.mxu0 %v1322
        %v1350 = vpop.f32.mrf.mxu0
        %v1351 = vadd.f32 0.0, %v1350
        %1352 = vmatmul.f32.gmra.mxu0 %v1325
        %v1353 = vpop.f32.mrf.mxu0
        %v1354 = vadd.f32 0.0, %v1353
        %1355 = vmatmul.f32.gmra.mxu0 %v1328
        %v1356 = vpop.f32.mrf.mxu0
        %v1357 = vadd.f32 0.0, %v1356
        %1358 = vmatmul.f32.gmra.mxu0 %v1331
        %v1359 = vpop.f32.mrf.mxu0
        %v1360 = vadd.f32 0.0, %v1359
        %1361 = vdwg.mxu0
        %v1362 = vadd.f32 %v1315, %v1351
        %v1363 = vadd.f32 %v1316, %v1354
        %v1364 = vadd.f32 %v1317, %v1357
        %v1365 = vadd.f32 %v1318, %v1360
        %s1366 = scalar_lea.vmem [#allocation7], 72
        %v1367 = vld [vmem:[%s1366] sm:$0xff]
        %v1369 = vsel %vm954, %v868, 0
        %v1372 = vsel %vm954, %v871, 0
        %v1375 = vsel %vm954, %v874, 0
        %v1378 = vsel %vm954, %v877, 0
        %1380 = vmatpush.msra.mxu0 0.0
        %1381 = vmatpush.msra.mxu0 0.0
        %1382 = vmatpush.msra.mxu0 0.0
        %1383 = vmatpush.msra.mxu0 0.0
        %1384 = vmatpush.msra.mxu0 0.0
        %1385 = vmatpush.msra.mxu0 0.0
        %1386 = vmatpush.msra.mxu0 0.0
        %1387 = vmatpush.msra.mxu0 0.0
        %1388 = vmatpush.msra.mxu0 0.0
        %1389 = vmatpush.msra.mxu0 0.0
        %1390 = vmatpush.msra.mxu0 0.0
        %1391 = vmatpush.msra.mxu0 0.0
        %1392 = vmatpush.msra.mxu0 0.0
        %1393 = vmatpush.msra.mxu0 0.0
        %1394 = vmatpush.msra.mxu0 0.0
        %1395 = vmatpush.msra.mxu0 %v1367
        %1396 = vmatmul.f32.gmra.mxu0 %v1369
        %v1397 = vpop.f32.mrf.mxu0
        %v1398 = vadd.f32 0.0, %v1397
        %1399 = vmatmul.f32.gmra.mxu0 %v1372
        %v1400 = vpop.f32.mrf.mxu0
        %v1401 = vadd.f32 0.0, %v1400
        %1402 = vmatmul.f32.gmra.mxu0 %v1375
        %v1403 = vpop.f32.mrf.mxu0
        %v1404 = vadd.f32 0.0, %v1403
        %1405 = vmatmul.f32.gmra.mxu0 %v1378
        %v1406 = vpop.f32.mrf.mxu0
        %v1407 = vadd.f32 0.0, %v1406
        %1408 = vdwg.mxu0
        %v1409 = vadd.f32 %v1362, %v1398
        %v1410 = vadd.f32 %v1363, %v1401
        %v1411 = vadd.f32 %v1364, %v1404
        %v1412 = vadd.f32 %v1365, %v1407
        %s1413 = scalar_lea.vmem [#allocation7], 80
        %v1414 = vld [vmem:[%s1413] sm:$0xff]
        %v1416 = vsel %vm954, %v880, 0
        %v1419 = vsel %vm954, %v883, 0
        %v1422 = vsel %vm954, %v886, 0
        %v1425 = vsel %vm954, %v889, 0
        %1427 = vmatpush.msra.mxu0 0.0
        %1428 = vmatpush.msra.mxu0 0.0
        %1429 = vmatpush.msra.mxu0 0.0
        %1430 = vmatpush.msra.mxu0 0.0
        %1431 = vmatpush.msra.mxu0 0.0
        %1432 = vmatpush.msra.mxu0 0.0
        %1433 = vmatpush.msra.mxu0 0.0
        %1434 = vmatpush.msra.mxu0 0.0
        %1435 = vmatpush.msra.mxu0 0.0
        %1436 = vmatpush.msra.mxu0 0.0
        %1437 = vmatpush.msra.mxu0 0.0
        %1438 = vmatpush.msra.mxu0 0.0
        %1439 = vmatpush.msra.mxu0 0.0
        %1440 = vmatpush.msra.mxu0 0.0
        %1441 = vmatpush.msra.mxu0 0.0
        %1442 = vmatpush.msra.mxu0 %v1414
        %1443 = vmatmul.f32.gmra.mxu0 %v1416
        %v1444 = vpop.f32.mrf.mxu0
        %v1445 = vadd.f32 0.0, %v1444
        %1446 = vmatmul.f32.gmra.mxu0 %v1419
        %v1447 = vpop.f32.mrf.mxu0
        %v1448 = vadd.f32 0.0, %v1447
        %1449 = vmatmul.f32.gmra.mxu0 %v1422
        %v1450 = vpop.f32.mrf.mxu0
        %v1451 = vadd.f32 0.0, %v1450
        %1452 = vmatmul.f32.gmra.mxu0 %v1425
        %v1453 = vpop.f32.mrf.mxu0
        %v1454 = vadd.f32 0.0, %v1453
        %1455 = vdwg.mxu0
        %v1456 = vadd.f32 %v1409, %v1445
        %v1457 = vadd.f32 %v1410, %v1448
        %v1458 = vadd.f32 %v1411, %v1451
        %v1459 = vadd.f32 %v1412, %v1454
        %s1460 = scalar_lea.vmem [#allocation7], 88
        %v1461 = vld [vmem:[%s1460] sm:$0xff]
        %v1463 = vsel %vm954, %v892, 0
        %v1466 = vsel %vm954, %v895, 0
        %v1469 = vsel %vm954, %v898, 0
        %v1472 = vsel %vm954, %v901, 0
        %1474 = vmatpush.msra.mxu0 0.0
        %1475 = vmatpush.msra.mxu0 0.0
        %1476 = vmatpush.msra.mxu0 0.0
        %1477 = vmatpush.msra.mxu0 0.0
        %1478 = vmatpush.msra.mxu0 0.0
        %1479 = vmatpush.msra.mxu0 0.0
        %1480 = vmatpush.msra.mxu0 0.0
        %1481 = vmatpush.msra.mxu0 0.0
        %1482 = vmatpush.msra.mxu0 0.0
        %1483 = vmatpush.msra.mxu0 0.0
        %1484 = vmatpush.msra.mxu0 0.0
        %1485 = vmatpush.msra.mxu0 0.0
        %1486 = vmatpush.msra.mxu0 0.0
        %1487 = vmatpush.msra.mxu0 0.0
        %1488 = vmatpush.msra.mxu0 0.0
        %1489 = vmatpush.msra.mxu0 %v1461
        %1490 = vmatmul.f32.gmra.mxu0 %v1463
        %v1491 = vpop.f32.mrf.mxu0
        %v1492 = vadd.f32 0.0, %v1491
        %1493 = vmatmul.f32.gmra.mxu0 %v1466
        %v1494 = vpop.f32.mrf.mxu0
        %v1495 = vadd.f32 0.0, %v1494
        %1496 = vmatmul.f32.gmra.mxu0 %v1469
        %v1497 = vpop.f32.mrf.mxu0
        %v1498 = vadd.f32 0.0, %v1497
        %1499 = vmatmul.f32.gmra.mxu0 %v1472
        %v1500 = vpop.f32.mrf.mxu0
        %v1501 = vadd.f32 0.0, %v1500
        %1502 = vdwg.mxu0
        %v1503 = vadd.f32 %v1456, %v1492
        %v1504 = vadd.f32 %v1457, %v1495
        %v1505 = vadd.f32 %v1458, %v1498
        %v1506 = vadd.f32 %v1459, %v1501
        %s1507 = scalar_lea.vmem [#allocation7], 96
        %v1508 = vld [vmem:[%s1507] sm:$0xff]
        %v1510 = vsel %vm954, %v904, 0
        %v1513 = vsel %vm954, %v907, 0
        %v1516 = vsel %vm954, %v910, 0
        %v1519 = vsel %vm954, %v913, 0
        %1521 = vmatpush.msra.mxu0 0.0
        %1522 = vmatpush.msra.mxu0 0.0
        %1523 = vmatpush.msra.mxu0 0.0
        %1524 = vmatpush.msra.mxu0 0.0
        %1525 = vmatpush.msra.mxu0 0.0
        %1526 = vmatpush.msra.mxu0 0.0
        %1527 = vmatpush.msra.mxu0 0.0
        %1528 = vmatpush.msra.mxu0 0.0
        %1529 = vmatpush.msra.mxu0 0.0
        %1530 = vmatpush.msra.mxu0 0.0
        %1531 = vmatpush.msra.mxu0 0.0
        %1532 = vmatpush.msra.mxu0 0.0
        %1533 = vmatpush.msra.mxu0 0.0
        %1534 = vmatpush.msra.mxu0 0.0
        %1535 = vmatpush.msra.mxu0 0.0
        %1536 = vmatpush.msra.mxu0 %v1508
        %1537 = vmatmul.f32.gmra.mxu0 %v1510
        %v1538 = vpop.f32.mrf.mxu0
        %v1539 = vadd.f32 0.0, %v1538
        %1540 = vmatmul.f32.gmra.mxu0 %v1513
        %v1541 = vpop.f32.mrf.mxu0
        %v1542 = vadd.f32 0.0, %v1541
        %1543 = vmatmul.f32.gmra.mxu0 %v1516
        %v1544 = vpop.f32.mrf.mxu0
        %v1545 = vadd.f32 0.0, %v1544
        %1546 = vmatmul.f32.gmra.mxu0 %v1519
        %v1547 = vpop.f32.mrf.mxu0
        %v1548 = vadd.f32 0.0, %v1547
        %1549 = vdwg.mxu0
        %v1550 = vadd.f32 %v1503, %v1539
        %v1551 = vadd.f32 %v1504, %v1542
        %v1552 = vadd.f32 %v1505, %v1545
        %v1553 = vadd.f32 %v1506, %v1548
        %s1554 = scalar_lea.vmem [#allocation7], 104
        %v1555 = vld [vmem:[%s1554] sm:$0xff]
        %v1557 = vsel %vm954, %v916, 0
        %v1560 = vsel %vm954, %v919, 0
        %v1563 = vsel %vm954, %v922, 0
        %v1566 = vsel %vm954, %v925, 0
        %1568 = vmatpush.msra.mxu0 0.0
        %1569 = vmatpush.msra.mxu0 0.0
        %1570 = vmatpush.msra.mxu0 0.0
        %1571 = vmatpush.msra.mxu0 0.0
        %1572 = vmatpush.msra.mxu0 0.0
        %1573 = vmatpush.msra.mxu0 0.0
        %1574 = vmatpush.msra.mxu0 0.0
        %1575 = vmatpush.msra.mxu0 0.0
        %1576 = vmatpush.msra.mxu0 0.0
        %1577 = vmatpush.msra.mxu0 0.0
        %1578 = vmatpush.msra.mxu0 0.0
        %1579 = vmatpush.msra.mxu0 0.0
        %1580 = vmatpush.msra.mxu0 0.0
        %1581 = vmatpush.msra.mxu0 0.0
        %1582 = vmatpush.msra.mxu0 0.0
        %1583 = vmatpush.msra.mxu0 %v1555
        %1584 = vmatmul.f32.gmra.mxu0 %v1557
        %v1585 = vpop.f32.mrf.mxu0
        %v1586 = vadd.f32 0.0, %v1585
        %1587 = vmatmul.f32.gmra.mxu0 %v1560
        %v1588 = vpop.f32.mrf.mxu0
        %v1589 = vadd.f32 0.0, %v1588
        %1590 = vmatmul.f32.gmra.mxu0 %v1563
        %v1591 = vpop.f32.mrf.mxu0
        %v1592 = vadd.f32 0.0, %v1591
        %1593 = vmatmul.f32.gmra.mxu0 %v1566
        %v1594 = vpop.f32.mrf.mxu0
        %v1595 = vadd.f32 0.0, %v1594
        %1596 = vdwg.mxu0
        %v1597 = vadd.f32 %v1550, %v1586
        %v1598 = vadd.f32 %v1551, %v1589
        %v1599 = vadd.f32 %v1552, %v1592
        %v1600 = vadd.f32 %v1553, %v1595
        %s1601 = scalar_lea.vmem [#allocation7], 112
        %v1602 = vld [vmem:[%s1601] sm:$0xff]
        %v1604 = vsel %vm954, %v928, 0
        %v1607 = vsel %vm954, %v931, 0
        %v1610 = vsel %vm954, %v934, 0
        %v1613 = vsel %vm954, %v937, 0
        %1615 = vmatpush.msra.mxu0 0.0
        %1616 = vmatpush.msra.mxu0 0.0
        %1617 = vmatpush.msra.mxu0 0.0
        %1618 = vmatpush.msra.mxu0 0.0
        %1619 = vmatpush.msra.mxu0 0.0
        %1620 = vmatpush.msra.mxu0 0.0
        %1621 = vmatpush.msra.mxu0 0.0
        %1622 = vmatpush.msra.mxu0 0.0
        %1623 = vmatpush.msra.mxu0 0.0
        %1624 = vmatpush.msra.mxu0 0.0
        %1625 = vmatpush.msra.mxu0 0.0
        %1626 = vmatpush.msra.mxu0 0.0
        %1627 = vmatpush.msra.mxu0 0.0
        %1628 = vmatpush.msra.mxu0 0.0
        %1629 = vmatpush.msra.mxu0 0.0
        %1630 = vmatpush.msra.mxu0 %v1602
        %1631 = vmatmul.f32.gmra.mxu0 %v1604
        %v1632 = vpop.f32.mrf.mxu0
        %v1633 = vadd.f32 0.0, %v1632
        %1634 = vmatmul.f32.gmra.mxu0 %v1607
        %v1635 = vpop.f32.mrf.mxu0
        %v1636 = vadd.f32 0.0, %v1635
        %1637 = vmatmul.f32.gmra.mxu0 %v1610
        %v1638 = vpop.f32.mrf.mxu0
        %v1639 = vadd.f32 0.0, %v1638
        %1640 = vmatmul.f32.gmra.mxu0 %v1613
        %v1641 = vpop.f32.mrf.mxu0
        %v1642 = vadd.f32 0.0, %v1641
        %1643 = vdwg.mxu0
        %v1644 = vadd.f32 %v1597, %v1633
        %v1645 = vadd.f32 %v1598, %v1636
        %v1646 = vadd.f32 %v1599, %v1639
        %v1647 = vadd.f32 %v1600, %v1642
        %s1648 = scalar_lea.vmem [#allocation7], 120
        %v1649 = vld [vmem:[%s1648] sm:$0xff]
        %v1651 = vsel %vm954, %v940, 0
        %v1654 = vsel %vm954, %v943, 0
        %v1657 = vsel %vm954, %v946, 0
        %v1660 = vsel %vm954, %v949, 0
        %1662 = vmatpush.msra.mxu0 0.0
        %1663 = vmatpush.msra.mxu0 0.0
        %1664 = vmatpush.msra.mxu0 0.0
        %1665 = vmatpush.msra.mxu0 0.0
        %1666 = vmatpush.msra.mxu0 0.0
        %1667 = vmatpush.msra.mxu0 0.0
        %1668 = vmatpush.msra.mxu0 0.0
        %1669 = vmatpush.msra.mxu0 0.0
        %1670 = vmatpush.msra.mxu0 0.0
        %1671 = vmatpush.msra.mxu0 0.0
        %1672 = vmatpush.msra.mxu0 0.0
        %1673 = vmatpush.msra.mxu0 0.0
        %1674 = vmatpush.msra.mxu0 0.0
        %1675 = vmatpush.msra.mxu0 0.0
        %1676 = vmatpush.msra.mxu0 0.0
        %1677 = vmatpush.msra.mxu0 %v1649
        %1678 = vmatmul.f32.gmra.mxu0 %v1651
        %v1679 = vpop.f32.mrf.mxu0
        %v1680 = vadd.f32 0.0, %v1679
        %1681 = vmatmul.f32.gmra.mxu0 %v1654
        %v1682 = vpop.f32.mrf.mxu0
        %v1683 = vadd.f32 0.0, %v1682
        %1684 = vmatmul.f32.gmra.mxu0 %v1657
        %v1685 = vpop.f32.mrf.mxu0
        %v1686 = vadd.f32 0.0, %v1685
        %1687 = vmatmul.f32.gmra.mxu0 %v1660
        %v1688 = vpop.f32.mrf.mxu0
        %v1689 = vadd.f32 0.0, %v1688
        %1690 = vdwg.mxu0
        %v1691 = vadd.f32 %v1644, %v1680
        %v1692 = vadd.f32 %v1645, %v1683
        %v1693 = vadd.f32 %v1646, %v1686
        %v1694 = vadd.f32 %v1647, %v1689
        %s1695 = sld [smem:[#allocation2]]
        %v1696 = vstv %s1695
        %v1697 = vmul.f32 %v1696, %v1691
        %v1698 = vmul.f32 %v1696, %v1692
        %v1699 = vmul.f32 %v1696, %v1693
        %v1700 = vmul.f32 %v1696, %v1694
        %s1701 = sld [smem:[#allocation5]]
        %v1702 = vstv %s1701
        %v1703 = vadd.f32 %v1697, %v1702
        %v1704 = vadd.f32 %v1698, %v1702
        %v1705 = vadd.f32 %v1699, %v1702
        %v1706 = vadd.f32 %v1700, %v1702
        %v1707 = vmax.f32 %v1703, 0.0
        %v1708 = vmax.f32 %v1704, 0.0
        %v1709 = vmax.f32 %v1705, 0.0
        %v1710 = vmax.f32 %v1706, 0.0
        %v1711 = vld [vmem:[%s5] sm:$0xff]
        %v1712 = vld [vmem:[%s5 + $0x8] sm:$0xff]
        %v1713 = vld [vmem:[%s5 + $0x10] sm:$0xff]
        %v1714 = vld [vmem:[%s5 + $0x18] sm:$0xff]
        %v1715 = vld [vmem:[%s5 + $0x20] sm:$0xff]
        %v1716 = vld [vmem:[%s5 + $0x28] sm:$0xff]
        %v1717 = vld [vmem:[%s5 + $0x30] sm:$0xff]
        %v1718 = vld [vmem:[%s5 + $0x38] sm:$0xff]
        %v1719 = vld [vmem:[%s5 + $0x40] sm:$0xff]
        %v1720 = vld [vmem:[%s5 + $0x48] sm:$0xff]
        %v1721 = vld [vmem:[%s5 + $0x50] sm:$0xff]
        %v1722 = vld [vmem:[%s5 + $0x58] sm:$0xff]
        %v1723 = vld [vmem:[%s5 + $0x60] sm:$0xff]
        %v1724 = vld [vmem:[%s5 + $0x68] sm:$0xff]
        %v1725 = vld [vmem:[%s5 + $0x70] sm:$0xff]
        %v1726 = vld [vmem:[%s5 + $0x78] sm:$0xff]
        %v1727 = vld [vmem:[%s5 + $0x80] sm:$0xff]
        %v1728 = vld [vmem:[%s5 + $0x88] sm:$0xff]
        %v1729 = vld [vmem:[%s5 + $0x90] sm:$0xff]
        %v1730 = vld [vmem:[%s5 + $0x98] sm:$0xff]
        %v1731 = vld [vmem:[%s5 + $0xa0] sm:$0xff]
        %v1732 = vld [vmem:[%s5 + $0xa8] sm:$0xff]
        %v1733 = vld [vmem:[%s5 + $0xb0] sm:$0xff]
        %v1734 = vld [vmem:[%s5 + $0xb8] sm:$0xff]
        %v1735 = vld [vmem:[%s5 + $0xc0] sm:$0xff]
        %v1736 = vld [vmem:[%s5 + $0xc8] sm:$0xff]
        %v1737 = vld [vmem:[%s5 + $0xd0] sm:$0xff]
        %v1738 = vld [vmem:[%s5 + $0xd8] sm:$0xff]
        %v1739 = vld [vmem:[%s5 + $0xe0] sm:$0xff]
        %v1740 = vld [vmem:[%s5 + $0xe8] sm:$0xff]
        %v1741 = vld [vmem:[%s5 + $0xf0] sm:$0xff]
        %v1742 = vld [vmem:[%s5 + $0xf8] sm:$0xff]
        %v1744 = vsel %vm549, %v1711, 0
        %v1747 = vsel %vm549, %v1712, 0
        %v1750 = vsel %vm549, %v1713, 0
        %v1753 = vsel %vm549, %v1714, 0
        %v1756 = vsel %vm549, %v1715, 0
        %v1759 = vsel %vm549, %v1716, 0
        %v1762 = vsel %vm549, %v1717, 0
        %v1765 = vsel %vm549, %v1718, 0
        %v1768 = vsel %vm549, %v1719, 0
        %v1771 = vsel %vm549, %v1720, 0
        %v1774 = vsel %vm549, %v1721, 0
        %v1777 = vsel %vm549, %v1722, 0
        %v1780 = vsel %vm549, %v1723, 0
        %v1783 = vsel %vm549, %v1724, 0
        %v1786 = vsel %vm549, %v1725, 0
        %v1789 = vsel %vm549, %v1726, 0
        %v1792 = vsel %vm549, %v1727, 0
        %v1795 = vsel %vm549, %v1728, 0
        %v1798 = vsel %vm549, %v1729, 0
        %v1801 = vsel %vm549, %v1730, 0
        %v1804 = vsel %vm549, %v1731, 0
        %v1807 = vsel %vm549, %v1732, 0
        %v1810 = vsel %vm549, %v1733, 0
        %v1813 = vsel %vm549, %v1734, 0
        %v1816 = vsel %vm549, %v1735, 0
        %v1819 = vsel %vm549, %v1736, 0
        %v1822 = vsel %vm549, %v1737, 0
        %v1825 = vsel %vm549, %v1738, 0
        %v1828 = vsel %vm549, %v1739, 0
        %v1831 = vsel %vm549, %v1740, 0
        %v1834 = vsel %vm549, %v1741, 0
        %v1837 = vsel %vm549, %v1742, 0
        %1839 = vmatpush.msra.mxu0 0.0
        %1840 = vmatpush.msra.mxu0 0.0
        %1841 = vmatpush.msra.mxu0 0.0
        %1842 = vmatpush.msra.mxu0 0.0
        %1843 = vmatpush.msra.mxu0 0.0
        %1844 = vmatpush.msra.mxu0 0.0
        %1845 = vmatpush.msra.mxu0 0.0
        %1846 = vmatpush.msra.mxu0 0.0
        %1847 = vmatpush.msra.mxu0 0.0
        %1848 = vmatpush.msra.mxu0 0.0
        %1849 = vmatpush.msra.mxu0 0.0
        %1850 = vmatpush.msra.mxu0 0.0
        %1851 = vmatpush.msra.mxu0 %v1710
        %1852 = vmatpush.msra.mxu0 %v1709
        %1853 = vmatpush.msra.mxu0 %v1708
        %1854 = vmatpush.msra.mxu0 %v1707
        %1855 = vmatmul.f32.gmra.mxu0 %v1744
        %v1856 = vpop.f32.mrf.mxu0
        %v1857 = vadd.f32 0.0, %v1856
        %1858 = vmatmul.f32.gmra.mxu0 %v1747
        %v1859 = vpop.f32.mrf.mxu0
        %v1860 = vadd.f32 0.0, %v1859
        %1861 = vmatmul.f32.gmra.mxu0 %v1750
        %v1862 = vpop.f32.mrf.mxu0
        %v1863 = vadd.f32 0.0, %v1862
        %1864 = vmatmul.f32.gmra.mxu0 %v1753
        %v1865 = vpop.f32.mrf.mxu0
        %v1866 = vadd.f32 0.0, %v1865
        %1867 = vmatmul.f32.gmra.mxu0 %v1756
        %v1868 = vpop.f32.mrf.mxu0
        %v1869 = vadd.f32 0.0, %v1868
        %1870 = vmatmul.f32.gmra.mxu0 %v1759
        %v1871 = vpop.f32.mrf.mxu0
        %v1872 = vadd.f32 0.0, %v1871
        %1873 = vmatmul.f32.gmra.mxu0 %v1762
        %v1874 = vpop.f32.mrf.mxu0
        %v1875 = vadd.f32 0.0, %v1874
        %1876 = vmatmul.f32.gmra.mxu0 %v1765
        %v1877 = vpop.f32.mrf.mxu0
        %v1878 = vadd.f32 0.0, %v1877
        %1879 = vmatmul.f32.gmra.mxu0 %v1768
        %v1880 = vpop.f32.mrf.mxu0
        %v1881 = vadd.f32 0.0, %v1880
        %1882 = vmatmul.f32.gmra.mxu0 %v1771
        %v1883 = vpop.f32.mrf.mxu0
        %v1884 = vadd.f32 0.0, %v1883
        %1885 = vmatmul.f32.gmra.mxu0 %v1774
        %v1886 = vpop.f32.mrf.mxu0
        %v1887 = vadd.f32 0.0, %v1886
        %1888 = vmatmul.f32.gmra.mxu0 %v1777
        %v1889 = vpop.f32.mrf.mxu0
        %v1890 = vadd.f32 0.0, %v1889
        %1891 = vmatmul.f32.gmra.mxu0 %v1780
        %v1892 = vpop.f32.mrf.mxu0
        %v1893 = vadd.f32 0.0, %v1892
        %1894 = vmatmul.f32.gmra.mxu0 %v1783
        %v1895 = vpop.f32.mrf.mxu0
        %v1896 = vadd.f32 0.0, %v1895
        %1897 = vmatmul.f32.gmra.mxu0 %v1786
        %v1898 = vpop.f32.mrf.mxu0
        %v1899 = vadd.f32 0.0, %v1898
        %1900 = vmatmul.f32.gmra.mxu0 %v1789
        %v1901 = vpop.f32.mrf.mxu0
        %v1902 = vadd.f32 0.0, %v1901
        %1903 = vmatmul.f32.gmra.mxu0 %v1792
        %v1904 = vpop.f32.mrf.mxu0
        %v1905 = vadd.f32 0.0, %v1904
        %1906 = vmatmul.f32.gmra.mxu0 %v1795
        %v1907 = vpop.f32.mrf.mxu0
        %v1908 = vadd.f32 0.0, %v1907
        %1909 = vmatmul.f32.gmra.mxu0 %v1798
        %v1910 = vpop.f32.mrf.mxu0
        %v1911 = vadd.f32 0.0, %v1910
        %1912 = vmatmul.f32.gmra.mxu0 %v1801
        %v1913 = vpop.f32.mrf.mxu0
        %v1914 = vadd.f32 0.0, %v1913
        %1915 = vmatmul.f32.gmra.mxu0 %v1804
        %v1916 = vpop.f32.mrf.mxu0
        %v1917 = vadd.f32 0.0, %v1916
        %1918 = vmatmul.f32.gmra.mxu0 %v1807
        %v1919 = vpop.f32.mrf.mxu0
        %v1920 = vadd.f32 0.0, %v1919
        %1921 = vmatmul.f32.gmra.mxu0 %v1810
        %v1922 = vpop.f32.mrf.mxu0
        %v1923 = vadd.f32 0.0, %v1922
        %1924 = vmatmul.f32.gmra.mxu0 %v1813
        %v1925 = vpop.f32.mrf.mxu0
        %v1926 = vadd.f32 0.0, %v1925
        %1927 = vmatmul.f32.gmra.mxu0 %v1816
        %v1928 = vpop.f32.mrf.mxu0
        %v1929 = vadd.f32 0.0, %v1928
        %1930 = vmatmul.f32.gmra.mxu0 %v1819
        %v1931 = vpop.f32.mrf.mxu0
        %v1932 = vadd.f32 0.0, %v1931
        %1933 = vmatmul.f32.gmra.mxu0 %v1822
        %v1934 = vpop.f32.mrf.mxu0
        %v1935 = vadd.f32 0.0, %v1934
        %1936 = vmatmul.f32.gmra.mxu0 %v1825
        %v1937 = vpop.f32.mrf.mxu0
        %v1938 = vadd.f32 0.0, %v1937
        %1939 = vmatmul.f32.gmra.mxu0 %v1828
        %v1940 = vpop.f32.mrf.mxu0
        %v1941 = vadd.f32 0.0, %v1940
        %1942 = vmatmul.f32.gmra.mxu0 %v1831
        %v1943 = vpop.f32.mrf.mxu0
        %v1944 = vadd.f32 0.0, %v1943
        %1945 = vmatmul.f32.gmra.mxu0 %v1834
        %v1946 = vpop.f32.mrf.mxu0
        %v1947 = vadd.f32 0.0, %v1946
        %1948 = vmatmul.f32.gmra.mxu0 %v1837
        %v1949 = vpop.f32.mrf.mxu0
        %v1950 = vadd.f32 0.0, %v1949
        %1951 = vdwg.mxu0
        %v1952 = vld [vmem:[#allocation8] sm:$0xff]
        %v1953 = vld [vmem:[#allocation8 + $0x8] sm:$0xff]
        %s1954 = scalar_lea.vmem [#allocation8], 16
        %v1955 = vld [vmem:[%s1954] sm:$0xff]
        %v1956 = vld [vmem:[%s1954 + $0x8] sm:$0xff]
        %vm1957 = vcmask 130048
        %v1959 = vsel %vm1957, %v1863, 0
        %v1962 = vsel %vm1957, %v1866, 0
        %1964 = vmatpush.msra.mxu0 0.0
        %1965 = vmatpush.msra.mxu0 0.0
        %1966 = vmatpush.msra.mxu0 0.0
        %1967 = vmatpush.msra.mxu0 0.0
        %1968 = vmatpush.msra.mxu0 0.0
        %1969 = vmatpush.msra.mxu0 0.0
        %1970 = vmatpush.msra.mxu0 0.0
        %1971 = vmatpush.msra.mxu0 0.0
        %1972 = vmatpush.msra.mxu0 0.0
        %1973 = vmatpush.msra.mxu0 0.0
        %1974 = vmatpush.msra.mxu0 0.0
        %1975 = vmatpush.msra.mxu0 0.0
        %1976 = vmatpush.msra.mxu0 0.0
        %1977 = vmatpush.msra.mxu0 0.0
        %1978 = vmatpush.msra.mxu0 %v1956
        %1979 = vmatpush.msra.mxu0 %v1955
        %1980 = vmatmul.f32.gmra.mxu0 %v1959
        %v1981 = vpop.f32.mrf.mxu0
        %v1982 = vadd.f32 0.0, %v1981
        %1983 = vmatmul.f32.gmra.mxu0 %v1962
        %v1984 = vpop.f32.mrf.mxu0
        %v1985 = vadd.f32 0.0, %v1984
        %1986 = vdwg.mxu0
        %v1988 = vsel %vm1957, %v1857, 0
        %v1991 = vsel %vm1957, %v1860, 0
        %1993 = vmatpush.msra.mxu0 0.0
        %1994 = vmatpush.msra.mxu0 0.0
        %1995 = vmatpush.msra.mxu0 0.0
        %1996 = vmatpush.msra.mxu0 0.0
        %1997 = vmatpush.msra.mxu0 0.0
        %1998 = vmatpush.msra.mxu0 0.0
        %1999 = vmatpush.msra.mxu0 0.0
        %2000 = vmatpush.msra.mxu0 0.0
        %2001 = vmatpush.msra.mxu0 0.0
        %2002 = vmatpush.msra.mxu0 0.0
        %2003 = vmatpush.msra.mxu0 0.0
        %2004 = vmatpush.msra.mxu0 0.0
        %2005 = vmatpush.msra.mxu0 0.0
        %2006 = vmatpush.msra.mxu0 0.0
        %2007 = vmatpush.msra.mxu0 %v1953
        %2008 = vmatpush.msra.mxu0 %v1952
        %2009 = vmatmul.f32.gmra.mxu0 %v1988
        %v2010 = vpop.f32.mrf.mxu0
        %v2011 = vadd.f32 %v1982, %v2010
        %2012 = vmatmul.f32.gmra.mxu0 %v1991
        %v2013 = vpop.f32.mrf.mxu0
        %v2014 = vadd.f32 %v1985, %v2013
        %2015 = vdwg.mxu0
        %s2016 = scalar_lea.vmem [#allocation8], 32
        %v2017 = vld [vmem:[%s2016] sm:$0xff]
        %v2018 = vld [vmem:[%s2016 + $0x8] sm:$0xff]
        %v2020 = vsel %vm1957, %v1869, 0
        %v2023 = vsel %vm1957, %v1872, 0
        %2025 = vmatpush.msra.mxu0 0.0
        %2026 = vmatpush.msra.mxu0 0.0
        %2027 = vmatpush.msra.mxu0 0.0
        %2028 = vmatpush.msra.mxu0 0.0
        %2029 = vmatpush.msra.mxu0 0.0
        %2030 = vmatpush.msra.mxu0 0.0
        %2031 = vmatpush.msra.mxu0 0.0
        %2032 = vmatpush.msra.mxu0 0.0
        %2033 = vmatpush.msra.mxu0 0.0
        %2034 = vmatpush.msra.mxu0 0.0
        %2035 = vmatpush.msra.mxu0 0.0
        %2036 = vmatpush.msra.mxu0 0.0
        %2037 = vmatpush.msra.mxu0 0.0
        %2038 = vmatpush.msra.mxu0 0.0
        %2039 = vmatpush.msra.mxu0 %v2018
        %2040 = vmatpush.msra.mxu0 %v2017
        %2041 = vmatmul.f32.gmra.mxu0 %v2020
        %v2042 = vpop.f32.mrf.mxu0
        %v2043 = vadd.f32 0.0, %v2042
        %2044 = vmatmul.f32.gmra.mxu0 %v2023
        %v2045 = vpop.f32.mrf.mxu0
        %v2046 = vadd.f32 0.0, %v2045
        %2047 = vdwg.mxu0
        %v2048 = vadd.f32 %v2011, %v2043
        %v2049 = vadd.f32 %v2014, %v2046
        %s2050 = scalar_lea.vmem [#allocation8], 48
        %v2051 = vld [vmem:[%s2050] sm:$0xff]
        %v2052 = vld [vmem:[%s2050 + $0x8] sm:$0xff]
        %v2054 = vsel %vm1957, %v1875, 0
        %v2057 = vsel %vm1957, %v1878, 0
        %2059 = vmatpush.msra.mxu0 0.0
        %2060 = vmatpush.msra.mxu0 0.0
        %2061 = vmatpush.msra.mxu0 0.0
        %2062 = vmatpush.msra.mxu0 0.0
        %2063 = vmatpush.msra.mxu0 0.0
        %2064 = vmatpush.msra.mxu0 0.0
        %2065 = vmatpush.msra.mxu0 0.0
        %2066 = vmatpush.msra.mxu0 0.0
        %2067 = vmatpush.msra.mxu0 0.0
        %2068 = vmatpush.msra.mxu0 0.0
        %2069 = vmatpush.msra.mxu0 0.0
        %2070 = vmatpush.msra.mxu0 0.0
        %2071 = vmatpush.msra.mxu0 0.0
        %2072 = vmatpush.msra.mxu0 0.0
        %2073 = vmatpush.msra.mxu0 %v2052
        %2074 = vmatpush.msra.mxu0 %v2051
        %2075 = vmatmul.f32.gmra.mxu0 %v2054
        %v2076 = vpop.f32.mrf.mxu0
        %v2077 = vadd.f32 0.0, %v2076
        %2078 = vmatmul.f32.gmra.mxu0 %v2057
        %v2079 = vpop.f32.mrf.mxu0
        %v2080 = vadd.f32 0.0, %v2079
        %2081 = vdwg.mxu0
        %v2082 = vadd.f32 %v2048, %v2077
        %v2083 = vadd.f32 %v2049, %v2080
        %s2084 = scalar_lea.vmem [#allocation8], 64
        %v2085 = vld [vmem:[%s2084] sm:$0xff]
        %v2086 = vld [vmem:[%s2084 + $0x8] sm:$0xff]
        %v2088 = vsel %vm1957, %v1881, 0
        %v2091 = vsel %vm1957, %v1884, 0
        %2093 = vmatpush.msra.mxu0 0.0
        %2094 = vmatpush.msra.mxu0 0.0
        %2095 = vmatpush.msra.mxu0 0.0
        %2096 = vmatpush.msra.mxu0 0.0
        %2097 = vmatpush.msra.mxu0 0.0
        %2098 = vmatpush.msra.mxu0 0.0
        %2099 = vmatpush.msra.mxu0 0.0
        %2100 = vmatpush.msra.mxu0 0.0
        %2101 = vmatpush.msra.mxu0 0.0
        %2102 = vmatpush.msra.mxu0 0.0
        %2103 = vmatpush.msra.mxu0 0.0
        %2104 = vmatpush.msra.mxu0 0.0
        %2105 = vmatpush.msra.mxu0 0.0
        %2106 = vmatpush.msra.mxu0 0.0
        %2107 = vmatpush.msra.mxu0 %v2086
        %2108 = vmatpush.msra.mxu0 %v2085
        %2109 = vmatmul.f32.gmra.mxu0 %v2088
        %v2110 = vpop.f32.mrf.mxu0
        %v2111 = vadd.f32 0.0, %v2110
        %2112 = vmatmul.f32.gmra.mxu0 %v2091
        %v2113 = vpop.f32.mrf.mxu0
        %v2114 = vadd.f32 0.0, %v2113
        %2115 = vdwg.mxu0
        %v2116 = vadd.f32 %v2082, %v2111
        %v2117 = vadd.f32 %v2083, %v2114
        %s2118 = scalar_lea.vmem [#allocation8], 80
        %v2119 = vld [vmem:[%s2118] sm:$0xff]
        %v2120 = vld [vmem:[%s2118 + $0x8] sm:$0xff]
        %v2122 = vsel %vm1957, %v1887, 0
        %v2125 = vsel %vm1957, %v1890, 0
        %2127 = vmatpush.msra.mxu0 0.0
        %2128 = vmatpush.msra.mxu0 0.0
        %2129 = vmatpush.msra.mxu0 0.0
        %2130 = vmatpush.msra.mxu0 0.0
        %2131 = vmatpush.msra.mxu0 0.0
        %2132 = vmatpush.msra.mxu0 0.0
        %2133 = vmatpush.msra.mxu0 0.0
        %2134 = vmatpush.msra.mxu0 0.0
        %2135 = vmatpush.msra.mxu0 0.0
        %2136 = vmatpush.msra.mxu0 0.0
        %2137 = vmatpush.msra.mxu0 0.0
        %2138 = vmatpush.msra.mxu0 0.0
        %2139 = vmatpush.msra.mxu0 0.0
        %2140 = vmatpush.msra.mxu0 0.0
        %2141 = vmatpush.msra.mxu0 %v2120
        %2142 = vmatpush.msra.mxu0 %v2119
        %2143 = vmatmul.f32.gmra.mxu0 %v2122
        %v2144 = vpop.f32.mrf.mxu0
        %v2145 = vadd.f32 0.0, %v2144
        %2146 = vmatmul.f32.gmra.mxu0 %v2125
        %v2147 = vpop.f32.mrf.mxu0
        %v2148 = vadd.f32 0.0, %v2147
        %2149 = vdwg.mxu0
        %v2150 = vadd.f32 %v2116, %v2145
        %v2151 = vadd.f32 %v2117, %v2148
        %s2152 = scalar_lea.vmem [#allocation8], 96
        %v2153 = vld [vmem:[%s2152] sm:$0xff]
        %v2154 = vld [vmem:[%s2152 + $0x8] sm:$0xff]
        %v2156 = vsel %vm1957, %v1893, 0
        %v2159 = vsel %vm1957, %v1896, 0
        %2161 = vmatpush.msra.mxu0 0.0
        %2162 = vmatpush.msra.mxu0 0.0
        %2163 = vmatpush.msra.mxu0 0.0
        %2164 = vmatpush.msra.mxu0 0.0
        %2165 = vmatpush.msra.mxu0 0.0
        %2166 = vmatpush.msra.mxu0 0.0
        %2167 = vmatpush.msra.mxu0 0.0
        %2168 = vmatpush.msra.mxu0 0.0
        %2169 = vmatpush.msra.mxu0 0.0
        %2170 = vmatpush.msra.mxu0 0.0
        %2171 = vmatpush.msra.mxu0 0.0
        %2172 = vmatpush.msra.mxu0 0.0
        %2173 = vmatpush.msra.mxu0 0.0
        %2174 = vmatpush.msra.mxu0 0.0
        %2175 = vmatpush.msra.mxu0 %v2154
        %2176 = vmatpush.msra.mxu0 %v2153
        %2177 = vmatmul.f32.gmra.mxu0 %v2156
        %v2178 = vpop.f32.mrf.mxu0
        %v2179 = vadd.f32 0.0, %v2178
        %2180 = vmatmul.f32.gmra.mxu0 %v2159
        %v2181 = vpop.f32.mrf.mxu0
        %v2182 = vadd.f32 0.0, %v2181
        %2183 = vdwg.mxu0
        %v2184 = vadd.f32 %v2150, %v2179
        %v2185 = vadd.f32 %v2151, %v2182
        %s2186 = scalar_lea.vmem [#allocation8], 112
        %v2187 = vld [vmem:[%s2186] sm:$0xff]
        %v2188 = vld [vmem:[%s2186 + $0x8] sm:$0xff]
        %v2190 = vsel %vm1957, %v1899, 0
        %v2193 = vsel %vm1957, %v1902, 0
        %2195 = vmatpush.msra.mxu0 0.0
        %2196 = vmatpush.msra.mxu0 0.0
        %2197 = vmatpush.msra.mxu0 0.0
        %2198 = vmatpush.msra.mxu0 0.0
        %2199 = vmatpush.msra.mxu0 0.0
        %2200 = vmatpush.msra.mxu0 0.0
        %2201 = vmatpush.msra.mxu0 0.0
        %2202 = vmatpush.msra.mxu0 0.0
        %2203 = vmatpush.msra.mxu0 0.0
        %2204 = vmatpush.msra.mxu0 0.0
        %2205 = vmatpush.msra.mxu0 0.0
        %2206 = vmatpush.msra.mxu0 0.0
        %2207 = vmatpush.msra.mxu0 0.0
        %2208 = vmatpush.msra.mxu0 0.0
        %2209 = vmatpush.msra.mxu0 %v2188
        %2210 = vmatpush.msra.mxu0 %v2187
        %2211 = vmatmul.f32.gmra.mxu0 %v2190
        %v2212 = vpop.f32.mrf.mxu0
        %v2213 = vadd.f32 0.0, %v2212
        %2214 = vmatmul.f32.gmra.mxu0 %v2193
        %v2215 = vpop.f32.mrf.mxu0
        %v2216 = vadd.f32 0.0, %v2215
        %2217 = vdwg.mxu0
        %v2218 = vadd.f32 %v2184, %v2213
        %v2219 = vadd.f32 %v2185, %v2216
        %s2220 = scalar_lea.vmem [#allocation8], 128
        %v2221 = vld [vmem:[%s2220] sm:$0xff]
        %v2222 = vld [vmem:[%s2220 + $0x8] sm:$0xff]
        %v2224 = vsel %vm1957, %v1905, 0
        %v2227 = vsel %vm1957, %v1908, 0
        %2229 = vmatpush.msra.mxu0 0.0
        %2230 = vmatpush.msra.mxu0 0.0
        %2231 = vmatpush.msra.mxu0 0.0
        %2232 = vmatpush.msra.mxu0 0.0
        %2233 = vmatpush.msra.mxu0 0.0
        %2234 = vmatpush.msra.mxu0 0.0
        %2235 = vmatpush.msra.mxu0 0.0
        %2236 = vmatpush.msra.mxu0 0.0
        %2237 = vmatpush.msra.mxu0 0.0
        %2238 = vmatpush.msra.mxu0 0.0
        %2239 = vmatpush.msra.mxu0 0.0
        %2240 = vmatpush.msra.mxu0 0.0
        %2241 = vmatpush.msra.mxu0 0.0
        %2242 = vmatpush.msra.mxu0 0.0
        %2243 = vmatpush.msra.mxu0 %v2222
        %2244 = vmatpush.msra.mxu0 %v2221
        %2245 = vmatmul.f32.gmra.mxu0 %v2224
        %v2246 = vpop.f32.mrf.mxu0
        %v2247 = vadd.f32 0.0, %v2246
        %2248 = vmatmul.f32.gmra.mxu0 %v2227
        %v2249 = vpop.f32.mrf.mxu0
        %v2250 = vadd.f32 0.0, %v2249
        %2251 = vdwg.mxu0
        %v2252 = vadd.f32 %v2218, %v2247
        %v2253 = vadd.f32 %v2219, %v2250
        %s2254 = scalar_lea.vmem [#allocation8], 144
        %v2255 = vld [vmem:[%s2254] sm:$0xff]
        %v2256 = vld [vmem:[%s2254 + $0x8] sm:$0xff]
        %v2258 = vsel %vm1957, %v1911, 0
        %v2261 = vsel %vm1957, %v1914, 0
        %2263 = vmatpush.msra.mxu0 0.0
        %2264 = vmatpush.msra.mxu0 0.0
        %2265 = vmatpush.msra.mxu0 0.0
        %2266 = vmatpush.msra.mxu0 0.0
        %2267 = vmatpush.msra.mxu0 0.0
        %2268 = vmatpush.msra.mxu0 0.0
        %2269 = vmatpush.msra.mxu0 0.0
        %2270 = vmatpush.msra.mxu0 0.0
        %2271 = vmatpush.msra.mxu0 0.0
        %2272 = vmatpush.msra.mxu0 0.0
        %2273 = vmatpush.msra.mxu0 0.0
        %2274 = vmatpush.msra.mxu0 0.0
        %2275 = vmatpush.msra.mxu0 0.0
        %2276 = vmatpush.msra.mxu0 0.0
        %2277 = vmatpush.msra.mxu0 %v2256
        %2278 = vmatpush.msra.mxu0 %v2255
        %2279 = vmatmul.f32.gmra.mxu0 %v2258
        %v2280 = vpop.f32.mrf.mxu0
        %v2281 = vadd.f32 0.0, %v2280
        %2282 = vmatmul.f32.gmra.mxu0 %v2261
        %v2283 = vpop.f32.mrf.mxu0
        %v2284 = vadd.f32 0.0, %v2283
        %2285 = vdwg.mxu0
        %v2286 = vadd.f32 %v2252, %v2281
        %v2287 = vadd.f32 %v2253, %v2284
        %s2288 = scalar_lea.vmem [#allocation8], 160
        %v2289 = vld [vmem:[%s2288] sm:$0xff]
        %v2290 = vld [vmem:[%s2288 + $0x8] sm:$0xff]
        %v2292 = vsel %vm1957, %v1917, 0
        %v2295 = vsel %vm1957, %v1920, 0
        %2297 = vmatpush.msra.mxu0 0.0
        %2298 = vmatpush.msra.mxu0 0.0
        %2299 = vmatpush.msra.mxu0 0.0
        %2300 = vmatpush.msra.mxu0 0.0
        %2301 = vmatpush.msra.mxu0 0.0
        %2302 = vmatpush.msra.mxu0 0.0
        %2303 = vmatpush.msra.mxu0 0.0
        %2304 = vmatpush.msra.mxu0 0.0
        %2305 = vmatpush.msra.mxu0 0.0
        %2306 = vmatpush.msra.mxu0 0.0
        %2307 = vmatpush.msra.mxu0 0.0
        %2308 = vmatpush.msra.mxu0 0.0
        %2309 = vmatpush.msra.mxu0 0.0
        %2310 = vmatpush.msra.mxu0 0.0
        %2311 = vmatpush.msra.mxu0 %v2290
        %2312 = vmatpush.msra.mxu0 %v2289
        %2313 = vmatmul.f32.gmra.mxu0 %v2292
        %v2314 = vpop.f32.mrf.mxu0
        %v2315 = vadd.f32 0.0, %v2314
        %2316 = vmatmul.f32.gmra.mxu0 %v2295
        %v2317 = vpop.f32.mrf.mxu0
        %v2318 = vadd.f32 0.0, %v2317
        %2319 = vdwg.mxu0
        %v2320 = vadd.f32 %v2286, %v2315
        %v2321 = vadd.f32 %v2287, %v2318
        %s2322 = scalar_lea.vmem [#allocation8], 176
        %v2323 = vld [vmem:[%s2322] sm:$0xff]
        %v2324 = vld [vmem:[%s2322 + $0x8] sm:$0xff]
        %v2326 = vsel %vm1957, %v1923, 0
        %v2329 = vsel %vm1957, %v1926, 0
        %2331 = vmatpush.msra.mxu0 0.0
        %2332 = vmatpush.msra.mxu0 0.0
        %2333 = vmatpush.msra.mxu0 0.0
        %2334 = vmatpush.msra.mxu0 0.0
        %2335 = vmatpush.msra.mxu0 0.0
        %2336 = vmatpush.msra.mxu0 0.0
        %2337 = vmatpush.msra.mxu0 0.0
        %2338 = vmatpush.msra.mxu0 0.0
        %2339 = vmatpush.msra.mxu0 0.0
        %2340 = vmatpush.msra.mxu0 0.0
        %2341 = vmatpush.msra.mxu0 0.0
        %2342 = vmatpush.msra.mxu0 0.0
        %2343 = vmatpush.msra.mxu0 0.0
        %2344 = vmatpush.msra.mxu0 0.0
        %2345 = vmatpush.msra.mxu0 %v2324
        %2346 = vmatpush.msra.mxu0 %v2323
        %2347 = vmatmul.f32.gmra.mxu0 %v2326
        %v2348 = vpop.f32.mrf.mxu0
        %v2349 = vadd.f32 0.0, %v2348
        %2350 = vmatmul.f32.gmra.mxu0 %v2329
        %v2351 = vpop.f32.mrf.mxu0
        %v2352 = vadd.f32 0.0, %v2351
        %2353 = vdwg.mxu0
        %v2354 = vadd.f32 %v2320, %v2349
        %v2355 = vadd.f32 %v2321, %v2352
        %s2356 = scalar_lea.vmem [#allocation8], 192
        %v2357 = vld [vmem:[%s2356] sm:$0xff]
        %v2358 = vld [vmem:[%s2356 + $0x8] sm:$0xff]
        %v2360 = vsel %vm1957, %v1929, 0
        %v2363 = vsel %vm1957, %v1932, 0
        %2365 = vmatpush.msra.mxu0 0.0
        %2366 = vmatpush.msra.mxu0 0.0
        %2367 = vmatpush.msra.mxu0 0.0
        %2368 = vmatpush.msra.mxu0 0.0
        %2369 = vmatpush.msra.mxu0 0.0
        %2370 = vmatpush.msra.mxu0 0.0
        %2371 = vmatpush.msra.mxu0 0.0
        %2372 = vmatpush.msra.mxu0 0.0
        %2373 = vmatpush.msra.mxu0 0.0
        %2374 = vmatpush.msra.mxu0 0.0
        %2375 = vmatpush.msra.mxu0 0.0
        %2376 = vmatpush.msra.mxu0 0.0
        %2377 = vmatpush.msra.mxu0 0.0
        %2378 = vmatpush.msra.mxu0 0.0
        %2379 = vmatpush.msra.mxu0 %v2358
        %2380 = vmatpush.msra.mxu0 %v2357
        %2381 = vmatmul.f32.gmra.mxu0 %v2360
        %v2382 = vpop.f32.mrf.mxu0
        %v2383 = vadd.f32 0.0, %v2382
        %2384 = vmatmul.f32.gmra.mxu0 %v2363
        %v2385 = vpop.f32.mrf.mxu0
        %v2386 = vadd.f32 0.0, %v2385
        %2387 = vdwg.mxu0
        %v2388 = vadd.f32 %v2354, %v2383
        %v2389 = vadd.f32 %v2355, %v2386
        %s2390 = scalar_lea.vmem [#allocation8], 208
        %v2391 = vld [vmem:[%s2390] sm:$0xff]
        %v2392 = vld [vmem:[%s2390 + $0x8] sm:$0xff]
        %v2394 = vsel %vm1957, %v1935, 0
        %v2397 = vsel %vm1957, %v1938, 0
        %2399 = vmatpush.msra.mxu0 0.0
        %2400 = vmatpush.msra.mxu0 0.0
        %2401 = vmatpush.msra.mxu0 0.0
        %2402 = vmatpush.msra.mxu0 0.0
        %2403 = vmatpush.msra.mxu0 0.0
        %2404 = vmatpush.msra.mxu0 0.0
        %2405 = vmatpush.msra.mxu0 0.0
        %2406 = vmatpush.msra.mxu0 0.0
        %2407 = vmatpush.msra.mxu0 0.0
        %2408 = vmatpush.msra.mxu0 0.0
        %2409 = vmatpush.msra.mxu0 0.0
        %2410 = vmatpush.msra.mxu0 0.0
        %2411 = vmatpush.msra.mxu0 0.0
        %2412 = vmatpush.msra.mxu0 0.0
        %2413 = vmatpush.msra.mxu0 %v2392
        %2414 = vmatpush.msra.mxu0 %v2391
        %2415 = vmatmul.f32.gmra.mxu0 %v2394
        %v2416 = vpop.f32.mrf.mxu0
        %v2417 = vadd.f32 0.0, %v2416
        %2418 = vmatmul.f32.gmra.mxu0 %v2397
        %v2419 = vpop.f32.mrf.mxu0
        %v2420 = vadd.f32 0.0, %v2419
        %2421 = vdwg.mxu0
        %v2422 = vadd.f32 %v2388, %v2417
        %v2423 = vadd.f32 %v2389, %v2420
        %s2424 = scalar_lea.vmem [#allocation8], 224
        %v2425 = vld [vmem:[%s2424] sm:$0xff]
        %v2426 = vld [vmem:[%s2424 + $0x8] sm:$0xff]
        %v2428 = vsel %vm1957, %v1941, 0
        %v2431 = vsel %vm1957, %v1944, 0
        %2433 = vmatpush.msra.mxu0 0.0
        %2434 = vmatpush.msra.mxu0 0.0
        %2435 = vmatpush.msra.mxu0 0.0
        %2436 = vmatpush.msra.mxu0 0.0
        %2437 = vmatpush.msra.mxu0 0.0
        %2438 = vmatpush.msra.mxu0 0.0
        %2439 = vmatpush.msra.mxu0 0.0
        %2440 = vmatpush.msra.mxu0 0.0
        %2441 = vmatpush.msra.mxu0 0.0
        %2442 = vmatpush.msra.mxu0 0.0
        %2443 = vmatpush.msra.mxu0 0.0
        %2444 = vmatpush.msra.mxu0 0.0
        %2445 = vmatpush.msra.mxu0 0.0
        %2446 = vmatpush.msra.mxu0 0.0
        %2447 = vmatpush.msra.mxu0 %v2426
        %2448 = vmatpush.msra.mxu0 %v2425
        %2449 = vmatmul.f32.gmra.mxu0 %v2428
        %v2450 = vpop.f32.mrf.mxu0
        %v2451 = vadd.f32 0.0, %v2450
        %2452 = vmatmul.f32.gmra.mxu0 %v2431
        %v2453 = vpop.f32.mrf.mxu0
        %v2454 = vadd.f32 0.0, %v2453
        %2455 = vdwg.mxu0
        %v2456 = vadd.f32 %v2422, %v2451
        %v2457 = vadd.f32 %v2423, %v2454
        %s2458 = scalar_lea.vmem [#allocation8], 240
        %v2459 = vld [vmem:[%s2458] sm:$0xff]
        %v2460 = vld [vmem:[%s2458 + $0x8] sm:$0xff]
        %v2462 = vsel %vm1957, %v1947, 0
        %v2465 = vsel %vm1957, %v1950, 0
        %2467 = vmatpush.msra.mxu0 0.0
        %2468 = vmatpush.msra.mxu0 0.0
        %2469 = vmatpush.msra.mxu0 0.0
        %2470 = vmatpush.msra.mxu0 0.0
        %2471 = vmatpush.msra.mxu0 0.0
        %2472 = vmatpush.msra.mxu0 0.0
        %2473 = vmatpush.msra.mxu0 0.0
        %2474 = vmatpush.msra.mxu0 0.0
        %2475 = vmatpush.msra.mxu0 0.0
        %2476 = vmatpush.msra.mxu0 0.0
        %2477 = vmatpush.msra.mxu0 0.0
        %2478 = vmatpush.msra.mxu0 0.0
        %2479 = vmatpush.msra.mxu0 0.0
        %2480 = vmatpush.msra.mxu0 0.0
        %2481 = vmatpush.msra.mxu0 %v2460
        %2482 = vmatpush.msra.mxu0 %v2459
        %2483 = vmatmul.f32.gmra.mxu0 %v2462
        %v2484 = vpop.f32.mrf.mxu0
        %v2485 = vadd.f32 0.0, %v2484
        %2486 = vmatmul.f32.gmra.mxu0 %v2465
        %v2487 = vpop.f32.mrf.mxu0
        %v2488 = vadd.f32 0.0, %v2487
        %2489 = vdwg.mxu0
        %v2490 = vadd.f32 %v2456, %v2485
        %v2491 = vadd.f32 %v2457, %v2488
        %s2492 = sld [smem:[#allocation2 + $0x1]]
        %v2493 = vstv %s2492
        %v2494 = vmul.f32 %v2493, %v2490
        %v2495 = vmul.f32 %v2493, %v2491
        %s2496 = sld [smem:[#allocation5 + $0x1]]
        %v2497 = vstv %s2496
        %v2498 = vadd.f32 %v2494, %v2497
        %v2499 = vadd.f32 %v2495, %v2497
        %v2500 = vmax.f32 %v2498, 0.0
        %v2501 = vmax.f32 %v2499, 0.0
        %v2502 = vld [vmem:[%s7] sm:$0xff]
        %v2503 = vld [vmem:[%s7 + $0x8] sm:$0xff]
        %v2504 = vld [vmem:[%s7 + $0x10] sm:$0xff]
        %v2505 = vld [vmem:[%s7 + $0x18] sm:$0xff]
        %v2506 = vld [vmem:[%s7 + $0x20] sm:$0xff]
        %v2507 = vld [vmem:[%s7 + $0x28] sm:$0xff]
        %v2508 = vld [vmem:[%s7 + $0x30] sm:$0xff]
        %v2509 = vld [vmem:[%s7 + $0x38] sm:$0xff]
        %v2510 = vld [vmem:[%s7 + $0x40] sm:$0xff]
        %v2511 = vld [vmem:[%s7 + $0x48] sm:$0xff]
        %v2512 = vld [vmem:[%s7 + $0x50] sm:$0xff]
        %v2513 = vld [vmem:[%s7 + $0x58] sm:$0xff]
        %v2514 = vld [vmem:[%s7 + $0x60] sm:$0xff]
        %v2515 = vld [vmem:[%s7 + $0x68] sm:$0xff]
        %v2516 = vld [vmem:[%s7 + $0x70] sm:$0xff]
        %v2517 = vld [vmem:[%s7 + $0x78] sm:$0xff]
        %v2518 = vld [vmem:[%s7 + $0x80] sm:$0xff]
        %v2519 = vld [vmem:[%s7 + $0x88] sm:$0xff]
        %v2520 = vld [vmem:[%s7 + $0x90] sm:$0xff]
        %v2521 = vld [vmem:[%s7 + $0x98] sm:$0xff]
        %v2522 = vld [vmem:[%s7 + $0xa0] sm:$0xff]
        %v2523 = vld [vmem:[%s7 + $0xa8] sm:$0xff]
        %v2524 = vld [vmem:[%s7 + $0xb0] sm:$0xff]
        %v2525 = vld [vmem:[%s7 + $0xb8] sm:$0xff]
        %v2526 = vld [vmem:[%s7 + $0xc0] sm:$0xff]
        %v2527 = vld [vmem:[%s7 + $0xc8] sm:$0xff]
        %v2528 = vld [vmem:[%s7 + $0xd0] sm:$0xff]
        %v2529 = vld [vmem:[%s7 + $0xd8] sm:$0xff]
        %v2530 = vld [vmem:[%s7 + $0xe0] sm:$0xff]
        %v2531 = vld [vmem:[%s7 + $0xe8] sm:$0xff]
        %v2532 = vld [vmem:[%s7 + $0xf0] sm:$0xff]
        %v2533 = vld [vmem:[%s7 + $0xf8] sm:$0xff]
        %v2535 = vsel %vm1957, %v2502, 0
        %v2538 = vsel %vm1957, %v2503, 0
        %v2541 = vsel %vm1957, %v2504, 0
        %v2544 = vsel %vm1957, %v2505, 0
        %v2547 = vsel %vm1957, %v2506, 0
        %v2550 = vsel %vm1957, %v2507, 0
        %v2553 = vsel %vm1957, %v2508, 0
        %v2556 = vsel %vm1957, %v2509, 0
        %v2559 = vsel %vm1957, %v2510, 0
        %v2562 = vsel %vm1957, %v2511, 0
        %v2565 = vsel %vm1957, %v2512, 0
        %v2568 = vsel %vm1957, %v2513, 0
        %v2571 = vsel %vm1957, %v2514, 0
        %v2574 = vsel %vm1957, %v2515, 0
        %v2577 = vsel %vm1957, %v2516, 0
        %v2580 = vsel %vm1957, %v2517, 0
        %v2583 = vsel %vm1957, %v2518, 0
        %v2586 = vsel %vm1957, %v2519, 0
        %v2589 = vsel %vm1957, %v2520, 0
        %v2592 = vsel %vm1957, %v2521, 0
        %v2595 = vsel %vm1957, %v2522, 0
        %v2598 = vsel %vm1957, %v2523, 0
        %v2601 = vsel %vm1957, %v2524, 0
        %v2604 = vsel %vm1957, %v2525, 0
        %v2607 = vsel %vm1957, %v2526, 0
        %v2610 = vsel %vm1957, %v2527, 0
        %v2613 = vsel %vm1957, %v2528, 0
        %v2616 = vsel %vm1957, %v2529, 0
        %v2619 = vsel %vm1957, %v2530, 0
        %v2622 = vsel %vm1957, %v2531, 0
        %v2625 = vsel %vm1957, %v2532, 0
        %v2628 = vsel %vm1957, %v2533, 0
        %2630 = vmatpush.msra.mxu0 0.0
        %2631 = vmatpush.msra.mxu0 0.0
        %2632 = vmatpush.msra.mxu0 0.0
        %2633 = vmatpush.msra.mxu0 0.0
        %2634 = vmatpush.msra.mxu0 0.0
        %2635 = vmatpush.msra.mxu0 0.0
        %2636 = vmatpush.msra.mxu0 0.0
        %2637 = vmatpush.msra.mxu0 0.0
        %2638 = vmatpush.msra.mxu0 0.0
        %2639 = vmatpush.msra.mxu0 0.0
        %2640 = vmatpush.msra.mxu0 0.0
        %2641 = vmatpush.msra.mxu0 0.0
        %2642 = vmatpush.msra.mxu0 0.0
        %2643 = vmatpush.msra.mxu0 0.0
        %2644 = vmatpush.msra.mxu0 %v2501
        %2645 = vmatpush.msra.mxu0 %v2500
        %2646 = vmatmul.f32.gmra.mxu0 %v2535
        %v2647 = vpop.f32.mrf.mxu0
        %v2648 = vadd.f32 0.0, %v2647
        %2649 = vmatmul.f32.gmra.mxu0 %v2538
        %v2650 = vpop.f32.mrf.mxu0
        %v2651 = vadd.f32 0.0, %v2650
        %2652 = vmatmul.f32.gmra.mxu0 %v2541
        %v2653 = vpop.f32.mrf.mxu0
        %v2654 = vadd.f32 0.0, %v2653
        %2655 = vmatmul.f32.gmra.mxu0 %v2544
        %v2656 = vpop.f32.mrf.mxu0
        %v2657 = vadd.f32 0.0, %v2656
        %2658 = vmatmul.f32.gmra.mxu0 %v2547
        %v2659 = vpop.f32.mrf.mxu0
        %v2660 = vadd.f32 0.0, %v2659
        %2661 = vmatmul.f32.gmra.mxu0 %v2550
        %v2662 = vpop.f32.mrf.mxu0
        %v2663 = vadd.f32 0.0, %v2662
        %2664 = vmatmul.f32.gmra.mxu0 %v2553
        %v2665 = vpop.f32.mrf.mxu0
        %v2666 = vadd.f32 0.0, %v2665
        %2667 = vmatmul.f32.gmra.mxu0 %v2556
        %v2668 = vpop.f32.mrf.mxu0
        %v2669 = vadd.f32 0.0, %v2668
        %2670 = vmatmul.f32.gmra.mxu0 %v2559
        %v2671 = vpop.f32.mrf.mxu0
        %v2672 = vadd.f32 0.0, %v2671
        %2673 = vmatmul.f32.gmra.mxu0 %v2562
        %v2674 = vpop.f32.mrf.mxu0
        %v2675 = vadd.f32 0.0, %v2674
        %2676 = vmatmul.f32.gmra.mxu0 %v2565
        %v2677 = vpop.f32.mrf.mxu0
        %v2678 = vadd.f32 0.0, %v2677
        %2679 = vmatmul.f32.gmra.mxu0 %v2568
        %v2680 = vpop.f32.mrf.mxu0
        %v2681 = vadd.f32 0.0, %v2680
        %2682 = vmatmul.f32.gmra.mxu0 %v2571
        %v2683 = vpop.f32.mrf.mxu0
        %v2684 = vadd.f32 0.0, %v2683
        %2685 = vmatmul.f32.gmra.mxu0 %v2574
        %v2686 = vpop.f32.mrf.mxu0
        %v2687 = vadd.f32 0.0, %v2686
        %2688 = vmatmul.f32.gmra.mxu0 %v2577
        %v2689 = vpop.f32.mrf.mxu0
        %v2690 = vadd.f32 0.0, %v2689
        %2691 = vmatmul.f32.gmra.mxu0 %v2580
        %v2692 = vpop.f32.mrf.mxu0
        %v2693 = vadd.f32 0.0, %v2692
        %2694 = vmatmul.f32.gmra.mxu0 %v2583
        %v2695 = vpop.f32.mrf.mxu0
        %v2696 = vadd.f32 0.0, %v2695
        %2697 = vmatmul.f32.gmra.mxu0 %v2586
        %v2698 = vpop.f32.mrf.mxu0
        %v2699 = vadd.f32 0.0, %v2698
        %2700 = vmatmul.f32.gmra.mxu0 %v2589
        %v2701 = vpop.f32.mrf.mxu0
        %v2702 = vadd.f32 0.0, %v2701
        %2703 = vmatmul.f32.gmra.mxu0 %v2592
        %v2704 = vpop.f32.mrf.mxu0
        %v2705 = vadd.f32 0.0, %v2704
        %2706 = vmatmul.f32.gmra.mxu0 %v2595
        %v2707 = vpop.f32.mrf.mxu0
        %v2708 = vadd.f32 0.0, %v2707
        %2709 = vmatmul.f32.gmra.mxu0 %v2598
        %v2710 = vpop.f32.mrf.mxu0
        %v2711 = vadd.f32 0.0, %v2710
        %2712 = vmatmul.f32.gmra.mxu0 %v2601
        %v2713 = vpop.f32.mrf.mxu0
        %v2714 = vadd.f32 0.0, %v2713
        %2715 = vmatmul.f32.gmra.mxu0 %v2604
        %v2716 = vpop.f32.mrf.mxu0
        %v2717 = vadd.f32 0.0, %v2716
        %2718 = vmatmul.f32.gmra.mxu0 %v2607
        %v2719 = vpop.f32.mrf.mxu0
        %v2720 = vadd.f32 0.0, %v2719
        %2721 = vmatmul.f32.gmra.mxu0 %v2610
        %v2722 = vpop.f32.mrf.mxu0
        %v2723 = vadd.f32 0.0, %v2722
        %2724 = vmatmul.f32.gmra.mxu0 %v2613
        %v2725 = vpop.f32.mrf.mxu0
        %v2726 = vadd.f32 0.0, %v2725
        %2727 = vmatmul.f32.gmra.mxu0 %v2616
        %v2728 = vpop.f32.mrf.mxu0
        %v2729 = vadd.f32 0.0, %v2728
        %2730 = vmatmul.f32.gmra.mxu0 %v2619
        %v2731 = vpop.f32.mrf.mxu0
        %v2732 = vadd.f32 0.0, %v2731
        %2733 = vmatmul.f32.gmra.mxu0 %v2622
        %v2734 = vpop.f32.mrf.mxu0
        %v2735 = vadd.f32 0.0, %v2734
        %2736 = vmatmul.f32.gmra.mxu0 %v2625
        %v2737 = vpop.f32.mrf.mxu0
        %v2738 = vadd.f32 0.0, %v2737
        %2739 = vmatmul.f32.gmra.mxu0 %v2628
        %v2740 = vpop.f32.mrf.mxu0
        %v2741 = vadd.f32 0.0, %v2740
        %2742 = vdwg.mxu0
        %v2743 = vld [vmem:[#allocation10] sm:$0xff]
        %v2744 = vld [vmem:[#allocation10 + $0x8] sm:$0xff]
        %v2745 = vld [vmem:[#allocation10 + $0x10] sm:$0xff]
        %v2746 = vld [vmem:[#allocation10 + $0x18] sm:$0xff]
        %v2747 = vld [vmem:[#allocation10 + $0x20] sm:$0xff]
        %v2748 = vld [vmem:[#allocation10 + $0x28] sm:$0xff]
        %v2749 = vld [vmem:[#allocation10 + $0x30] sm:$0xff]
        %v2750 = vld [vmem:[#allocation10 + $0x38] sm:$0xff]
        %v2751 = vld [vmem:[#allocation10 + $0x40] sm:$0xff]
        %v2752 = vld [vmem:[#allocation10 + $0x48] sm:$0xff]
        %v2753 = vld [vmem:[#allocation10 + $0x50] sm:$0xff]
        %v2754 = vld [vmem:[#allocation10 + $0x58] sm:$0xff]
        %v2755 = vld [vmem:[#allocation10 + $0x60] sm:$0xff]
        %v2756 = vld [vmem:[#allocation10 + $0x68] sm:$0xff]
        %v2757 = vld [vmem:[#allocation10 + $0x70] sm:$0xff]
        %v2758 = vld [vmem:[#allocation10 + $0x78] sm:$0xff]
        %s2759 = scalar_lea.vmem [#allocation10], 128
        %v2760 = vld [vmem:[%s2759] sm:$0xff]
        %v2761 = vld [vmem:[%s2759 + $0x8] sm:$0xff]
        %v2762 = vld [vmem:[%s2759 + $0x10] sm:$0xff]
        %v2763 = vld [vmem:[%s2759 + $0x18] sm:$0xff]
        %v2764 = vld [vmem:[%s2759 + $0x20] sm:$0xff]
        %v2765 = vld [vmem:[%s2759 + $0x28] sm:$0xff]
        %v2766 = vld [vmem:[%s2759 + $0x30] sm:$0xff]
        %v2767 = vld [vmem:[%s2759 + $0x38] sm:$0xff]
        %v2768 = vld [vmem:[%s2759 + $0x40] sm:$0xff]
        %v2769 = vld [vmem:[%s2759 + $0x48] sm:$0xff]
        %v2770 = vld [vmem:[%s2759 + $0x50] sm:$0xff]
        %v2771 = vld [vmem:[%s2759 + $0x58] sm:$0xff]
        %v2772 = vld [vmem:[%s2759 + $0x60] sm:$0xff]
        %v2773 = vld [vmem:[%s2759 + $0x68] sm:$0xff]
        %v2774 = vld [vmem:[%s2759 + $0x70] sm:$0xff]
        %v2775 = vld [vmem:[%s2759 + $0x78] sm:$0xff]
        %vm2776 = vcmask 523264
        %v2778 = vsel %vm2776, %v2654, 0
        %v2781 = vsel %vm2776, %v2657, 0
        %2783 = vmatpush.msra.mxu0 0.0
        %2784 = vmatpush.msra.mxu0 0.0
        %2785 = vmatpush.msra.mxu0 0.0
        %2786 = vmatpush.msra.mxu0 0.0
        %2787 = vmatpush.msra.mxu0 0.0
        %2788 = vmatpush.msra.mxu0 0.0
        %2789 = vmatpush.msra.mxu0 0.0
        %2790 = vmatpush.msra.mxu0 0.0
        %2791 = vmatpush.msra.mxu0 %v2774
        %2792 = vmatpush.msra.mxu0 %v2772
        %2793 = vmatpush.msra.mxu0 %v2770
        %2794 = vmatpush.msra.mxu0 %v2768
        %2795 = vmatpush.msra.mxu0 %v2766
        %2796 = vmatpush.msra.mxu0 %v2764
        %2797 = vmatpush.msra.mxu0 %v2762
        %2798 = vmatpush.msra.mxu0 %v2760
        %2799 = vmatmul.f32.gmra.mxu0 %v2778
        %v2800 = vpop.f32.mrf.mxu0
        %v2801 = vadd.f32 0.0, %v2800
        %2802 = vmatmul.f32.gmra.mxu0 %v2781
        %v2803 = vpop.f32.mrf.mxu0
        %v2804 = vadd.f32 0.0, %v2803
        %2805 = vdwg.mxu0
        %2806 = vmatpush.msra.mxu0 0.0
        %2807 = vmatpush.msra.mxu0 0.0
        %2808 = vmatpush.msra.mxu0 0.0
        %2809 = vmatpush.msra.mxu0 0.0
        %2810 = vmatpush.msra.mxu0 0.0
        %2811 = vmatpush.msra.mxu0 0.0
        %2812 = vmatpush.msra.mxu0 0.0
        %2813 = vmatpush.msra.mxu0 0.0
        %2814 = vmatpush.msra.mxu0 %v2775
        %2815 = vmatpush.msra.mxu0 %v2773
        %2816 = vmatpush.msra.mxu0 %v2771
        %2817 = vmatpush.msra.mxu0 %v2769
        %2818 = vmatpush.msra.mxu0 %v2767
        %2819 = vmatpush.msra.mxu0 %v2765
        %2820 = vmatpush.msra.mxu0 %v2763
        %2821 = vmatpush.msra.mxu0 %v2761
        %2822 = vmatmul.f32.gmra.mxu0 %v2778
        %v2823 = vpop.f32.mrf.mxu0
        %v2824 = vadd.f32 0.0, %v2823
        %2825 = vmatmul.f32.gmra.mxu0 %v2781
        %v2826 = vpop.f32.mrf.mxu0
        %v2827 = vadd.f32 0.0, %v2826
        %2828 = vdwg.mxu0
        %v2830 = vsel %vm2776, %v2648, 0
        %v2833 = vsel %vm2776, %v2651, 0
        %2835 = vmatpush.msra.mxu0 0.0
        %2836 = vmatpush.msra.mxu0 0.0
        %2837 = vmatpush.msra.mxu0 0.0
        %2838 = vmatpush.msra.mxu0 0.0
        %2839 = vmatpush.msra.mxu0 0.0
        %2840 = vmatpush.msra.mxu0 0.0
        %2841 = vmatpush.msra.mxu0 0.0
        %2842 = vmatpush.msra.mxu0 0.0
        %2843 = vmatpush.msra.mxu0 %v2757
        %2844 = vmatpush.msra.mxu0 %v2755
        %2845 = vmatpush.msra.mxu0 %v2753
        %2846 = vmatpush.msra.mxu0 %v2751
        %2847 = vmatpush.msra.mxu0 %v2749
        %2848 = vmatpush.msra.mxu0 %v2747
        %2849 = vmatpush.msra.mxu0 %v2745
        %2850 = vmatpush.msra.mxu0 %v2743
        %2851 = vmatmul.f32.gmra.mxu0 %v2830
        %v2852 = vpop.f32.mrf.mxu0
        %v2853 = vadd.f32 %v2801, %v2852
        %2854 = vmatmul.f32.gmra.mxu0 %v2833
        %v2855 = vpop.f32.mrf.mxu0
        %v2856 = vadd.f32 %v2804, %v2855
        %2857 = vdwg.mxu0
        %2858 = vmatpush.msra.mxu0 0.0
        %2859 = vmatpush.msra.mxu0 0.0
        %2860 = vmatpush.msra.mxu0 0.0
        %2861 = vmatpush.msra.mxu0 0.0
        %2862 = vmatpush.msra.mxu0 0.0
        %2863 = vmatpush.msra.mxu0 0.0
        %2864 = vmatpush.msra.mxu0 0.0
        %2865 = vmatpush.msra.mxu0 0.0
        %2866 = vmatpush.msra.mxu0 %v2758
        %2867 = vmatpush.msra.mxu0 %v2756
        %2868 = vmatpush.msra.mxu0 %v2754
        %2869 = vmatpush.msra.mxu0 %v2752
        %2870 = vmatpush.msra.mxu0 %v2750
        %2871 = vmatpush.msra.mxu0 %v2748
        %2872 = vmatpush.msra.mxu0 %v2746
        %2873 = vmatpush.msra.mxu0 %v2744
        %2874 = vmatmul.f32.gmra.mxu0 %v2830
        %v2875 = vpop.f32.mrf.mxu0
        %v2876 = vadd.f32 %v2824, %v2875
        %2877 = vmatmul.f32.gmra.mxu0 %v2833
        %v2878 = vpop.f32.mrf.mxu0
        %v2879 = vadd.f32 %v2827, %v2878
        %2880 = vdwg.mxu0
        %s2881 = scalar_lea.vmem [#allocation10], 256
        %v2882 = vld [vmem:[%s2881] sm:$0xff]
        %v2883 = vld [vmem:[%s2881 + $0x8] sm:$0xff]
        %v2884 = vld [vmem:[%s2881 + $0x10] sm:$0xff]
        %v2885 = vld [vmem:[%s2881 + $0x18] sm:$0xff]
        %v2886 = vld [vmem:[%s2881 + $0x20] sm:$0xff]
        %v2887 = vld [vmem:[%s2881 + $0x28] sm:$0xff]
        %v2888 = vld [vmem:[%s2881 + $0x30] sm:$0xff]
        %v2889 = vld [vmem:[%s2881 + $0x38] sm:$0xff]
        %v2890 = vld [vmem:[%s2881 + $0x40] sm:$0xff]
        %v2891 = vld [vmem:[%s2881 + $0x48] sm:$0xff]
        %v2892 = vld [vmem:[%s2881 + $0x50] sm:$0xff]
        %v2893 = vld [vmem:[%s2881 + $0x58] sm:$0xff]
        %v2894 = vld [vmem:[%s2881 + $0x60] sm:$0xff]
        %v2895 = vld [vmem:[%s2881 + $0x68] sm:$0xff]
        %v2896 = vld [vmem:[%s2881 + $0x70] sm:$0xff]
        %v2897 = vld [vmem:[%s2881 + $0x78] sm:$0xff]
        %v2899 = vsel %vm2776, %v2660, 0
        %v2902 = vsel %vm2776, %v2663, 0
        %2904 = vmatpush.msra.mxu0 0.0
        %2905 = vmatpush.msra.mxu0 0.0
        %2906 = vmatpush.msra.mxu0 0.0
        %2907 = vmatpush.msra.mxu0 0.0
        %2908 = vmatpush.msra.mxu0 0.0
        %2909 = vmatpush.msra.mxu0 0.0
        %2910 = vmatpush.msra.mxu0 0.0
        %2911 = vmatpush.msra.mxu0 0.0
        %2912 = vmatpush.msra.mxu0 %v2896
        %2913 = vmatpush.msra.mxu0 %v2894
        %2914 = vmatpush.msra.mxu0 %v2892
        %2915 = vmatpush.msra.mxu0 %v2890
        %2916 = vmatpush.msra.mxu0 %v2888
        %2917 = vmatpush.msra.mxu0 %v2886
        %2918 = vmatpush.msra.mxu0 %v2884
        %2919 = vmatpush.msra.mxu0 %v2882
        %2920 = vmatmul.f32.gmra.mxu0 %v2899
        %v2921 = vpop.f32.mrf.mxu0
        %v2922 = vadd.f32 0.0, %v2921
        %2923 = vmatmul.f32.gmra.mxu0 %v2902
        %v2924 = vpop.f32.mrf.mxu0
        %v2925 = vadd.f32 0.0, %v2924
        %2926 = vdwg.mxu0
        %2927 = vmatpush.msra.mxu0 0.0
        %2928 = vmatpush.msra.mxu0 0.0
        %2929 = vmatpush.msra.mxu0 0.0
        %2930 = vmatpush.msra.mxu0 0.0
        %2931 = vmatpush.msra.mxu0 0.0
        %2932 = vmatpush.msra.mxu0 0.0
        %2933 = vmatpush.msra.mxu0 0.0
        %2934 = vmatpush.msra.mxu0 0.0
        %2935 = vmatpush.msra.mxu0 %v2897
        %2936 = vmatpush.msra.mxu0 %v2895
        %2937 = vmatpush.msra.mxu0 %v2893
        %2938 = vmatpush.msra.mxu0 %v2891
        %2939 = vmatpush.msra.mxu0 %v2889
        %2940 = vmatpush.msra.mxu0 %v2887
        %2941 = vmatpush.msra.mxu0 %v2885
        %2942 = vmatpush.msra.mxu0 %v2883
        %2943 = vmatmul.f32.gmra.mxu0 %v2899
        %v2944 = vpop.f32.mrf.mxu0
        %v2945 = vadd.f32 0.0, %v2944
        %2946 = vmatmul.f32.gmra.mxu0 %v2902
        %v2947 = vpop.f32.mrf.mxu0
        %v2948 = vadd.f32 0.0, %v2947
        %2949 = vdwg.mxu0
        %v2950 = vadd.f32 %v2853, %v2922
        %v2951 = vadd.f32 %v2876, %v2945
        %v2952 = vadd.f32 %v2856, %v2925
        %v2953 = vadd.f32 %v2879, %v2948
        %s2954 = scalar_lea.vmem [#allocation10], 384
        %v2955 = vld [vmem:[%s2954] sm:$0xff]
        %v2956 = vld [vmem:[%s2954 + $0x8] sm:$0xff]
        %v2957 = vld [vmem:[%s2954 + $0x10] sm:$0xff]
        %v2958 = vld [vmem:[%s2954 + $0x18] sm:$0xff]
        %v2959 = vld [vmem:[%s2954 + $0x20] sm:$0xff]
        %v2960 = vld [vmem:[%s2954 + $0x28] sm:$0xff]
        %v2961 = vld [vmem:[%s2954 + $0x30] sm:$0xff]
        %v2962 = vld [vmem:[%s2954 + $0x38] sm:$0xff]
        %v2963 = vld [vmem:[%s2954 + $0x40] sm:$0xff]
        %v2964 = vld [vmem:[%s2954 + $0x48] sm:$0xff]
        %v2965 = vld [vmem:[%s2954 + $0x50] sm:$0xff]
        %v2966 = vld [vmem:[%s2954 + $0x58] sm:$0xff]
        %v2967 = vld [vmem:[%s2954 + $0x60] sm:$0xff]
        %v2968 = vld [vmem:[%s2954 + $0x68] sm:$0xff]
        %v2969 = vld [vmem:[%s2954 + $0x70] sm:$0xff]
        %v2970 = vld [vmem:[%s2954 + $0x78] sm:$0xff]
        %v2972 = vsel %vm2776, %v2666, 0
        %v2975 = vsel %vm2776, %v2669, 0
        %2977 = vmatpush.msra.mxu0 0.0
        %2978 = vmatpush.msra.mxu0 0.0
        %2979 = vmatpush.msra.mxu0 0.0
        %2980 = vmatpush.msra.mxu0 0.0
        %2981 = vmatpush.msra.mxu0 0.0
        %2982 = vmatpush.msra.mxu0 0.0
        %2983 = vmatpush.msra.mxu0 0.0
        %2984 = vmatpush.msra.mxu0 0.0
        %2985 = vmatpush.msra.mxu0 %v2969
        %2986 = vmatpush.msra.mxu0 %v2967
        %2987 = vmatpush.msra.mxu0 %v2965
        %2988 = vmatpush.msra.mxu0 %v2963
        %2989 = vmatpush.msra.mxu0 %v2961
        %2990 = vmatpush.msra.mxu0 %v2959
        %2991 = vmatpush.msra.mxu0 %v2957
        %2992 = vmatpush.msra.mxu0 %v2955
        %2993 = vmatmul.f32.gmra.mxu0 %v2972
        %v2994 = vpop.f32.mrf.mxu0
        %v2995 = vadd.f32 0.0, %v2994
        %2996 = vmatmul.f32.gmra.mxu0 %v2975
        %v2997 = vpop.f32.mrf.mxu0
        %v2998 = vadd.f32 0.0, %v2997
        %2999 = vdwg.mxu0
        %3000 = vmatpush.msra.mxu0 0.0
        %3001 = vmatpush.msra.mxu0 0.0
        %3002 = vmatpush.msra.mxu0 0.0
        %3003 = vmatpush.msra.mxu0 0.0
        %3004 = vmatpush.msra.mxu0 0.0
        %3005 = vmatpush.msra.mxu0 0.0
        %3006 = vmatpush.msra.mxu0 0.0
        %3007 = vmatpush.msra.mxu0 0.0
        %3008 = vmatpush.msra.mxu0 %v2970
        %3009 = vmatpush.msra.mxu0 %v2968
        %3010 = vmatpush.msra.mxu0 %v2966
        %3011 = vmatpush.msra.mxu0 %v2964
        %3012 = vmatpush.msra.mxu0 %v2962
        %3013 = vmatpush.msra.mxu0 %v2960
        %3014 = vmatpush.msra.mxu0 %v2958
        %3015 = vmatpush.msra.mxu0 %v2956
        %3016 = vmatmul.f32.gmra.mxu0 %v2972
        %v3017 = vpop.f32.mrf.mxu0
        %v3018 = vadd.f32 0.0, %v3017
        %3019 = vmatmul.f32.gmra.mxu0 %v2975
        %v3020 = vpop.f32.mrf.mxu0
        %v3021 = vadd.f32 0.0, %v3020
        %3022 = vdwg.mxu0
        %v3023 = vadd.f32 %v2950, %v2995
        %v3024 = vadd.f32 %v2951, %v3018
        %v3025 = vadd.f32 %v2952, %v2998
        %v3026 = vadd.f32 %v2953, %v3021
        %s3027 = scalar_lea.vmem [#allocation10], 512
        %v3028 = vld [vmem:[%s3027] sm:$0xff]
        %v3029 = vld [vmem:[%s3027 + $0x8] sm:$0xff]
        %v3030 = vld [vmem:[%s3027 + $0x10] sm:$0xff]
        %v3031 = vld [vmem:[%s3027 + $0x18] sm:$0xff]
        %v3032 = vld [vmem:[%s3027 + $0x20] sm:$0xff]
        %v3033 = vld [vmem:[%s3027 + $0x28] sm:$0xff]
        %v3034 = vld [vmem:[%s3027 + $0x30] sm:$0xff]
        %v3035 = vld [vmem:[%s3027 + $0x38] sm:$0xff]
        %v3036 = vld [vmem:[%s3027 + $0x40] sm:$0xff]
        %v3037 = vld [vmem:[%s3027 + $0x48] sm:$0xff]
        %v3038 = vld [vmem:[%s3027 + $0x50] sm:$0xff]
        %v3039 = vld [vmem:[%s3027 + $0x58] sm:$0xff]
        %v3040 = vld [vmem:[%s3027 + $0x60] sm:$0xff]
        %v3041 = vld [vmem:[%s3027 + $0x68] sm:$0xff]
        %v3042 = vld [vmem:[%s3027 + $0x70] sm:$0xff]
        %v3043 = vld [vmem:[%s3027 + $0x78] sm:$0xff]
        %v3045 = vsel %vm2776, %v2672, 0
        %v3048 = vsel %vm2776, %v2675, 0
        %3050 = vmatpush.msra.mxu0 0.0
        %3051 = vmatpush.msra.mxu0 0.0
        %3052 = vmatpush.msra.mxu0 0.0
        %3053 = vmatpush.msra.mxu0 0.0
        %3054 = vmatpush.msra.mxu0 0.0
        %3055 = vmatpush.msra.mxu0 0.0
        %3056 = vmatpush.msra.mxu0 0.0
        %3057 = vmatpush.msra.mxu0 0.0
        %3058 = vmatpush.msra.mxu0 %v3042
        %3059 = vmatpush.msra.mxu0 %v3040
        %3060 = vmatpush.msra.mxu0 %v3038
        %3061 = vmatpush.msra.mxu0 %v3036
        %3062 = vmatpush.msra.mxu0 %v3034
        %3063 = vmatpush.msra.mxu0 %v3032
        %3064 = vmatpush.msra.mxu0 %v3030
        %3065 = vmatpush.msra.mxu0 %v3028
        %3066 = vmatmul.f32.gmra.mxu0 %v3045
        %v3067 = vpop.f32.mrf.mxu0
        %v3068 = vadd.f32 0.0, %v3067
        %3069 = vmatmul.f32.gmra.mxu0 %v3048
        %v3070 = vpop.f32.mrf.mxu0
        %v3071 = vadd.f32 0.0, %v3070
        %3072 = vdwg.mxu0
        %3073 = vmatpush.msra.mxu0 0.0
        %3074 = vmatpush.msra.mxu0 0.0
        %3075 = vmatpush.msra.mxu0 0.0
        %3076 = vmatpush.msra.mxu0 0.0
        %3077 = vmatpush.msra.mxu0 0.0
        %3078 = vmatpush.msra.mxu0 0.0
        %3079 = vmatpush.msra.mxu0 0.0
        %3080 = vmatpush.msra.mxu0 0.0
        %3081 = vmatpush.msra.mxu0 %v3043
        %3082 = vmatpush.msra.mxu0 %v3041
        %3083 = vmatpush.msra.mxu0 %v3039
        %3084 = vmatpush.msra.mxu0 %v3037
        %3085 = vmatpush.msra.mxu0 %v3035
        %3086 = vmatpush.msra.mxu0 %v3033
        %3087 = vmatpush.msra.mxu0 %v3031
        %3088 = vmatpush.msra.mxu0 %v3029
        %3089 = vmatmul.f32.gmra.mxu0 %v3045
        %v3090 = vpop.f32.mrf.mxu0
        %v3091 = vadd.f32 0.0, %v3090
        %3092 = vmatmul.f32.gmra.mxu0 %v3048
        %v3093 = vpop.f32.mrf.mxu0
        %v3094 = vadd.f32 0.0, %v3093
        %3095 = vdwg.mxu0
        %v3096 = vadd.f32 %v3023, %v3068
        %v3097 = vadd.f32 %v3024, %v3091
        %v3098 = vadd.f32 %v3025, %v3071
        %v3099 = vadd.f32 %v3026, %v3094
        %s3100 = scalar_lea.vmem [#allocation10], 640
        %v3101 = vld [vmem:[%s3100] sm:$0xff]
        %v3102 = vld [vmem:[%s3100 + $0x8] sm:$0xff]
        %v3103 = vld [vmem:[%s3100 + $0x10] sm:$0xff]
        %v3104 = vld [vmem:[%s3100 + $0x18] sm:$0xff]
        %v3105 = vld [vmem:[%s3100 + $0x20] sm:$0xff]
        %v3106 = vld [vmem:[%s3100 + $0x28] sm:$0xff]
        %v3107 = vld [vmem:[%s3100 + $0x30] sm:$0xff]
        %v3108 = vld [vmem:[%s3100 + $0x38] sm:$0xff]
        %v3109 = vld [vmem:[%s3100 + $0x40] sm:$0xff]
        %v3110 = vld [vmem:[%s3100 + $0x48] sm:$0xff]
        %v3111 = vld [vmem:[%s3100 + $0x50] sm:$0xff]
        %v3112 = vld [vmem:[%s3100 + $0x58] sm:$0xff]
        %v3113 = vld [vmem:[%s3100 + $0x60] sm:$0xff]
        %v3114 = vld [vmem:[%s3100 + $0x68] sm:$0xff]
        %v3115 = vld [vmem:[%s3100 + $0x70] sm:$0xff]
        %v3116 = vld [vmem:[%s3100 + $0x78] sm:$0xff]
        %v3118 = vsel %vm2776, %v2678, 0
        %v3121 = vsel %vm2776, %v2681, 0
        %3123 = vmatpush.msra.mxu0 0.0
        %3124 = vmatpush.msra.mxu0 0.0
        %3125 = vmatpush.msra.mxu0 0.0
        %3126 = vmatpush.msra.mxu0 0.0
        %3127 = vmatpush.msra.mxu0 0.0
        %3128 = vmatpush.msra.mxu0 0.0
        %3129 = vmatpush.msra.mxu0 0.0
        %3130 = vmatpush.msra.mxu0 0.0
        %3131 = vmatpush.msra.mxu0 %v3115
        %3132 = vmatpush.msra.mxu0 %v3113
        %3133 = vmatpush.msra.mxu0 %v3111
        %3134 = vmatpush.msra.mxu0 %v3109
        %3135 = vmatpush.msra.mxu0 %v3107
        %3136 = vmatpush.msra.mxu0 %v3105
        %3137 = vmatpush.msra.mxu0 %v3103
        %3138 = vmatpush.msra.mxu0 %v3101
        %3139 = vmatmul.f32.gmra.mxu0 %v3118
        %v3140 = vpop.f32.mrf.mxu0
        %v3141 = vadd.f32 0.0, %v3140
        %3142 = vmatmul.f32.gmra.mxu0 %v3121
        %v3143 = vpop.f32.mrf.mxu0
        %v3144 = vadd.f32 0.0, %v3143
        %3145 = vdwg.mxu0
        %3146 = vmatpush.msra.mxu0 0.0
        %3147 = vmatpush.msra.mxu0 0.0
        %3148 = vmatpush.msra.mxu0 0.0
        %3149 = vmatpush.msra.mxu0 0.0
        %3150 = vmatpush.msra.mxu0 0.0
        %3151 = vmatpush.msra.mxu0 0.0
        %3152 = vmatpush.msra.mxu0 0.0
        %3153 = vmatpush.msra.mxu0 0.0
        %3154 = vmatpush.msra.mxu0 %v3116
        %3155 = vmatpush.msra.mxu0 %v3114
        %3156 = vmatpush.msra.mxu0 %v3112
        %3157 = vmatpush.msra.mxu0 %v3110
        %3158 = vmatpush.msra.mxu0 %v3108
        %3159 = vmatpush.msra.mxu0 %v3106
        %3160 = vmatpush.msra.mxu0 %v3104
        %3161 = vmatpush.msra.mxu0 %v3102
        %3162 = vmatmul.f32.gmra.mxu0 %v3118
        %v3163 = vpop.f32.mrf.mxu0
        %v3164 = vadd.f32 0.0, %v3163
        %3165 = vmatmul.f32.gmra.mxu0 %v3121
        %v3166 = vpop.f32.mrf.mxu0
        %v3167 = vadd.f32 0.0, %v3166
        %3168 = vdwg.mxu0
        %v3169 = vadd.f32 %v3096, %v3141
        %v3170 = vadd.f32 %v3097, %v3164
        %v3171 = vadd.f32 %v3098, %v3144
        %v3172 = vadd.f32 %v3099, %v3167
        %s3173 = scalar_lea.vmem [#allocation10], 768
        %v3174 = vld [vmem:[%s3173] sm:$0xff]
        %v3175 = vld [vmem:[%s3173 + $0x8] sm:$0xff]
        %v3176 = vld [vmem:[%s3173 + $0x10] sm:$0xff]
        %v3177 = vld [vmem:[%s3173 + $0x18] sm:$0xff]
        %v3178 = vld [vmem:[%s3173 + $0x20] sm:$0xff]
        %v3179 = vld [vmem:[%s3173 + $0x28] sm:$0xff]
        %v3180 = vld [vmem:[%s3173 + $0x30] sm:$0xff]
        %v3181 = vld [vmem:[%s3173 + $0x38] sm:$0xff]
        %v3182 = vld [vmem:[%s3173 + $0x40] sm:$0xff]
        %v3183 = vld [vmem:[%s3173 + $0x48] sm:$0xff]
        %v3184 = vld [vmem:[%s3173 + $0x50] sm:$0xff]
        %v3185 = vld [vmem:[%s3173 + $0x58] sm:$0xff]
        %v3186 = vld [vmem:[%s3173 + $0x60] sm:$0xff]
        %v3187 = vld [vmem:[%s3173 + $0x68] sm:$0xff]
        %v3188 = vld [vmem:[%s3173 + $0x70] sm:$0xff]
        %v3189 = vld [vmem:[%s3173 + $0x78] sm:$0xff]
        %v3191 = vsel %vm2776, %v2684, 0
        %v3194 = vsel %vm2776, %v2687, 0
        %3196 = vmatpush.msra.mxu0 0.0
        %3197 = vmatpush.msra.mxu0 0.0
        %3198 = vmatpush.msra.mxu0 0.0
        %3199 = vmatpush.msra.mxu0 0.0
        %3200 = vmatpush.msra.mxu0 0.0
        %3201 = vmatpush.msra.mxu0 0.0
        %3202 = vmatpush.msra.mxu0 0.0
        %3203 = vmatpush.msra.mxu0 0.0
        %3204 = vmatpush.msra.mxu0 %v3188
        %3205 = vmatpush.msra.mxu0 %v3186
        %3206 = vmatpush.msra.mxu0 %v3184
        %3207 = vmatpush.msra.mxu0 %v3182
        %3208 = vmatpush.msra.mxu0 %v3180
        %3209 = vmatpush.msra.mxu0 %v3178
        %3210 = vmatpush.msra.mxu0 %v3176
        %3211 = vmatpush.msra.mxu0 %v3174
        %3212 = vmatmul.f32.gmra.mxu0 %v3191
        %v3213 = vpop.f32.mrf.mxu0
        %v3214 = vadd.f32 0.0, %v3213
        %3215 = vmatmul.f32.gmra.mxu0 %v3194
        %v3216 = vpop.f32.mrf.mxu0
        %v3217 = vadd.f32 0.0, %v3216
        %3218 = vdwg.mxu0
        %3219 = vmatpush.msra.mxu0 0.0
        %3220 = vmatpush.msra.mxu0 0.0
        %3221 = vmatpush.msra.mxu0 0.0
        %3222 = vmatpush.msra.mxu0 0.0
        %3223 = vmatpush.msra.mxu0 0.0
        %3224 = vmatpush.msra.mxu0 0.0
        %3225 = vmatpush.msra.mxu0 0.0
        %3226 = vmatpush.msra.mxu0 0.0
        %3227 = vmatpush.msra.mxu0 %v3189
        %3228 = vmatpush.msra.mxu0 %v3187
        %3229 = vmatpush.msra.mxu0 %v3185
        %3230 = vmatpush.msra.mxu0 %v3183
        %3231 = vmatpush.msra.mxu0 %v3181
        %3232 = vmatpush.msra.mxu0 %v3179
        %3233 = vmatpush.msra.mxu0 %v3177
        %3234 = vmatpush.msra.mxu0 %v3175
        %3235 = vmatmul.f32.gmra.mxu0 %v3191
        %v3236 = vpop.f32.mrf.mxu0
        %v3237 = vadd.f32 0.0, %v3236
        %3238 = vmatmul.f32.gmra.mxu0 %v3194
        %v3239 = vpop.f32.mrf.mxu0
        %v3240 = vadd.f32 0.0, %v3239
        %3241 = vdwg.mxu0
        %v3242 = vadd.f32 %v3169, %v3214
        %v3243 = vadd.f32 %v3170, %v3237
        %v3244 = vadd.f32 %v3171, %v3217
        %v3245 = vadd.f32 %v3172, %v3240
        %s3246 = scalar_lea.vmem [#allocation10], 896
        %v3247 = vld [vmem:[%s3246] sm:$0xff]
        %v3248 = vld [vmem:[%s3246 + $0x8] sm:$0xff]
        %v3249 = vld [vmem:[%s3246 + $0x10] sm:$0xff]
        %v3250 = vld [vmem:[%s3246 + $0x18] sm:$0xff]
        %v3251 = vld [vmem:[%s3246 + $0x20] sm:$0xff]
        %v3252 = vld [vmem:[%s3246 + $0x28] sm:$0xff]
        %v3253 = vld [vmem:[%s3246 + $0x30] sm:$0xff]
        %v3254 = vld [vmem:[%s3246 + $0x38] sm:$0xff]
        %v3255 = vld [vmem:[%s3246 + $0x40] sm:$0xff]
        %v3256 = vld [vmem:[%s3246 + $0x48] sm:$0xff]
        %v3257 = vld [vmem:[%s3246 + $0x50] sm:$0xff]
        %v3258 = vld [vmem:[%s3246 + $0x58] sm:$0xff]
        %v3259 = vld [vmem:[%s3246 + $0x60] sm:$0xff]
        %v3260 = vld [vmem:[%s3246 + $0x68] sm:$0xff]
        %v3261 = vld [vmem:[%s3246 + $0x70] sm:$0xff]
        %v3262 = vld [vmem:[%s3246 + $0x78] sm:$0xff]
        %v3264 = vsel %vm2776, %v2690, 0
        %v3267 = vsel %vm2776, %v2693, 0
        %3269 = vmatpush.msra.mxu0 0.0
        %3270 = vmatpush.msra.mxu0 0.0
        %3271 = vmatpush.msra.mxu0 0.0
        %3272 = vmatpush.msra.mxu0 0.0
        %3273 = vmatpush.msra.mxu0 0.0
        %3274 = vmatpush.msra.mxu0 0.0
        %3275 = vmatpush.msra.mxu0 0.0
        %3276 = vmatpush.msra.mxu0 0.0
        %3277 = vmatpush.msra.mxu0 %v3261
        %3278 = vmatpush.msra.mxu0 %v3259
        %3279 = vmatpush.msra.mxu0 %v3257
        %3280 = vmatpush.msra.mxu0 %v3255
        %3281 = vmatpush.msra.mxu0 %v3253
        %3282 = vmatpush.msra.mxu0 %v3251
        %3283 = vmatpush.msra.mxu0 %v3249
        %3284 = vmatpush.msra.mxu0 %v3247
        %3285 = vmatmul.f32.gmra.mxu0 %v3264
        %v3286 = vpop.f32.mrf.mxu0
        %v3287 = vadd.f32 0.0, %v3286
        %3288 = vmatmul.f32.gmra.mxu0 %v3267
        %v3289 = vpop.f32.mrf.mxu0
        %v3290 = vadd.f32 0.0, %v3289
        %3291 = vdwg.mxu0
        %3292 = vmatpush.msra.mxu0 0.0
        %3293 = vmatpush.msra.mxu0 0.0
        %3294 = vmatpush.msra.mxu0 0.0
        %3295 = vmatpush.msra.mxu0 0.0
        %3296 = vmatpush.msra.mxu0 0.0
        %3297 = vmatpush.msra.mxu0 0.0
        %3298 = vmatpush.msra.mxu0 0.0
        %3299 = vmatpush.msra.mxu0 0.0
        %3300 = vmatpush.msra.mxu0 %v3262
        %3301 = vmatpush.msra.mxu0 %v3260
        %3302 = vmatpush.msra.mxu0 %v3258
        %3303 = vmatpush.msra.mxu0 %v3256
        %3304 = vmatpush.msra.mxu0 %v3254
        %3305 = vmatpush.msra.mxu0 %v3252
        %3306 = vmatpush.msra.mxu0 %v3250
        %3307 = vmatpush.msra.mxu0 %v3248
        %3308 = vmatmul.f32.gmra.mxu0 %v3264
        %v3309 = vpop.f32.mrf.mxu0
        %v3310 = vadd.f32 0.0, %v3309
        %3311 = vmatmul.f32.gmra.mxu0 %v3267
        %v3312 = vpop.f32.mrf.mxu0
        %v3313 = vadd.f32 0.0, %v3312
        %3314 = vdwg.mxu0
        %v3315 = vadd.f32 %v3242, %v3287
        %v3316 = vadd.f32 %v3243, %v3310
        %v3317 = vadd.f32 %v3244, %v3290
        %v3318 = vadd.f32 %v3245, %v3313
        %s3319 = scalar_lea.vmem [#allocation10], 1024
        %v3320 = vld [vmem:[%s3319] sm:$0xff]
        %v3321 = vld [vmem:[%s3319 + $0x8] sm:$0xff]
        %v3322 = vld [vmem:[%s3319 + $0x10] sm:$0xff]
        %v3323 = vld [vmem:[%s3319 + $0x18] sm:$0xff]
        %v3324 = vld [vmem:[%s3319 + $0x20] sm:$0xff]
        %v3325 = vld [vmem:[%s3319 + $0x28] sm:$0xff]
        %v3326 = vld [vmem:[%s3319 + $0x30] sm:$0xff]
        %v3327 = vld [vmem:[%s3319 + $0x38] sm:$0xff]
        %v3328 = vld [vmem:[%s3319 + $0x40] sm:$0xff]
        %v3329 = vld [vmem:[%s3319 + $0x48] sm:$0xff]
        %v3330 = vld [vmem:[%s3319 + $0x50] sm:$0xff]
        %v3331 = vld [vmem:[%s3319 + $0x58] sm:$0xff]
        %v3332 = vld [vmem:[%s3319 + $0x60] sm:$0xff]
        %v3333 = vld [vmem:[%s3319 + $0x68] sm:$0xff]
        %v3334 = vld [vmem:[%s3319 + $0x70] sm:$0xff]
        %v3335 = vld [vmem:[%s3319 + $0x78] sm:$0xff]
        %v3337 = vsel %vm2776, %v2696, 0
        %v3340 = vsel %vm2776, %v2699, 0
        %3342 = vmatpush.msra.mxu0 0.0
        %3343 = vmatpush.msra.mxu0 0.0
        %3344 = vmatpush.msra.mxu0 0.0
        %3345 = vmatpush.msra.mxu0 0.0
        %3346 = vmatpush.msra.mxu0 0.0
        %3347 = vmatpush.msra.mxu0 0.0
        %3348 = vmatpush.msra.mxu0 0.0
        %3349 = vmatpush.msra.mxu0 0.0
        %3350 = vmatpush.msra.mxu0 %v3334
        %3351 = vmatpush.msra.mxu0 %v3332
        %3352 = vmatpush.msra.mxu0 %v3330
        %3353 = vmatpush.msra.mxu0 %v3328
        %3354 = vmatpush.msra.mxu0 %v3326
        %3355 = vmatpush.msra.mxu0 %v3324
        %3356 = vmatpush.msra.mxu0 %v3322
        %3357 = vmatpush.msra.mxu0 %v3320
        %3358 = vmatmul.f32.gmra.mxu0 %v3337
        %v3359 = vpop.f32.mrf.mxu0
        %v3360 = vadd.f32 0.0, %v3359
        %3361 = vmatmul.f32.gmra.mxu0 %v3340
        %v3362 = vpop.f32.mrf.mxu0
        %v3363 = vadd.f32 0.0, %v3362
        %3364 = vdwg.mxu0
        %3365 = vmatpush.msra.mxu0 0.0
        %3366 = vmatpush.msra.mxu0 0.0
        %3367 = vmatpush.msra.mxu0 0.0
        %3368 = vmatpush.msra.mxu0 0.0
        %3369 = vmatpush.msra.mxu0 0.0
        %3370 = vmatpush.msra.mxu0 0.0
        %3371 = vmatpush.msra.mxu0 0.0
        %3372 = vmatpush.msra.mxu0 0.0
        %3373 = vmatpush.msra.mxu0 %v3335
        %3374 = vmatpush.msra.mxu0 %v3333
        %3375 = vmatpush.msra.mxu0 %v3331
        %3376 = vmatpush.msra.mxu0 %v3329
        %3377 = vmatpush.msra.mxu0 %v3327
        %3378 = vmatpush.msra.mxu0 %v3325
        %3379 = vmatpush.msra.mxu0 %v3323
        %3380 = vmatpush.msra.mxu0 %v3321
        %3381 = vmatmul.f32.gmra.mxu0 %v3337
        %v3382 = vpop.f32.mrf.mxu0
        %v3383 = vadd.f32 0.0, %v3382
        %3384 = vmatmul.f32.gmra.mxu0 %v3340
        %v3385 = vpop.f32.mrf.mxu0
        %v3386 = vadd.f32 0.0, %v3385
        %3387 = vdwg.mxu0
        %v3388 = vadd.f32 %v3315, %v3360
        %v3389 = vadd.f32 %v3316, %v3383
        %v3390 = vadd.f32 %v3317, %v3363
        %v3391 = vadd.f32 %v3318, %v3386
        %s3392 = scalar_lea.vmem [#allocation10], 1152
        %v3393 = vld [vmem:[%s3392] sm:$0xff]
        %v3394 = vld [vmem:[%s3392 + $0x8] sm:$0xff]
        %v3395 = vld [vmem:[%s3392 + $0x10] sm:$0xff]
        %v3396 = vld [vmem:[%s3392 + $0x18] sm:$0xff]
        %v3397 = vld [vmem:[%s3392 + $0x20] sm:$0xff]
        %v3398 = vld [vmem:[%s3392 + $0x28] sm:$0xff]
        %v3399 = vld [vmem:[%s3392 + $0x30] sm:$0xff]
        %v3400 = vld [vmem:[%s3392 + $0x38] sm:$0xff]
        %v3401 = vld [vmem:[%s3392 + $0x40] sm:$0xff]
        %v3402 = vld [vmem:[%s3392 + $0x48] sm:$0xff]
        %v3403 = vld [vmem:[%s3392 + $0x50] sm:$0xff]
        %v3404 = vld [vmem:[%s3392 + $0x58] sm:$0xff]
        %v3405 = vld [vmem:[%s3392 + $0x60] sm:$0xff]
        %v3406 = vld [vmem:[%s3392 + $0x68] sm:$0xff]
        %v3407 = vld [vmem:[%s3392 + $0x70] sm:$0xff]
        %v3408 = vld [vmem:[%s3392 + $0x78] sm:$0xff]
        %v3410 = vsel %vm2776, %v2702, 0
        %v3413 = vsel %vm2776, %v2705, 0
        %3415 = vmatpush.msra.mxu0 0.0
        %3416 = vmatpush.msra.mxu0 0.0
        %3417 = vmatpush.msra.mxu0 0.0
        %3418 = vmatpush.msra.mxu0 0.0
        %3419 = vmatpush.msra.mxu0 0.0
        %3420 = vmatpush.msra.mxu0 0.0
        %3421 = vmatpush.msra.mxu0 0.0
        %3422 = vmatpush.msra.mxu0 0.0
        %3423 = vmatpush.msra.mxu0 %v3407
        %3424 = vmatpush.msra.mxu0 %v3405
        %3425 = vmatpush.msra.mxu0 %v3403
        %3426 = vmatpush.msra.mxu0 %v3401
        %3427 = vmatpush.msra.mxu0 %v3399
        %3428 = vmatpush.msra.mxu0 %v3397
        %3429 = vmatpush.msra.mxu0 %v3395
        %3430 = vmatpush.msra.mxu0 %v3393
        %3431 = vmatmul.f32.gmra.mxu0 %v3410
        %v3432 = vpop.f32.mrf.mxu0
        %v3433 = vadd.f32 0.0, %v3432
        %3434 = vmatmul.f32.gmra.mxu0 %v3413
        %v3435 = vpop.f32.mrf.mxu0
        %v3436 = vadd.f32 0.0, %v3435
        %3437 = vdwg.mxu0
        %3438 = vmatpush.msra.mxu0 0.0
        %3439 = vmatpush.msra.mxu0 0.0
        %3440 = vmatpush.msra.mxu0 0.0
        %3441 = vmatpush.msra.mxu0 0.0
        %3442 = vmatpush.msra.mxu0 0.0
        %3443 = vmatpush.msra.mxu0 0.0
        %3444 = vmatpush.msra.mxu0 0.0
        %3445 = vmatpush.msra.mxu0 0.0
        %3446 = vmatpush.msra.mxu0 %v3408
        %3447 = vmatpush.msra.mxu0 %v3406
        %3448 = vmatpush.msra.mxu0 %v3404
        %3449 = vmatpush.msra.mxu0 %v3402
        %3450 = vmatpush.msra.mxu0 %v3400
        %3451 = vmatpush.msra.mxu0 %v3398
        %3452 = vmatpush.msra.mxu0 %v3396
        %3453 = vmatpush.msra.mxu0 %v3394
        %3454 = vmatmul.f32.gmra.mxu0 %v3410
        %v3455 = vpop.f32.mrf.mxu0
        %v3456 = vadd.f32 0.0, %v3455
        %3457 = vmatmul.f32.gmra.mxu0 %v3413
        %v3458 = vpop.f32.mrf.mxu0
        %v3459 = vadd.f32 0.0, %v3458
        %3460 = vdwg.mxu0
        %v3461 = vadd.f32 %v3388, %v3433
        %v3462 = vadd.f32 %v3389, %v3456
        %v3463 = vadd.f32 %v3390, %v3436
        %v3464 = vadd.f32 %v3391, %v3459
        %s3465 = scalar_lea.vmem [#allocation10], 1280
        %v3466 = vld [vmem:[%s3465] sm:$0xff]
        %v3467 = vld [vmem:[%s3465 + $0x8] sm:$0xff]
        %v3468 = vld [vmem:[%s3465 + $0x10] sm:$0xff]
        %v3469 = vld [vmem:[%s3465 + $0x18] sm:$0xff]
        %v3470 = vld [vmem:[%s3465 + $0x20] sm:$0xff]
        %v3471 = vld [vmem:[%s3465 + $0x28] sm:$0xff]
        %v3472 = vld [vmem:[%s3465 + $0x30] sm:$0xff]
        %v3473 = vld [vmem:[%s3465 + $0x38] sm:$0xff]
        %v3474 = vld [vmem:[%s3465 + $0x40] sm:$0xff]
        %v3475 = vld [vmem:[%s3465 + $0x48] sm:$0xff]
        %v3476 = vld [vmem:[%s3465 + $0x50] sm:$0xff]
        %v3477 = vld [vmem:[%s3465 + $0x58] sm:$0xff]
        %v3478 = vld [vmem:[%s3465 + $0x60] sm:$0xff]
        %v3479 = vld [vmem:[%s3465 + $0x68] sm:$0xff]
        %v3480 = vld [vmem:[%s3465 + $0x70] sm:$0xff]
        %v3481 = vld [vmem:[%s3465 + $0x78] sm:$0xff]
        %v3483 = vsel %vm2776, %v2708, 0
        %v3486 = vsel %vm2776, %v2711, 0
        %3488 = vmatpush.msra.mxu0 0.0
        %3489 = vmatpush.msra.mxu0 0.0
        %3490 = vmatpush.msra.mxu0 0.0
        %3491 = vmatpush.msra.mxu0 0.0
        %3492 = vmatpush.msra.mxu0 0.0
        %3493 = vmatpush.msra.mxu0 0.0
        %3494 = vmatpush.msra.mxu0 0.0
        %3495 = vmatpush.msra.mxu0 0.0
        %3496 = vmatpush.msra.mxu0 %v3480
        %3497 = vmatpush.msra.mxu0 %v3478
        %3498 = vmatpush.msra.mxu0 %v3476
        %3499 = vmatpush.msra.mxu0 %v3474
        %3500 = vmatpush.msra.mxu0 %v3472
        %3501 = vmatpush.msra.mxu0 %v3470
        %3502 = vmatpush.msra.mxu0 %v3468
        %3503 = vmatpush.msra.mxu0 %v3466
        %3504 = vmatmul.f32.gmra.mxu0 %v3483
        %v3505 = vpop.f32.mrf.mxu0
        %v3506 = vadd.f32 0.0, %v3505
        %3507 = vmatmul.f32.gmra.mxu0 %v3486
        %v3508 = vpop.f32.mrf.mxu0
        %v3509 = vadd.f32 0.0, %v3508
        %3510 = vdwg.mxu0
        %3511 = vmatpush.msra.mxu0 0.0
        %3512 = vmatpush.msra.mxu0 0.0
        %3513 = vmatpush.msra.mxu0 0.0
        %3514 = vmatpush.msra.mxu0 0.0
        %3515 = vmatpush.msra.mxu0 0.0
        %3516 = vmatpush.msra.mxu0 0.0
        %3517 = vmatpush.msra.mxu0 0.0
        %3518 = vmatpush.msra.mxu0 0.0
        %3519 = vmatpush.msra.mxu0 %v3481
        %3520 = vmatpush.msra.mxu0 %v3479
        %3521 = vmatpush.msra.mxu0 %v3477
        %3522 = vmatpush.msra.mxu0 %v3475
        %3523 = vmatpush.msra.mxu0 %v3473
        %3524 = vmatpush.msra.mxu0 %v3471
        %3525 = vmatpush.msra.mxu0 %v3469
        %3526 = vmatpush.msra.mxu0 %v3467
        %3527 = vmatmul.f32.gmra.mxu0 %v3483
        %v3528 = vpop.f32.mrf.mxu0
        %v3529 = vadd.f32 0.0, %v3528
        %3530 = vmatmul.f32.gmra.mxu0 %v3486
        %v3531 = vpop.f32.mrf.mxu0
        %v3532 = vadd.f32 0.0, %v3531
        %3533 = vdwg.mxu0
        %v3534 = vadd.f32 %v3461, %v3506
        %v3535 = vadd.f32 %v3462, %v3529
        %v3536 = vadd.f32 %v3463, %v3509
        %v3537 = vadd.f32 %v3464, %v3532
        %s3538 = scalar_lea.vmem [#allocation10], 1408
        %v3539 = vld [vmem:[%s3538] sm:$0xff]
        %v3540 = vld [vmem:[%s3538 + $0x8] sm:$0xff]
        %v3541 = vld [vmem:[%s3538 + $0x10] sm:$0xff]
        %v3542 = vld [vmem:[%s3538 + $0x18] sm:$0xff]
        %v3543 = vld [vmem:[%s3538 + $0x20] sm:$0xff]
        %v3544 = vld [vmem:[%s3538 + $0x28] sm:$0xff]
        %v3545 = vld [vmem:[%s3538 + $0x30] sm:$0xff]
        %v3546 = vld [vmem:[%s3538 + $0x38] sm:$0xff]
        %v3547 = vld [vmem:[%s3538 + $0x40] sm:$0xff]
        %v3548 = vld [vmem:[%s3538 + $0x48] sm:$0xff]
        %v3549 = vld [vmem:[%s3538 + $0x50] sm:$0xff]
        %v3550 = vld [vmem:[%s3538 + $0x58] sm:$0xff]
        %v3551 = vld [vmem:[%s3538 + $0x60] sm:$0xff]
        %v3552 = vld [vmem:[%s3538 + $0x68] sm:$0xff]
        %v3553 = vld [vmem:[%s3538 + $0x70] sm:$0xff]
        %v3554 = vld [vmem:[%s3538 + $0x78] sm:$0xff]
        %v3556 = vsel %vm2776, %v2714, 0
        %v3559 = vsel %vm2776, %v2717, 0
        %3561 = vmatpush.msra.mxu0 0.0
        %3562 = vmatpush.msra.mxu0 0.0
        %3563 = vmatpush.msra.mxu0 0.0
        %3564 = vmatpush.msra.mxu0 0.0
        %3565 = vmatpush.msra.mxu0 0.0
        %3566 = vmatpush.msra.mxu0 0.0
        %3567 = vmatpush.msra.mxu0 0.0
        %3568 = vmatpush.msra.mxu0 0.0
        %3569 = vmatpush.msra.mxu0 %v3553
        %3570 = vmatpush.msra.mxu0 %v3551
        %3571 = vmatpush.msra.mxu0 %v3549
        %3572 = vmatpush.msra.mxu0 %v3547
        %3573 = vmatpush.msra.mxu0 %v3545
        %3574 = vmatpush.msra.mxu0 %v3543
        %3575 = vmatpush.msra.mxu0 %v3541
        %3576 = vmatpush.msra.mxu0 %v3539
        %3577 = vmatmul.f32.gmra.mxu0 %v3556
        %v3578 = vpop.f32.mrf.mxu0
        %v3579 = vadd.f32 0.0, %v3578
        %3580 = vmatmul.f32.gmra.mxu0 %v3559
        %v3581 = vpop.f32.mrf.mxu0
        %v3582 = vadd.f32 0.0, %v3581
        %3583 = vdwg.mxu0
        %3584 = vmatpush.msra.mxu0 0.0
        %3585 = vmatpush.msra.mxu0 0.0
        %3586 = vmatpush.msra.mxu0 0.0
        %3587 = vmatpush.msra.mxu0 0.0
        %3588 = vmatpush.msra.mxu0 0.0
        %3589 = vmatpush.msra.mxu0 0.0
        %3590 = vmatpush.msra.mxu0 0.0
        %3591 = vmatpush.msra.mxu0 0.0
        %3592 = vmatpush.msra.mxu0 %v3554
        %3593 = vmatpush.msra.mxu0 %v3552
        %3594 = vmatpush.msra.mxu0 %v3550
        %3595 = vmatpush.msra.mxu0 %v3548
        %3596 = vmatpush.msra.mxu0 %v3546
        %3597 = vmatpush.msra.mxu0 %v3544
        %3598 = vmatpush.msra.mxu0 %v3542
        %3599 = vmatpush.msra.mxu0 %v3540
        %3600 = vmatmul.f32.gmra.mxu0 %v3556
        %v3601 = vpop.f32.mrf.mxu0
        %v3602 = vadd.f32 0.0, %v3601
        %3603 = vmatmul.f32.gmra.mxu0 %v3559
        %v3604 = vpop.f32.mrf.mxu0
        %v3605 = vadd.f32 0.0, %v3604
        %3606 = vdwg.mxu0
        %v3607 = vadd.f32 %v3534, %v3579
        %v3608 = vadd.f32 %v3535, %v3602
        %v3609 = vadd.f32 %v3536, %v3582
        %v3610 = vadd.f32 %v3537, %v3605
        %s3611 = scalar_lea.vmem [#allocation10], 1536
        %v3612 = vld [vmem:[%s3611] sm:$0xff]
        %v3613 = vld [vmem:[%s3611 + $0x8] sm:$0xff]
        %v3614 = vld [vmem:[%s3611 + $0x10] sm:$0xff]
        %v3615 = vld [vmem:[%s3611 + $0x18] sm:$0xff]
        %v3616 = vld [vmem:[%s3611 + $0x20] sm:$0xff]
        %v3617 = vld [vmem:[%s3611 + $0x28] sm:$0xff]
        %v3618 = vld [vmem:[%s3611 + $0x30] sm:$0xff]
        %v3619 = vld [vmem:[%s3611 + $0x38] sm:$0xff]
        %v3620 = vld [vmem:[%s3611 + $0x40] sm:$0xff]
        %v3621 = vld [vmem:[%s3611 + $0x48] sm:$0xff]
        %v3622 = vld [vmem:[%s3611 + $0x50] sm:$0xff]
        %v3623 = vld [vmem:[%s3611 + $0x58] sm:$0xff]
        %v3624 = vld [vmem:[%s3611 + $0x60] sm:$0xff]
        %v3625 = vld [vmem:[%s3611 + $0x68] sm:$0xff]
        %v3626 = vld [vmem:[%s3611 + $0x70] sm:$0xff]
        %v3627 = vld [vmem:[%s3611 + $0x78] sm:$0xff]
        %v3629 = vsel %vm2776, %v2720, 0
        %v3632 = vsel %vm2776, %v2723, 0
        %3634 = vmatpush.msra.mxu0 0.0
        %3635 = vmatpush.msra.mxu0 0.0
        %3636 = vmatpush.msra.mxu0 0.0
        %3637 = vmatpush.msra.mxu0 0.0
        %3638 = vmatpush.msra.mxu0 0.0
        %3639 = vmatpush.msra.mxu0 0.0
        %3640 = vmatpush.msra.mxu0 0.0
        %3641 = vmatpush.msra.mxu0 0.0
        %3642 = vmatpush.msra.mxu0 %v3626
        %3643 = vmatpush.msra.mxu0 %v3624
        %3644 = vmatpush.msra.mxu0 %v3622
        %3645 = vmatpush.msra.mxu0 %v3620
        %3646 = vmatpush.msra.mxu0 %v3618
        %3647 = vmatpush.msra.mxu0 %v3616
        %3648 = vmatpush.msra.mxu0 %v3614
        %3649 = vmatpush.msra.mxu0 %v3612
        %3650 = vmatmul.f32.gmra.mxu0 %v3629
        %v3651 = vpop.f32.mrf.mxu0
        %v3652 = vadd.f32 0.0, %v3651
        %3653 = vmatmul.f32.gmra.mxu0 %v3632
        %v3654 = vpop.f32.mrf.mxu0
        %v3655 = vadd.f32 0.0, %v3654
        %3656 = vdwg.mxu0
        %3657 = vmatpush.msra.mxu0 0.0
        %3658 = vmatpush.msra.mxu0 0.0
        %3659 = vmatpush.msra.mxu0 0.0
        %3660 = vmatpush.msra.mxu0 0.0
        %3661 = vmatpush.msra.mxu0 0.0
        %3662 = vmatpush.msra.mxu0 0.0
        %3663 = vmatpush.msra.mxu0 0.0
        %3664 = vmatpush.msra.mxu0 0.0
        %3665 = vmatpush.msra.mxu0 %v3627
        %3666 = vmatpush.msra.mxu0 %v3625
        %3667 = vmatpush.msra.mxu0 %v3623
        %3668 = vmatpush.msra.mxu0 %v3621
        %3669 = vmatpush.msra.mxu0 %v3619
        %3670 = vmatpush.msra.mxu0 %v3617
        %3671 = vmatpush.msra.mxu0 %v3615
        %3672 = vmatpush.msra.mxu0 %v3613
        %3673 = vmatmul.f32.gmra.mxu0 %v3629
        %v3674 = vpop.f32.mrf.mxu0
        %v3675 = vadd.f32 0.0, %v3674
        %3676 = vmatmul.f32.gmra.mxu0 %v3632
        %v3677 = vpop.f32.mrf.mxu0
        %v3678 = vadd.f32 0.0, %v3677
        %3679 = vdwg.mxu0
        %v3680 = vadd.f32 %v3607, %v3652
        %v3681 = vadd.f32 %v3608, %v3675
        %v3682 = vadd.f32 %v3609, %v3655
        %v3683 = vadd.f32 %v3610, %v3678
        %s3684 = scalar_lea.vmem [#allocation10], 1664
        %v3685 = vld [vmem:[%s3684] sm:$0xff]
        %v3686 = vld [vmem:[%s3684 + $0x8] sm:$0xff]
        %v3687 = vld [vmem:[%s3684 + $0x10] sm:$0xff]
        %v3688 = vld [vmem:[%s3684 + $0x18] sm:$0xff]
        %v3689 = vld [vmem:[%s3684 + $0x20] sm:$0xff]
        %v3690 = vld [vmem:[%s3684 + $0x28] sm:$0xff]
        %v3691 = vld [vmem:[%s3684 + $0x30] sm:$0xff]
        %v3692 = vld [vmem:[%s3684 + $0x38] sm:$0xff]
        %v3693 = vld [vmem:[%s3684 + $0x40] sm:$0xff]
        %v3694 = vld [vmem:[%s3684 + $0x48] sm:$0xff]
        %v3695 = vld [vmem:[%s3684 + $0x50] sm:$0xff]
        %v3696 = vld [vmem:[%s3684 + $0x58] sm:$0xff]
        %v3697 = vld [vmem:[%s3684 + $0x60] sm:$0xff]
        %v3698 = vld [vmem:[%s3684 + $0x68] sm:$0xff]
        %v3699 = vld [vmem:[%s3684 + $0x70] sm:$0xff]
        %v3700 = vld [vmem:[%s3684 + $0x78] sm:$0xff]
        %v3702 = vsel %vm2776, %v2726, 0
        %v3705 = vsel %vm2776, %v2729, 0
        %3707 = vmatpush.msra.mxu0 0.0
        %3708 = vmatpush.msra.mxu0 0.0
        %3709 = vmatpush.msra.mxu0 0.0
        %3710 = vmatpush.msra.mxu0 0.0
        %3711 = vmatpush.msra.mxu0 0.0
        %3712 = vmatpush.msra.mxu0 0.0
        %3713 = vmatpush.msra.mxu0 0.0
        %3714 = vmatpush.msra.mxu0 0.0
        %3715 = vmatpush.msra.mxu0 %v3699
        %3716 = vmatpush.msra.mxu0 %v3697
        %3717 = vmatpush.msra.mxu0 %v3695
        %3718 = vmatpush.msra.mxu0 %v3693
        %3719 = vmatpush.msra.mxu0 %v3691
        %3720 = vmatpush.msra.mxu0 %v3689
        %3721 = vmatpush.msra.mxu0 %v3687
        %3722 = vmatpush.msra.mxu0 %v3685
        %3723 = vmatmul.f32.gmra.mxu0 %v3702
        %v3724 = vpop.f32.mrf.mxu0
        %v3725 = vadd.f32 0.0, %v3724
        %3726 = vmatmul.f32.gmra.mxu0 %v3705
        %v3727 = vpop.f32.mrf.mxu0
        %v3728 = vadd.f32 0.0, %v3727
        %3729 = vdwg.mxu0
        %3730 = vmatpush.msra.mxu0 0.0
        %3731 = vmatpush.msra.mxu0 0.0
        %3732 = vmatpush.msra.mxu0 0.0
        %3733 = vmatpush.msra.mxu0 0.0
        %3734 = vmatpush.msra.mxu0 0.0
        %3735 = vmatpush.msra.mxu0 0.0
        %3736 = vmatpush.msra.mxu0 0.0
        %3737 = vmatpush.msra.mxu0 0.0
        %3738 = vmatpush.msra.mxu0 %v3700
        %3739 = vmatpush.msra.mxu0 %v3698
        %3740 = vmatpush.msra.mxu0 %v3696
        %3741 = vmatpush.msra.mxu0 %v3694
        %3742 = vmatpush.msra.mxu0 %v3692
        %3743 = vmatpush.msra.mxu0 %v3690
        %3744 = vmatpush.msra.mxu0 %v3688
        %3745 = vmatpush.msra.mxu0 %v3686
        %3746 = vmatmul.f32.gmra.mxu0 %v3702
        %v3747 = vpop.f32.mrf.mxu0
        %v3748 = vadd.f32 0.0, %v3747
        %3749 = vmatmul.f32.gmra.mxu0 %v3705
        %v3750 = vpop.f32.mrf.mxu0
        %v3751 = vadd.f32 0.0, %v3750
        %3752 = vdwg.mxu0
        %v3753 = vadd.f32 %v3680, %v3725
        %v3754 = vadd.f32 %v3681, %v3748
        %v3755 = vadd.f32 %v3682, %v3728
        %v3756 = vadd.f32 %v3683, %v3751
        %s3757 = scalar_lea.vmem [#allocation10], 1792
        %v3758 = vld [vmem:[%s3757] sm:$0xff]
        %v3759 = vld [vmem:[%s3757 + $0x8] sm:$0xff]
        %v3760 = vld [vmem:[%s3757 + $0x10] sm:$0xff]
        %v3761 = vld [vmem:[%s3757 + $0x18] sm:$0xff]
        %v3762 = vld [vmem:[%s3757 + $0x20] sm:$0xff]
        %v3763 = vld [vmem:[%s3757 + $0x28] sm:$0xff]
        %v3764 = vld [vmem:[%s3757 + $0x30] sm:$0xff]
        %v3765 = vld [vmem:[%s3757 + $0x38] sm:$0xff]
        %v3766 = vld [vmem:[%s3757 + $0x40] sm:$0xff]
        %v3767 = vld [vmem:[%s3757 + $0x48] sm:$0xff]
        %v3768 = vld [vmem:[%s3757 + $0x50] sm:$0xff]
        %v3769 = vld [vmem:[%s3757 + $0x58] sm:$0xff]
        %v3770 = vld [vmem:[%s3757 + $0x60] sm:$0xff]
        %v3771 = vld [vmem:[%s3757 + $0x68] sm:$0xff]
        %v3772 = vld [vmem:[%s3757 + $0x70] sm:$0xff]
        %v3773 = vld [vmem:[%s3757 + $0x78] sm:$0xff]
        %v3775 = vsel %vm2776, %v2732, 0
        %v3778 = vsel %vm2776, %v2735, 0
        %3780 = vmatpush.msra.mxu0 0.0
        %3781 = vmatpush.msra.mxu0 0.0
        %3782 = vmatpush.msra.mxu0 0.0
        %3783 = vmatpush.msra.mxu0 0.0
        %3784 = vmatpush.msra.mxu0 0.0
        %3785 = vmatpush.msra.mxu0 0.0
        %3786 = vmatpush.msra.mxu0 0.0
        %3787 = vmatpush.msra.mxu0 0.0
        %3788 = vmatpush.msra.mxu0 %v3772
        %3789 = vmatpush.msra.mxu0 %v3770
        %3790 = vmatpush.msra.mxu0 %v3768
        %3791 = vmatpush.msra.mxu0 %v3766
        %3792 = vmatpush.msra.mxu0 %v3764
        %3793 = vmatpush.msra.mxu0 %v3762
        %3794 = vmatpush.msra.mxu0 %v3760
        %3795 = vmatpush.msra.mxu0 %v3758
        %3796 = vmatmul.f32.gmra.mxu0 %v3775
        %v3797 = vpop.f32.mrf.mxu0
        %v3798 = vadd.f32 0.0, %v3797
        %3799 = vmatmul.f32.gmra.mxu0 %v3778
        %v3800 = vpop.f32.mrf.mxu0
        %v3801 = vadd.f32 0.0, %v3800
        %3802 = vdwg.mxu0
        %3803 = vmatpush.msra.mxu0 0.0
        %3804 = vmatpush.msra.mxu0 0.0
        %3805 = vmatpush.msra.mxu0 0.0
        %3806 = vmatpush.msra.mxu0 0.0
        %3807 = vmatpush.msra.mxu0 0.0
        %3808 = vmatpush.msra.mxu0 0.0
        %3809 = vmatpush.msra.mxu0 0.0
        %3810 = vmatpush.msra.mxu0 0.0
        %3811 = vmatpush.msra.mxu0 %v3773
        %3812 = vmatpush.msra.mxu0 %v3771
        %3813 = vmatpush.msra.mxu0 %v3769
        %3814 = vmatpush.msra.mxu0 %v3767
        %3815 = vmatpush.msra.mxu0 %v3765
        %3816 = vmatpush.msra.mxu0 %v3763
        %3817 = vmatpush.msra.mxu0 %v3761
        %3818 = vmatpush.msra.mxu0 %v3759
        %3819 = vmatmul.f32.gmra.mxu0 %v3775
        %v3820 = vpop.f32.mrf.mxu0
        %v3821 = vadd.f32 0.0, %v3820
        %3822 = vmatmul.f32.gmra.mxu0 %v3778
        %v3823 = vpop.f32.mrf.mxu0
        %v3824 = vadd.f32 0.0, %v3823
        %3825 = vdwg.mxu0
        %v3826 = vadd.f32 %v3753, %v3798
        %v3827 = vadd.f32 %v3754, %v3821
        %v3828 = vadd.f32 %v3755, %v3801
        %v3829 = vadd.f32 %v3756, %v3824
        %s3830 = scalar_lea.vmem [#allocation10], 1920
        %v3831 = vld [vmem:[%s3830] sm:$0xff]
        %v3832 = vld [vmem:[%s3830 + $0x8] sm:$0xff]
        %v3833 = vld [vmem:[%s3830 + $0x10] sm:$0xff]
        %v3834 = vld [vmem:[%s3830 + $0x18] sm:$0xff]
        %v3835 = vld [vmem:[%s3830 + $0x20] sm:$0xff]
        %v3836 = vld [vmem:[%s3830 + $0x28] sm:$0xff]
        %v3837 = vld [vmem:[%s3830 + $0x30] sm:$0xff]
        %v3838 = vld [vmem:[%s3830 + $0x38] sm:$0xff]
        %v3839 = vld [vmem:[%s3830 + $0x40] sm:$0xff]
        %v3840 = vld [vmem:[%s3830 + $0x48] sm:$0xff]
        %v3841 = vld [vmem:[%s3830 + $0x50] sm:$0xff]
        %v3842 = vld [vmem:[%s3830 + $0x58] sm:$0xff]
        %v3843 = vld [vmem:[%s3830 + $0x60] sm:$0xff]
        %v3844 = vld [vmem:[%s3830 + $0x68] sm:$0xff]
        %v3845 = vld [vmem:[%s3830 + $0x70] sm:$0xff]
        %v3846 = vld [vmem:[%s3830 + $0x78] sm:$0xff]
        %v3848 = vsel %vm2776, %v2738, 0
        %v3851 = vsel %vm2776, %v2741, 0
        %3853 = vmatpush.msra.mxu0 0.0
        %3854 = vmatpush.msra.mxu0 0.0
        %3855 = vmatpush.msra.mxu0 0.0
        %3856 = vmatpush.msra.mxu0 0.0
        %3857 = vmatpush.msra.mxu0 0.0
        %3858 = vmatpush.msra.mxu0 0.0
        %3859 = vmatpush.msra.mxu0 0.0
        %3860 = vmatpush.msra.mxu0 0.0
        %3861 = vmatpush.msra.mxu0 %v3845
        %3862 = vmatpush.msra.mxu0 %v3843
        %3863 = vmatpush.msra.mxu0 %v3841
        %3864 = vmatpush.msra.mxu0 %v3839
        %3865 = vmatpush.msra.mxu0 %v3837
        %3866 = vmatpush.msra.mxu0 %v3835
        %3867 = vmatpush.msra.mxu0 %v3833
        %3868 = vmatpush.msra.mxu0 %v3831
        %3869 = vmatmul.f32.gmra.mxu0 %v3848
        %v3870 = vpop.f32.mrf.mxu0
        %v3871 = vadd.f32 0.0, %v3870
        %3872 = vmatmul.f32.gmra.mxu0 %v3851
        %v3873 = vpop.f32.mrf.mxu0
        %v3874 = vadd.f32 0.0, %v3873
        %3875 = vdwg.mxu0
        %3876 = vmatpush.msra.mxu0 0.0
        %3877 = vmatpush.msra.mxu0 0.0
        %3878 = vmatpush.msra.mxu0 0.0
        %3879 = vmatpush.msra.mxu0 0.0
        %3880 = vmatpush.msra.mxu0 0.0
        %3881 = vmatpush.msra.mxu0 0.0
        %3882 = vmatpush.msra.mxu0 0.0
        %3883 = vmatpush.msra.mxu0 0.0
        %3884 = vmatpush.msra.mxu0 %v3846
        %3885 = vmatpush.msra.mxu0 %v3844
        %3886 = vmatpush.msra.mxu0 %v3842
        %3887 = vmatpush.msra.mxu0 %v3840
        %3888 = vmatpush.msra.mxu0 %v3838
        %3889 = vmatpush.msra.mxu0 %v3836
        %3890 = vmatpush.msra.mxu0 %v3834
        %3891 = vmatpush.msra.mxu0 %v3832
        %3892 = vmatmul.f32.gmra.mxu0 %v3848
        %v3893 = vpop.f32.mrf.mxu0
        %v3894 = vadd.f32 0.0, %v3893
        %3895 = vmatmul.f32.gmra.mxu0 %v3851
        %v3896 = vpop.f32.mrf.mxu0
        %v3897 = vadd.f32 0.0, %v3896
        %3898 = vdwg.mxu0
        %v3899 = vadd.f32 %v3826, %v3871
        %v3900 = vadd.f32 %v3827, %v3894
        %v3901 = vadd.f32 %v3828, %v3874
        %v3902 = vadd.f32 %v3829, %v3897
        %s3903 = sld [smem:[#allocation2 + $0x2]]
        %v3904 = vstv %s3903
        %v3905 = vmul.f32 %v3904, %v3899
        %v3906 = vmul.f32 %v3904, %v3900
        %v3907 = vmul.f32 %v3904, %v3901
        %v3908 = vmul.f32 %v3904, %v3902
        %s3909 = sld [smem:[#allocation5 + $0x2]]
        %v3910 = vstv %s3909
        %v3911 = vadd.f32 %v3905, %v3910
        %v3912 = vadd.f32 %v3906, %v3910
        %v3913 = vadd.f32 %v3907, %v3910
        %v3914 = vadd.f32 %v3908, %v3910
        %v3915 = vmax.f32 %v3911, 0.0
        %v3916 = vmax.f32 %v3912, 0.0
        %v3917 = vmax.f32 %v3913, 0.0
        %v3918 = vmax.f32 %v3914, 0.0
        %v3919 = vld [vmem:[%s9] sm:$0xff]
        %v3920 = vld [vmem:[%s9 + $0x8] sm:$0xff]
        %v3921 = vld [vmem:[%s9 + $0x10] sm:$0xff]
        %v3922 = vld [vmem:[%s9 + $0x18] sm:$0xff]
        %v3923 = vld [vmem:[%s9 + $0x20] sm:$0xff]
        %v3924 = vld [vmem:[%s9 + $0x28] sm:$0xff]
        %v3925 = vld [vmem:[%s9 + $0x30] sm:$0xff]
        %v3926 = vld [vmem:[%s9 + $0x38] sm:$0xff]
        %v3927 = vld [vmem:[%s9 + $0x40] sm:$0xff]
        %v3929 = vsel %vm1957, %v3919, 0
        %v3932 = vsel %vm1957, %v3920, 0
        %v3935 = vsel %vm1957, %v3921, 0
        %v3938 = vsel %vm1957, %v3922, 0
        %v3941 = vsel %vm1957, %v3923, 0
        %v3944 = vsel %vm1957, %v3924, 0
        %v3947 = vsel %vm1957, %v3925, 0
        %v3950 = vsel %vm1957, %v3926, 0
        %v3953 = vsel %vm1957, %v3927, 0
        %3955 = vmatpush.msra.mxu0 0.0
        %3956 = vmatpush.msra.mxu0 0.0
        %3957 = vmatpush.msra.mxu0 0.0
        %3958 = vmatpush.msra.mxu0 0.0
        %3959 = vmatpush.msra.mxu0 0.0
        %3960 = vmatpush.msra.mxu0 0.0
        %3961 = vmatpush.msra.mxu0 0.0
        %3962 = vmatpush.msra.mxu0 0.0
        %3963 = vmatpush.msra.mxu0 0.0
        %3964 = vmatpush.msra.mxu0 0.0
        %3965 = vmatpush.msra.mxu0 0.0
        %3966 = vmatpush.msra.mxu0 0.0
        %3967 = vmatpush.msra.mxu0 0.0
        %3968 = vmatpush.msra.mxu0 0.0
        %3969 = vmatpush.msra.mxu0 %v3917
        %3970 = vmatpush.msra.mxu0 %v3915
        %3971 = vmatmul.f32.gmra.mxu0 %v3929
        %v3972 = vpop.f32.mrf.mxu0
        %v3973 = vadd.f32 0.0, %v3972
        %3974 = vmatmul.f32.gmra.mxu0 %v3932
        %v3975 = vpop.f32.mrf.mxu0
        %v3976 = vadd.f32 0.0, %v3975
        %3977 = vmatmul.f32.gmra.mxu0 %v3935
        %v3978 = vpop.f32.mrf.mxu0
        %v3979 = vadd.f32 0.0, %v3978
        %3980 = vmatmul.f32.gmra.mxu0 %v3938
        %v3981 = vpop.f32.mrf.mxu0
        %v3982 = vadd.f32 0.0, %v3981
        %3983 = vmatmul.f32.gmra.mxu0 %v3941
        %v3984 = vpop.f32.mrf.mxu0
        %v3985 = vadd.f32 0.0, %v3984
        %3986 = vmatmul.f32.gmra.mxu0 %v3944
        %v3987 = vpop.f32.mrf.mxu0
        %v3988 = vadd.f32 0.0, %v3987
        %3989 = vmatmul.f32.gmra.mxu0 %v3947
        %v3990 = vpop.f32.mrf.mxu0
        %v3991 = vadd.f32 0.0, %v3990
        %3992 = vmatmul.f32.gmra.mxu0 %v3950
        %v3993 = vpop.f32.mrf.mxu0
        %v3994 = vadd.f32 0.0, %v3993
        %3995 = vmatmul.f32.gmra.mxu0 %v3953
        %v3996 = vpop.f32.mrf.mxu0
        %v3997 = vadd.f32 0.0, %v3996
        %3998 = vdwg.mxu0
        %3999 = vmatpush.msra.mxu0 0.0
        %4000 = vmatpush.msra.mxu0 0.0
        %4001 = vmatpush.msra.mxu0 0.0
        %4002 = vmatpush.msra.mxu0 0.0
        %4003 = vmatpush.msra.mxu0 0.0
        %4004 = vmatpush.msra.mxu0 0.0
        %4005 = vmatpush.msra.mxu0 0.0
        %4006 = vmatpush.msra.mxu0 0.0
        %4007 = vmatpush.msra.mxu0 0.0
        %4008 = vmatpush.msra.mxu0 0.0
        %4009 = vmatpush.msra.mxu0 0.0
        %4010 = vmatpush.msra.mxu0 0.0
        %4011 = vmatpush.msra.mxu0 0.0
        %4012 = vmatpush.msra.mxu0 0.0
        %4013 = vmatpush.msra.mxu0 %v3918
        %4014 = vmatpush.msra.mxu0 %v3916
        %4015 = vmatmul.f32.gmra.mxu0 %v3929
        %v4016 = vpop.f32.mrf.mxu0
        %v4017 = vadd.f32 0.0, %v4016
        %4018 = vmatmul.f32.gmra.mxu0 %v3932
        %v4019 = vpop.f32.mrf.mxu0
        %v4020 = vadd.f32 0.0, %v4019
        %4021 = vmatmul.f32.gmra.mxu0 %v3935
        %v4022 = vpop.f32.mrf.mxu0
        %v4023 = vadd.f32 0.0, %v4022
        %4024 = vmatmul.f32.gmra.mxu0 %v3938
        %v4025 = vpop.f32.mrf.mxu0
        %v4026 = vadd.f32 0.0, %v4025
        %4027 = vmatmul.f32.gmra.mxu0 %v3941
        %v4028 = vpop.f32.mrf.mxu0
        %v4029 = vadd.f32 0.0, %v4028
        %4030 = vmatmul.f32.gmra.mxu0 %v3944
        %v4031 = vpop.f32.mrf.mxu0
        %v4032 = vadd.f32 0.0, %v4031
        %4033 = vmatmul.f32.gmra.mxu0 %v3947
        %v4034 = vpop.f32.mrf.mxu0
        %v4035 = vadd.f32 0.0, %v4034
        %4036 = vmatmul.f32.gmra.mxu0 %v3950
        %v4037 = vpop.f32.mrf.mxu0
        %v4038 = vadd.f32 0.0, %v4037
        %4039 = vmatmul.f32.gmra.mxu0 %v3953
        %v4040 = vpop.f32.mrf.mxu0
        %v4041 = vadd.f32 0.0, %v4040
        %4042 = vdwg.mxu0
        %v4043 = vld [vmem:[#allocation11] sm:$0xff]
        %v4044 = vld [vmem:[#allocation11 + $0x8] sm:$0xff]
        %v4045 = vld [vmem:[#allocation11 + $0x10] sm:$0xff]
        %v4046 = vld [vmem:[#allocation11 + $0x18] sm:$0xff]
        %v4047 = vld [vmem:[#allocation11 + $0x20] sm:$0xff]
        %v4048 = vld [vmem:[#allocation11 + $0x28] sm:$0xff]
        %v4049 = vld [vmem:[#allocation11 + $0x30] sm:$0xff]
        %v4050 = vld [vmem:[#allocation11 + $0x38] sm:$0xff]
        %v4051 = vld [vmem:[#allocation11 + $0x40] sm:$0xff]
        %v4052 = vld [vmem:[#allocation11 + $0x48] sm:$0xff]
        %v4053 = vld [vmem:[#allocation11 + $0x50] sm:$0xff]
        %v4054 = vld [vmem:[#allocation11 + $0x58] sm:$0xff]
        %v4055 = vld [vmem:[#allocation11 + $0x60] sm:$0xff]
        %v4056 = vld [vmem:[#allocation11 + $0x68] sm:$0xff]
        %v4057 = vld [vmem:[#allocation11 + $0x70] sm:$0xff]
        %v4058 = vld [vmem:[#allocation11 + $0x78] sm:$0xff]
        %v4059 = vld [vmem:[#allocation11 + $0x80] sm:$0xff]
        %v4060 = vld [vmem:[#allocation11 + $0x88] sm:$0xff]
        %v4061 = vld [vmem:[#allocation11 + $0x90] sm:$0xff]
        %v4062 = vld [vmem:[#allocation11 + $0x98] sm:$0xff]
        %v4063 = vld [vmem:[#allocation11 + $0xa0] sm:$0xff]
        %v4064 = vld [vmem:[#allocation11 + $0xa8] sm:$0xff]
        %v4065 = vld [vmem:[#allocation11 + $0xb0] sm:$0xff]
        %v4066 = vld [vmem:[#allocation11 + $0xb8] sm:$0xff]
        %v4067 = vld [vmem:[#allocation11 + $0xc0] sm:$0xff]
        %v4068 = vld [vmem:[#allocation11 + $0xc8] sm:$0xff]
        %v4069 = vld [vmem:[#allocation11 + $0xd0] sm:$0xff]
        %v4070 = vld [vmem:[#allocation11 + $0xd8] sm:$0xff]
        %v4071 = vld [vmem:[#allocation11 + $0xe0] sm:$0xff]
        %v4072 = vld [vmem:[#allocation11 + $0xe8] sm:$0xff]
        %v4073 = vld [vmem:[#allocation11 + $0xf0] sm:$0xff]
        %v4074 = vld [vmem:[#allocation11 + $0xf8] sm:$0xff]
        %v4075 = vld [vmem:[#allocation11 + $0x100] sm:$0xff]
        %v4076 = vld [vmem:[#allocation11 + $0x108] sm:$0xff]
        %v4077 = vld [vmem:[#allocation11 + $0x110] sm:$0xff]
        %v4078 = vld [vmem:[#allocation11 + $0x118] sm:$0xff]
        %v4079 = vld [vmem:[#allocation11 + $0x120] sm:$0xff]
        %v4080 = vld [vmem:[#allocation11 + $0x128] sm:$0xff]
        %v4081 = vld [vmem:[#allocation11 + $0x130] sm:$0xff]
        %v4082 = vld [vmem:[#allocation11 + $0x138] sm:$0xff]
        %v4083 = vld [vmem:[#allocation11 + $0x140] sm:$0xff]
        %v4084 = vld [vmem:[#allocation11 + $0x148] sm:$0xff]
        %v4085 = vld [vmem:[#allocation11 + $0x150] sm:$0xff]
        %v4086 = vld [vmem:[#allocation11 + $0x158] sm:$0xff]
        %v4087 = vld [vmem:[#allocation11 + $0x160] sm:$0xff]
        %v4088 = vld [vmem:[#allocation11 + $0x168] sm:$0xff]
        %v4089 = vld [vmem:[#allocation11 + $0x170] sm:$0xff]
        %v4090 = vld [vmem:[#allocation11 + $0x178] sm:$0xff]
        %v4091 = vld [vmem:[#allocation11 + $0x180] sm:$0xff]
        %v4092 = vld [vmem:[#allocation11 + $0x188] sm:$0xff]
        %v4093 = vld [vmem:[#allocation11 + $0x190] sm:$0xff]
        %v4094 = vld [vmem:[#allocation11 + $0x198] sm:$0xff]
        %v4095 = vld [vmem:[#allocation11 + $0x1a0] sm:$0xff]
        %v4096 = vld [vmem:[#allocation11 + $0x1a8] sm:$0xff]
        %v4097 = vld [vmem:[#allocation11 + $0x1b0] sm:$0xff]
        %v4098 = vld [vmem:[#allocation11 + $0x1b8] sm:$0xff]
        %v4099 = vld [vmem:[#allocation11 + $0x1c0] sm:$0xff]
        %v4100 = vld [vmem:[#allocation11 + $0x1c8] sm:$0xff]
        %v4101 = vld [vmem:[#allocation11 + $0x1d0] sm:$0xff]
        %v4102 = vld [vmem:[#allocation11 + $0x1d8] sm:$0xff]
        %v4103 = vld [vmem:[#allocation11 + $0x1e0] sm:$0xff]
        %v4104 = vld [vmem:[#allocation11 + $0x1e8] sm:$0xff]
        %v4105 = vld [vmem:[#allocation11 + $0x1f0] sm:$0xff]
        %v4106 = vld [vmem:[#allocation11 + $0x1f8] sm:$0xff]
        %s4107 = scalar_lea.vmem [#allocation11], 512
        %v4108 = vld [vmem:[%s4107] sm:$0xff]
        %v4109 = vld [vmem:[%s4107 + $0x8] sm:$0xff]
        %v4110 = vld [vmem:[%s4107 + $0x10] sm:$0xff]
        %v4111 = vld [vmem:[%s4107 + $0x18] sm:$0xff]
        %v4112 = vld [vmem:[%s4107 + $0x20] sm:$0xff]
        %v4113 = vld [vmem:[%s4107 + $0x28] sm:$0xff]
        %v4114 = vld [vmem:[%s4107 + $0x30] sm:$0xff]
        %v4115 = vld [vmem:[%s4107 + $0x38] sm:$0xff]
        %v4116 = vld [vmem:[%s4107 + $0x40] sm:$0xff]
        %v4117 = vld [vmem:[%s4107 + $0x48] sm:$0xff]
        %v4118 = vld [vmem:[%s4107 + $0x50] sm:$0xff]
        %v4119 = vld [vmem:[%s4107 + $0x58] sm:$0xff]
        %v4120 = vld [vmem:[%s4107 + $0x60] sm:$0xff]
        %v4121 = vld [vmem:[%s4107 + $0x68] sm:$0xff]
        %v4122 = vld [vmem:[%s4107 + $0x70] sm:$0xff]
        %v4123 = vld [vmem:[%s4107 + $0x78] sm:$0xff]
        %v4124 = vld [vmem:[%s4107 + $0x80] sm:$0xff]
        %v4125 = vld [vmem:[%s4107 + $0x88] sm:$0xff]
        %v4126 = vld [vmem:[%s4107 + $0x90] sm:$0xff]
        %v4127 = vld [vmem:[%s4107 + $0x98] sm:$0xff]
        %v4128 = vld [vmem:[%s4107 + $0xa0] sm:$0xff]
        %v4129 = vld [vmem:[%s4107 + $0xa8] sm:$0xff]
        %v4130 = vld [vmem:[%s4107 + $0xb0] sm:$0xff]
        %v4131 = vld [vmem:[%s4107 + $0xb8] sm:$0xff]
        %v4132 = vld [vmem:[%s4107 + $0xc0] sm:$0xff]
        %v4133 = vld [vmem:[%s4107 + $0xc8] sm:$0xff]
        %v4134 = vld [vmem:[%s4107 + $0xd0] sm:$0xff]
        %v4135 = vld [vmem:[%s4107 + $0xd8] sm:$0xff]
        %v4136 = vld [vmem:[%s4107 + $0xe0] sm:$0xff]
        %v4137 = vld [vmem:[%s4107 + $0xe8] sm:$0xff]
        %v4138 = vld [vmem:[%s4107 + $0xf0] sm:$0xff]
        %v4139 = vld [vmem:[%s4107 + $0xf8] sm:$0xff]
        %v4140 = vld [vmem:[%s4107 + $0x100] sm:$0xff]
        %v4141 = vld [vmem:[%s4107 + $0x108] sm:$0xff]
        %v4142 = vld [vmem:[%s4107 + $0x110] sm:$0xff]
        %v4143 = vld [vmem:[%s4107 + $0x118] sm:$0xff]
        %v4144 = vld [vmem:[%s4107 + $0x120] sm:$0xff]
        %v4145 = vld [vmem:[%s4107 + $0x128] sm:$0xff]
        %v4146 = vld [vmem:[%s4107 + $0x130] sm:$0xff]
        %v4147 = vld [vmem:[%s4107 + $0x138] sm:$0xff]
        %v4148 = vld [vmem:[%s4107 + $0x140] sm:$0xff]
        %v4149 = vld [vmem:[%s4107 + $0x148] sm:$0xff]
        %v4150 = vld [vmem:[%s4107 + $0x150] sm:$0xff]
        %v4151 = vld [vmem:[%s4107 + $0x158] sm:$0xff]
        %v4152 = vld [vmem:[%s4107 + $0x160] sm:$0xff]
        %v4153 = vld [vmem:[%s4107 + $0x168] sm:$0xff]
        %v4154 = vld [vmem:[%s4107 + $0x170] sm:$0xff]
        %v4155 = vld [vmem:[%s4107 + $0x178] sm:$0xff]
        %v4156 = vld [vmem:[%s4107 + $0x180] sm:$0xff]
        %v4157 = vld [vmem:[%s4107 + $0x188] sm:$0xff]
        %v4158 = vld [vmem:[%s4107 + $0x190] sm:$0xff]
        %v4159 = vld [vmem:[%s4107 + $0x198] sm:$0xff]
        %v4160 = vld [vmem:[%s4107 + $0x1a0] sm:$0xff]
        %v4161 = vld [vmem:[%s4107 + $0x1a8] sm:$0xff]
        %v4162 = vld [vmem:[%s4107 + $0x1b0] sm:$0xff]
        %v4163 = vld [vmem:[%s4107 + $0x1b8] sm:$0xff]
        %v4164 = vld [vmem:[%s4107 + $0x1c0] sm:$0xff]
        %v4165 = vld [vmem:[%s4107 + $0x1c8] sm:$0xff]
        %v4166 = vld [vmem:[%s4107 + $0x1d0] sm:$0xff]
        %v4167 = vld [vmem:[%s4107 + $0x1d8] sm:$0xff]
        %v4168 = vld [vmem:[%s4107 + $0x1e0] sm:$0xff]
        %v4169 = vld [vmem:[%s4107 + $0x1e8] sm:$0xff]
        %v4170 = vld [vmem:[%s4107 + $0x1f0] sm:$0xff]
        %v4171 = vld [vmem:[%s4107 + $0x1f8] sm:$0xff]
        %4172 = vmatpush.msra.mxu0 %v4138
        %4173 = vmatpush.msra.mxu0 %v4136
        %4174 = vmatpush.msra.mxu0 %v4134
        %4175 = vmatpush.msra.mxu0 %v4132
        %4176 = vmatpush.msra.mxu0 %v4130
        %4177 = vmatpush.msra.mxu0 %v4128
        %4178 = vmatpush.msra.mxu0 %v4126
        %4179 = vmatpush.msra.mxu0 %v4124
        %4180 = vmatpush.msra.mxu0 %v4122
        %4181 = vmatpush.msra.mxu0 %v4120
        %4182 = vmatpush.msra.mxu0 %v4118
        %4183 = vmatpush.msra.mxu0 %v4116
        %4184 = vmatpush.msra.mxu0 %v4114
        %4185 = vmatpush.msra.mxu0 %v4112
        %4186 = vmatpush.msra.mxu0 %v4110
        %4187 = vmatpush.msra.mxu0 %v4108
        %4188 = vmatmul.f32.gmra.mxu0 %v3976
        %v4189 = vpop.f32.mrf.mxu0
        %v4190 = vadd.f32 0.0, %v4189
        %4191 = vdwg.mxu0
        %4192 = vmatpush.msra.mxu0 %v4170
        %4193 = vmatpush.msra.mxu0 %v4168
        %4194 = vmatpush.msra.mxu0 %v4166
        %4195 = vmatpush.msra.mxu0 %v4164
        %4196 = vmatpush.msra.mxu0 %v4162
        %4197 = vmatpush.msra.mxu0 %v4160
        %4198 = vmatpush.msra.mxu0 %v4158
        %4199 = vmatpush.msra.mxu0 %v4156
        %4200 = vmatpush.msra.mxu0 %v4154
        %4201 = vmatpush.msra.mxu0 %v4152
        %4202 = vmatpush.msra.mxu0 %v4150
        %4203 = vmatpush.msra.mxu0 %v4148
        %4204 = vmatpush.msra.mxu0 %v4146
        %4205 = vmatpush.msra.mxu0 %v4144
        %4206 = vmatpush.msra.mxu0 %v4142
        %4207 = vmatpush.msra.mxu0 %v4140
        %4208 = vmatmul.f32.gmra.mxu0 %v4020
        %v4209 = vpop.f32.mrf.mxu0
        %v4210 = vadd.f32 %v4190, %v4209
        %4211 = vdwg.mxu0
        %4212 = vmatpush.msra.mxu0 %v4139
        %4213 = vmatpush.msra.mxu0 %v4137
        %4214 = vmatpush.msra.mxu0 %v4135
        %4215 = vmatpush.msra.mxu0 %v4133
        %4216 = vmatpush.msra.mxu0 %v4131
        %4217 = vmatpush.msra.mxu0 %v4129
        %4218 = vmatpush.msra.mxu0 %v4127
        %4219 = vmatpush.msra.mxu0 %v4125
        %4220 = vmatpush.msra.mxu0 %v4123
        %4221 = vmatpush.msra.mxu0 %v4121
        %4222 = vmatpush.msra.mxu0 %v4119
        %4223 = vmatpush.msra.mxu0 %v4117
        %4224 = vmatpush.msra.mxu0 %v4115
        %4225 = vmatpush.msra.mxu0 %v4113
        %4226 = vmatpush.msra.mxu0 %v4111
        %4227 = vmatpush.msra.mxu0 %v4109
        %4228 = vmatmul.f32.gmra.mxu0 %v3976
        %v4229 = vpop.f32.mrf.mxu0
        %v4230 = vadd.f32 0.0, %v4229
        %4231 = vdwg.mxu0
        %4232 = vmatpush.msra.mxu0 %v4171
        %4233 = vmatpush.msra.mxu0 %v4169
        %4234 = vmatpush.msra.mxu0 %v4167
        %4235 = vmatpush.msra.mxu0 %v4165
        %4236 = vmatpush.msra.mxu0 %v4163
        %4237 = vmatpush.msra.mxu0 %v4161
        %4238 = vmatpush.msra.mxu0 %v4159
        %4239 = vmatpush.msra.mxu0 %v4157
        %4240 = vmatpush.msra.mxu0 %v4155
        %4241 = vmatpush.msra.mxu0 %v4153
        %4242 = vmatpush.msra.mxu0 %v4151
        %4243 = vmatpush.msra.mxu0 %v4149
        %4244 = vmatpush.msra.mxu0 %v4147
        %4245 = vmatpush.msra.mxu0 %v4145
        %4246 = vmatpush.msra.mxu0 %v4143
        %4247 = vmatpush.msra.mxu0 %v4141
        %4248 = vmatmul.f32.gmra.mxu0 %v4020
        %v4249 = vpop.f32.mrf.mxu0
        %v4250 = vadd.f32 %v4230, %v4249
        %4251 = vdwg.mxu0
        %4252 = vmatpush.msra.mxu0 %v4073
        %4253 = vmatpush.msra.mxu0 %v4071
        %4254 = vmatpush.msra.mxu0 %v4069
        %4255 = vmatpush.msra.mxu0 %v4067
        %4256 = vmatpush.msra.mxu0 %v4065
        %4257 = vmatpush.msra.mxu0 %v4063
        %4258 = vmatpush.msra.mxu0 %v4061
        %4259 = vmatpush.msra.mxu0 %v4059
        %4260 = vmatpush.msra.mxu0 %v4057
        %4261 = vmatpush.msra.mxu0 %v4055
        %4262 = vmatpush.msra.mxu0 %v4053
        %4263 = vmatpush.msra.mxu0 %v4051
        %4264 = vmatpush.msra.mxu0 %v4049
        %4265 = vmatpush.msra.mxu0 %v4047
        %4266 = vmatpush.msra.mxu0 %v4045
        %4267 = vmatpush.msra.mxu0 %v4043
        %4268 = vmatmul.f32.gmra.mxu0 %v3973
        %v4269 = vpop.f32.mrf.mxu0
        %v4270 = vadd.f32 %v4210, %v4269
        %4271 = vdwg.mxu0
        %4272 = vmatpush.msra.mxu0 %v4105
        %4273 = vmatpush.msra.mxu0 %v4103
        %4274 = vmatpush.msra.mxu0 %v4101
        %4275 = vmatpush.msra.mxu0 %v4099
        %4276 = vmatpush.msra.mxu0 %v4097
        %4277 = vmatpush.msra.mxu0 %v4095
        %4278 = vmatpush.msra.mxu0 %v4093
        %4279 = vmatpush.msra.mxu0 %v4091
        %4280 = vmatpush.msra.mxu0 %v4089
        %4281 = vmatpush.msra.mxu0 %v4087
        %4282 = vmatpush.msra.mxu0 %v4085
        %4283 = vmatpush.msra.mxu0 %v4083
        %4284 = vmatpush.msra.mxu0 %v4081
        %4285 = vmatpush.msra.mxu0 %v4079
        %4286 = vmatpush.msra.mxu0 %v4077
        %4287 = vmatpush.msra.mxu0 %v4075
        %4288 = vmatmul.f32.gmra.mxu0 %v4017
        %v4289 = vpop.f32.mrf.mxu0
        %v4290 = vadd.f32 %v4270, %v4289
        %4291 = vdwg.mxu0
        %4292 = vmatpush.msra.mxu0 %v4074
        %4293 = vmatpush.msra.mxu0 %v4072
        %4294 = vmatpush.msra.mxu0 %v4070
        %4295 = vmatpush.msra.mxu0 %v4068
        %4296 = vmatpush.msra.mxu0 %v4066
        %4297 = vmatpush.msra.mxu0 %v4064
        %4298 = vmatpush.msra.mxu0 %v4062
        %4299 = vmatpush.msra.mxu0 %v4060
        %4300 = vmatpush.msra.mxu0 %v4058
        %4301 = vmatpush.msra.mxu0 %v4056
        %4302 = vmatpush.msra.mxu0 %v4054
        %4303 = vmatpush.msra.mxu0 %v4052
        %4304 = vmatpush.msra.mxu0 %v4050
        %4305 = vmatpush.msra.mxu0 %v4048
        %4306 = vmatpush.msra.mxu0 %v4046
        %4307 = vmatpush.msra.mxu0 %v4044
        %4308 = vmatmul.f32.gmra.mxu0 %v3973
        %v4309 = vpop.f32.mrf.mxu0
        %v4310 = vadd.f32 %v4250, %v4309
        %4311 = vdwg.mxu0
        %4312 = vmatpush.msra.mxu0 %v4106
        %4313 = vmatpush.msra.mxu0 %v4104
        %4314 = vmatpush.msra.mxu0 %v4102
        %4315 = vmatpush.msra.mxu0 %v4100
        %4316 = vmatpush.msra.mxu0 %v4098
        %4317 = vmatpush.msra.mxu0 %v4096
        %4318 = vmatpush.msra.mxu0 %v4094
        %4319 = vmatpush.msra.mxu0 %v4092
        %4320 = vmatpush.msra.mxu0 %v4090
        %4321 = vmatpush.msra.mxu0 %v4088
        %4322 = vmatpush.msra.mxu0 %v4086
        %4323 = vmatpush.msra.mxu0 %v4084
        %4324 = vmatpush.msra.mxu0 %v4082
        %4325 = vmatpush.msra.mxu0 %v4080
        %4326 = vmatpush.msra.mxu0 %v4078
        %4327 = vmatpush.msra.mxu0 %v4076
        %4328 = vmatmul.f32.gmra.mxu0 %v4017
        %v4329 = vpop.f32.mrf.mxu0
        %v4330 = vadd.f32 %v4310, %v4329
        %4331 = vdwg.mxu0
        %s4332 = scalar_lea.vmem [#allocation11], 1024
        %v4333 = vld [vmem:[%s4332] sm:$0xff]
        %v4334 = vld [vmem:[%s4332 + $0x8] sm:$0xff]
        %v4335 = vld [vmem:[%s4332 + $0x10] sm:$0xff]
        %v4336 = vld [vmem:[%s4332 + $0x18] sm:$0xff]
        %v4337 = vld [vmem:[%s4332 + $0x20] sm:$0xff]
        %v4338 = vld [vmem:[%s4332 + $0x28] sm:$0xff]
        %v4339 = vld [vmem:[%s4332 + $0x30] sm:$0xff]
        %v4340 = vld [vmem:[%s4332 + $0x38] sm:$0xff]
        %v4341 = vld [vmem:[%s4332 + $0x40] sm:$0xff]
        %v4342 = vld [vmem:[%s4332 + $0x48] sm:$0xff]
        %v4343 = vld [vmem:[%s4332 + $0x50] sm:$0xff]
        %v4344 = vld [vmem:[%s4332 + $0x58] sm:$0xff]
        %v4345 = vld [vmem:[%s4332 + $0x60] sm:$0xff]
        %v4346 = vld [vmem:[%s4332 + $0x68] sm:$0xff]
        %v4347 = vld [vmem:[%s4332 + $0x70] sm:$0xff]
        %v4348 = vld [vmem:[%s4332 + $0x78] sm:$0xff]
        %v4349 = vld [vmem:[%s4332 + $0x80] sm:$0xff]
        %v4350 = vld [vmem:[%s4332 + $0x88] sm:$0xff]
        %v4351 = vld [vmem:[%s4332 + $0x90] sm:$0xff]
        %v4352 = vld [vmem:[%s4332 + $0x98] sm:$0xff]
        %v4353 = vld [vmem:[%s4332 + $0xa0] sm:$0xff]
        %v4354 = vld [vmem:[%s4332 + $0xa8] sm:$0xff]
        %v4355 = vld [vmem:[%s4332 + $0xb0] sm:$0xff]
        %v4356 = vld [vmem:[%s4332 + $0xb8] sm:$0xff]
        %v4357 = vld [vmem:[%s4332 + $0xc0] sm:$0xff]
        %v4358 = vld [vmem:[%s4332 + $0xc8] sm:$0xff]
        %v4359 = vld [vmem:[%s4332 + $0xd0] sm:$0xff]
        %v4360 = vld [vmem:[%s4332 + $0xd8] sm:$0xff]
        %v4361 = vld [vmem:[%s4332 + $0xe0] sm:$0xff]
        %v4362 = vld [vmem:[%s4332 + $0xe8] sm:$0xff]
        %v4363 = vld [vmem:[%s4332 + $0xf0] sm:$0xff]
        %v4364 = vld [vmem:[%s4332 + $0xf8] sm:$0xff]
        %v4365 = vld [vmem:[%s4332 + $0x100] sm:$0xff]
        %v4366 = vld [vmem:[%s4332 + $0x108] sm:$0xff]
        %v4367 = vld [vmem:[%s4332 + $0x110] sm:$0xff]
        %v4368 = vld [vmem:[%s4332 + $0x118] sm:$0xff]
        %v4369 = vld [vmem:[%s4332 + $0x120] sm:$0xff]
        %v4370 = vld [vmem:[%s4332 + $0x128] sm:$0xff]
        %v4371 = vld [vmem:[%s4332 + $0x130] sm:$0xff]
        %v4372 = vld [vmem:[%s4332 + $0x138] sm:$0xff]
        %v4373 = vld [vmem:[%s4332 + $0x140] sm:$0xff]
        %v4374 = vld [vmem:[%s4332 + $0x148] sm:$0xff]
        %v4375 = vld [vmem:[%s4332 + $0x150] sm:$0xff]
        %v4376 = vld [vmem:[%s4332 + $0x158] sm:$0xff]
        %v4377 = vld [vmem:[%s4332 + $0x160] sm:$0xff]
        %v4378 = vld [vmem:[%s4332 + $0x168] sm:$0xff]
        %v4379 = vld [vmem:[%s4332 + $0x170] sm:$0xff]
        %v4380 = vld [vmem:[%s4332 + $0x178] sm:$0xff]
        %v4381 = vld [vmem:[%s4332 + $0x180] sm:$0xff]
        %v4382 = vld [vmem:[%s4332 + $0x188] sm:$0xff]
        %v4383 = vld [vmem:[%s4332 + $0x190] sm:$0xff]
        %v4384 = vld [vmem:[%s4332 + $0x198] sm:$0xff]
        %v4385 = vld [vmem:[%s4332 + $0x1a0] sm:$0xff]
        %v4386 = vld [vmem:[%s4332 + $0x1a8] sm:$0xff]
        %v4387 = vld [vmem:[%s4332 + $0x1b0] sm:$0xff]
        %v4388 = vld [vmem:[%s4332 + $0x1b8] sm:$0xff]
        %v4389 = vld [vmem:[%s4332 + $0x1c0] sm:$0xff]
        %v4390 = vld [vmem:[%s4332 + $0x1c8] sm:$0xff]
        %v4391 = vld [vmem:[%s4332 + $0x1d0] sm:$0xff]
        %v4392 = vld [vmem:[%s4332 + $0x1d8] sm:$0xff]
        %v4393 = vld [vmem:[%s4332 + $0x1e0] sm:$0xff]
        %v4394 = vld [vmem:[%s4332 + $0x1e8] sm:$0xff]
        %v4395 = vld [vmem:[%s4332 + $0x1f0] sm:$0xff]
        %v4396 = vld [vmem:[%s4332 + $0x1f8] sm:$0xff]
        %4397 = vmatpush.msra.mxu0 %v4363
        %4398 = vmatpush.msra.mxu0 %v4361
        %4399 = vmatpush.msra.mxu0 %v4359
        %4400 = vmatpush.msra.mxu0 %v4357
        %4401 = vmatpush.msra.mxu0 %v4355
        %4402 = vmatpush.msra.mxu0 %v4353
        %4403 = vmatpush.msra.mxu0 %v4351
        %4404 = vmatpush.msra.mxu0 %v4349
        %4405 = vmatpush.msra.mxu0 %v4347
        %4406 = vmatpush.msra.mxu0 %v4345
        %4407 = vmatpush.msra.mxu0 %v4343
        %4408 = vmatpush.msra.mxu0 %v4341
        %4409 = vmatpush.msra.mxu0 %v4339
        %4410 = vmatpush.msra.mxu0 %v4337
        %4411 = vmatpush.msra.mxu0 %v4335
        %4412 = vmatpush.msra.mxu0 %v4333
        %4413 = vmatmul.f32.gmra.mxu0 %v3979
        %v4414 = vpop.f32.mrf.mxu0
        %v4415 = vadd.f32 0.0, %v4414
        %4416 = vdwg.mxu0
        %4417 = vmatpush.msra.mxu0 %v4395
        %4418 = vmatpush.msra.mxu0 %v4393
        %4419 = vmatpush.msra.mxu0 %v4391
        %4420 = vmatpush.msra.mxu0 %v4389
        %4421 = vmatpush.msra.mxu0 %v4387
        %4422 = vmatpush.msra.mxu0 %v4385
        %4423 = vmatpush.msra.mxu0 %v4383
        %4424 = vmatpush.msra.mxu0 %v4381
        %4425 = vmatpush.msra.mxu0 %v4379
        %4426 = vmatpush.msra.mxu0 %v4377
        %4427 = vmatpush.msra.mxu0 %v4375
        %4428 = vmatpush.msra.mxu0 %v4373
        %4429 = vmatpush.msra.mxu0 %v4371
        %4430 = vmatpush.msra.mxu0 %v4369
        %4431 = vmatpush.msra.mxu0 %v4367
        %4432 = vmatpush.msra.mxu0 %v4365
        %4433 = vmatmul.f32.gmra.mxu0 %v4023
        %v4434 = vpop.f32.mrf.mxu0
        %v4435 = vadd.f32 %v4415, %v4434
        %4436 = vdwg.mxu0
        %4437 = vmatpush.msra.mxu0 %v4364
        %4438 = vmatpush.msra.mxu0 %v4362
        %4439 = vmatpush.msra.mxu0 %v4360
        %4440 = vmatpush.msra.mxu0 %v4358
        %4441 = vmatpush.msra.mxu0 %v4356
        %4442 = vmatpush.msra.mxu0 %v4354
        %4443 = vmatpush.msra.mxu0 %v4352
        %4444 = vmatpush.msra.mxu0 %v4350
        %4445 = vmatpush.msra.mxu0 %v4348
        %4446 = vmatpush.msra.mxu0 %v4346
        %4447 = vmatpush.msra.mxu0 %v4344
        %4448 = vmatpush.msra.mxu0 %v4342
        %4449 = vmatpush.msra.mxu0 %v4340
        %4450 = vmatpush.msra.mxu0 %v4338
        %4451 = vmatpush.msra.mxu0 %v4336
        %4452 = vmatpush.msra.mxu0 %v4334
        %4453 = vmatmul.f32.gmra.mxu0 %v3979
        %v4454 = vpop.f32.mrf.mxu0
        %v4455 = vadd.f32 0.0, %v4454
        %4456 = vdwg.mxu0
        %4457 = vmatpush.msra.mxu0 %v4396
        %4458 = vmatpush.msra.mxu0 %v4394
        %4459 = vmatpush.msra.mxu0 %v4392
        %4460 = vmatpush.msra.mxu0 %v4390
        %4461 = vmatpush.msra.mxu0 %v4388
        %4462 = vmatpush.msra.mxu0 %v4386
        %4463 = vmatpush.msra.mxu0 %v4384
        %4464 = vmatpush.msra.mxu0 %v4382
        %4465 = vmatpush.msra.mxu0 %v4380
        %4466 = vmatpush.msra.mxu0 %v4378
        %4467 = vmatpush.msra.mxu0 %v4376
        %4468 = vmatpush.msra.mxu0 %v4374
        %4469 = vmatpush.msra.mxu0 %v4372
        %4470 = vmatpush.msra.mxu0 %v4370
        %4471 = vmatpush.msra.mxu0 %v4368
        %4472 = vmatpush.msra.mxu0 %v4366
        %4473 = vmatmul.f32.gmra.mxu0 %v4023
        %v4474 = vpop.f32.mrf.mxu0
        %v4475 = vadd.f32 %v4455, %v4474
        %4476 = vdwg.mxu0
        %v4477 = vadd.f32 %v4290, %v4435
        %v4478 = vadd.f32 %v4330, %v4475
        %s4479 = scalar_lea.vmem [#allocation11], 1536
        %v4480 = vld [vmem:[%s4479] sm:$0xff]
        %v4481 = vld [vmem:[%s4479 + $0x8] sm:$0xff]
        %v4482 = vld [vmem:[%s4479 + $0x10] sm:$0xff]
        %v4483 = vld [vmem:[%s4479 + $0x18] sm:$0xff]
        %v4484 = vld [vmem:[%s4479 + $0x20] sm:$0xff]
        %v4485 = vld [vmem:[%s4479 + $0x28] sm:$0xff]
        %v4486 = vld [vmem:[%s4479 + $0x30] sm:$0xff]
        %v4487 = vld [vmem:[%s4479 + $0x38] sm:$0xff]
        %v4488 = vld [vmem:[%s4479 + $0x40] sm:$0xff]
        %v4489 = vld [vmem:[%s4479 + $0x48] sm:$0xff]
        %v4490 = vld [vmem:[%s4479 + $0x50] sm:$0xff]
        %v4491 = vld [vmem:[%s4479 + $0x58] sm:$0xff]
        %v4492 = vld [vmem:[%s4479 + $0x60] sm:$0xff]
        %v4493 = vld [vmem:[%s4479 + $0x68] sm:$0xff]
        %v4494 = vld [vmem:[%s4479 + $0x70] sm:$0xff]
        %v4495 = vld [vmem:[%s4479 + $0x78] sm:$0xff]
        %v4496 = vld [vmem:[%s4479 + $0x80] sm:$0xff]
        %v4497 = vld [vmem:[%s4479 + $0x88] sm:$0xff]
        %v4498 = vld [vmem:[%s4479 + $0x90] sm:$0xff]
        %v4499 = vld [vmem:[%s4479 + $0x98] sm:$0xff]
        %v4500 = vld [vmem:[%s4479 + $0xa0] sm:$0xff]
        %v4501 = vld [vmem:[%s4479 + $0xa8] sm:$0xff]
        %v4502 = vld [vmem:[%s4479 + $0xb0] sm:$0xff]
        %v4503 = vld [vmem:[%s4479 + $0xb8] sm:$0xff]
        %v4504 = vld [vmem:[%s4479 + $0xc0] sm:$0xff]
        %v4505 = vld [vmem:[%s4479 + $0xc8] sm:$0xff]
        %v4506 = vld [vmem:[%s4479 + $0xd0] sm:$0xff]
        %v4507 = vld [vmem:[%s4479 + $0xd8] sm:$0xff]
        %v4508 = vld [vmem:[%s4479 + $0xe0] sm:$0xff]
        %v4509 = vld [vmem:[%s4479 + $0xe8] sm:$0xff]
        %v4510 = vld [vmem:[%s4479 + $0xf0] sm:$0xff]
        %v4511 = vld [vmem:[%s4479 + $0xf8] sm:$0xff]
        %v4512 = vld [vmem:[%s4479 + $0x100] sm:$0xff]
        %v4513 = vld [vmem:[%s4479 + $0x108] sm:$0xff]
        %v4514 = vld [vmem:[%s4479 + $0x110] sm:$0xff]
        %v4515 = vld [vmem:[%s4479 + $0x118] sm:$0xff]
        %v4516 = vld [vmem:[%s4479 + $0x120] sm:$0xff]
        %v4517 = vld [vmem:[%s4479 + $0x128] sm:$0xff]
        %v4518 = vld [vmem:[%s4479 + $0x130] sm:$0xff]
        %v4519 = vld [vmem:[%s4479 + $0x138] sm:$0xff]
        %v4520 = vld [vmem:[%s4479 + $0x140] sm:$0xff]
        %v4521 = vld [vmem:[%s4479 + $0x148] sm:$0xff]
        %v4522 = vld [vmem:[%s4479 + $0x150] sm:$0xff]
        %v4523 = vld [vmem:[%s4479 + $0x158] sm:$0xff]
        %v4524 = vld [vmem:[%s4479 + $0x160] sm:$0xff]
        %v4525 = vld [vmem:[%s4479 + $0x168] sm:$0xff]
        %v4526 = vld [vmem:[%s4479 + $0x170] sm:$0xff]
        %v4527 = vld [vmem:[%s4479 + $0x178] sm:$0xff]
        %v4528 = vld [vmem:[%s4479 + $0x180] sm:$0xff]
        %v4529 = vld [vmem:[%s4479 + $0x188] sm:$0xff]
        %v4530 = vld [vmem:[%s4479 + $0x190] sm:$0xff]
        %v4531 = vld [vmem:[%s4479 + $0x198] sm:$0xff]
        %v4532 = vld [vmem:[%s4479 + $0x1a0] sm:$0xff]
        %v4533 = vld [vmem:[%s4479 + $0x1a8] sm:$0xff]
        %v4534 = vld [vmem:[%s4479 + $0x1b0] sm:$0xff]
        %v4535 = vld [vmem:[%s4479 + $0x1b8] sm:$0xff]
        %v4536 = vld [vmem:[%s4479 + $0x1c0] sm:$0xff]
        %v4537 = vld [vmem:[%s4479 + $0x1c8] sm:$0xff]
        %v4538 = vld [vmem:[%s4479 + $0x1d0] sm:$0xff]
        %v4539 = vld [vmem:[%s4479 + $0x1d8] sm:$0xff]
        %v4540 = vld [vmem:[%s4479 + $0x1e0] sm:$0xff]
        %v4541 = vld [vmem:[%s4479 + $0x1e8] sm:$0xff]
        %v4542 = vld [vmem:[%s4479 + $0x1f0] sm:$0xff]
        %v4543 = vld [vmem:[%s4479 + $0x1f8] sm:$0xff]
        %4544 = vmatpush.msra.mxu0 %v4510
        %4545 = vmatpush.msra.mxu0 %v4508
        %4546 = vmatpush.msra.mxu0 %v4506
        %4547 = vmatpush.msra.mxu0 %v4504
        %4548 = vmatpush.msra.mxu0 %v4502
        %4549 = vmatpush.msra.mxu0 %v4500
        %4550 = vmatpush.msra.mxu0 %v4498
        %4551 = vmatpush.msra.mxu0 %v4496
        %4552 = vmatpush.msra.mxu0 %v4494
        %4553 = vmatpush.msra.mxu0 %v4492
        %4554 = vmatpush.msra.mxu0 %v4490
        %4555 = vmatpush.msra.mxu0 %v4488
        %4556 = vmatpush.msra.mxu0 %v4486
        %4557 = vmatpush.msra.mxu0 %v4484
        %4558 = vmatpush.msra.mxu0 %v4482
        %4559 = vmatpush.msra.mxu0 %v4480
        %4560 = vmatmul.f32.gmra.mxu0 %v3982
        %v4561 = vpop.f32.mrf.mxu0
        %v4562 = vadd.f32 0.0, %v4561
        %4563 = vdwg.mxu0
        %4564 = vmatpush.msra.mxu0 %v4542
        %4565 = vmatpush.msra.mxu0 %v4540
        %4566 = vmatpush.msra.mxu0 %v4538
        %4567 = vmatpush.msra.mxu0 %v4536
        %4568 = vmatpush.msra.mxu0 %v4534
        %4569 = vmatpush.msra.mxu0 %v4532
        %4570 = vmatpush.msra.mxu0 %v4530
        %4571 = vmatpush.msra.mxu0 %v4528
        %4572 = vmatpush.msra.mxu0 %v4526
        %4573 = vmatpush.msra.mxu0 %v4524
        %4574 = vmatpush.msra.mxu0 %v4522
        %4575 = vmatpush.msra.mxu0 %v4520
        %4576 = vmatpush.msra.mxu0 %v4518
        %4577 = vmatpush.msra.mxu0 %v4516
        %4578 = vmatpush.msra.mxu0 %v4514
        %4579 = vmatpush.msra.mxu0 %v4512
        %4580 = vmatmul.f32.gmra.mxu0 %v4026
        %v4581 = vpop.f32.mrf.mxu0
        %v4582 = vadd.f32 %v4562, %v4581
        %4583 = vdwg.mxu0
        %4584 = vmatpush.msra.mxu0 %v4511
        %4585 = vmatpush.msra.mxu0 %v4509
        %4586 = vmatpush.msra.mxu0 %v4507
        %4587 = vmatpush.msra.mxu0 %v4505
        %4588 = vmatpush.msra.mxu0 %v4503
        %4589 = vmatpush.msra.mxu0 %v4501
        %4590 = vmatpush.msra.mxu0 %v4499
        %4591 = vmatpush.msra.mxu0 %v4497
        %4592 = vmatpush.msra.mxu0 %v4495
        %4593 = vmatpush.msra.mxu0 %v4493
        %4594 = vmatpush.msra.mxu0 %v4491
        %4595 = vmatpush.msra.mxu0 %v4489
        %4596 = vmatpush.msra.mxu0 %v4487
        %4597 = vmatpush.msra.mxu0 %v4485
        %4598 = vmatpush.msra.mxu0 %v4483
        %4599 = vmatpush.msra.mxu0 %v4481
        %4600 = vmatmul.f32.gmra.mxu0 %v3982
        %v4601 = vpop.f32.mrf.mxu0
        %v4602 = vadd.f32 0.0, %v4601
        %4603 = vdwg.mxu0
        %4604 = vmatpush.msra.mxu0 %v4543
        %4605 = vmatpush.msra.mxu0 %v4541
        %4606 = vmatpush.msra.mxu0 %v4539
        %4607 = vmatpush.msra.mxu0 %v4537
        %4608 = vmatpush.msra.mxu0 %v4535
        %4609 = vmatpush.msra.mxu0 %v4533
        %4610 = vmatpush.msra.mxu0 %v4531
        %4611 = vmatpush.msra.mxu0 %v4529
        %4612 = vmatpush.msra.mxu0 %v4527
        %4613 = vmatpush.msra.mxu0 %v4525
        %4614 = vmatpush.msra.mxu0 %v4523
        %4615 = vmatpush.msra.mxu0 %v4521
        %4616 = vmatpush.msra.mxu0 %v4519
        %4617 = vmatpush.msra.mxu0 %v4517
        %4618 = vmatpush.msra.mxu0 %v4515
        %4619 = vmatpush.msra.mxu0 %v4513
        %4620 = vmatmul.f32.gmra.mxu0 %v4026
        %v4621 = vpop.f32.mrf.mxu0
        %v4622 = vadd.f32 %v4602, %v4621
        %4623 = vdwg.mxu0
        %v4624 = vadd.f32 %v4477, %v4582
        %v4625 = vadd.f32 %v4478, %v4622
        %s4626 = scalar_lea.vmem [#allocation11], 2048
        %v4627 = vld [vmem:[%s4626] sm:$0xff]
        %v4628 = vld [vmem:[%s4626 + $0x8] sm:$0xff]
        %v4629 = vld [vmem:[%s4626 + $0x10] sm:$0xff]
        %v4630 = vld [vmem:[%s4626 + $0x18] sm:$0xff]
        %v4631 = vld [vmem:[%s4626 + $0x20] sm:$0xff]
        %v4632 = vld [vmem:[%s4626 + $0x28] sm:$0xff]
        %v4633 = vld [vmem:[%s4626 + $0x30] sm:$0xff]
        %v4634 = vld [vmem:[%s4626 + $0x38] sm:$0xff]
        %v4635 = vld [vmem:[%s4626 + $0x40] sm:$0xff]
        %v4636 = vld [vmem:[%s4626 + $0x48] sm:$0xff]
        %v4637 = vld [vmem:[%s4626 + $0x50] sm:$0xff]
        %v4638 = vld [vmem:[%s4626 + $0x58] sm:$0xff]
        %v4639 = vld [vmem:[%s4626 + $0x60] sm:$0xff]
        %v4640 = vld [vmem:[%s4626 + $0x68] sm:$0xff]
        %v4641 = vld [vmem:[%s4626 + $0x70] sm:$0xff]
        %v4642 = vld [vmem:[%s4626 + $0x78] sm:$0xff]
        %v4643 = vld [vmem:[%s4626 + $0x80] sm:$0xff]
        %v4644 = vld [vmem:[%s4626 + $0x88] sm:$0xff]
        %v4645 = vld [vmem:[%s4626 + $0x90] sm:$0xff]
        %v4646 = vld [vmem:[%s4626 + $0x98] sm:$0xff]
        %v4647 = vld [vmem:[%s4626 + $0xa0] sm:$0xff]
        %v4648 = vld [vmem:[%s4626 + $0xa8] sm:$0xff]
        %v4649 = vld [vmem:[%s4626 + $0xb0] sm:$0xff]
        %v4650 = vld [vmem:[%s4626 + $0xb8] sm:$0xff]
        %v4651 = vld [vmem:[%s4626 + $0xc0] sm:$0xff]
        %v4652 = vld [vmem:[%s4626 + $0xc8] sm:$0xff]
        %v4653 = vld [vmem:[%s4626 + $0xd0] sm:$0xff]
        %v4654 = vld [vmem:[%s4626 + $0xd8] sm:$0xff]
        %v4655 = vld [vmem:[%s4626 + $0xe0] sm:$0xff]
        %v4656 = vld [vmem:[%s4626 + $0xe8] sm:$0xff]
        %v4657 = vld [vmem:[%s4626 + $0xf0] sm:$0xff]
        %v4658 = vld [vmem:[%s4626 + $0xf8] sm:$0xff]
        %v4659 = vld [vmem:[%s4626 + $0x100] sm:$0xff]
        %v4660 = vld [vmem:[%s4626 + $0x108] sm:$0xff]
        %v4661 = vld [vmem:[%s4626 + $0x110] sm:$0xff]
        %v4662 = vld [vmem:[%s4626 + $0x118] sm:$0xff]
        %v4663 = vld [vmem:[%s4626 + $0x120] sm:$0xff]
        %v4664 = vld [vmem:[%s4626 + $0x128] sm:$0xff]
        %v4665 = vld [vmem:[%s4626 + $0x130] sm:$0xff]
        %v4666 = vld [vmem:[%s4626 + $0x138] sm:$0xff]
        %v4667 = vld [vmem:[%s4626 + $0x140] sm:$0xff]
        %v4668 = vld [vmem:[%s4626 + $0x148] sm:$0xff]
        %v4669 = vld [vmem:[%s4626 + $0x150] sm:$0xff]
        %v4670 = vld [vmem:[%s4626 + $0x158] sm:$0xff]
        %v4671 = vld [vmem:[%s4626 + $0x160] sm:$0xff]
        %v4672 = vld [vmem:[%s4626 + $0x168] sm:$0xff]
        %v4673 = vld [vmem:[%s4626 + $0x170] sm:$0xff]
        %v4674 = vld [vmem:[%s4626 + $0x178] sm:$0xff]
        %v4675 = vld [vmem:[%s4626 + $0x180] sm:$0xff]
        %v4676 = vld [vmem:[%s4626 + $0x188] sm:$0xff]
        %v4677 = vld [vmem:[%s4626 + $0x190] sm:$0xff]
        %v4678 = vld [vmem:[%s4626 + $0x198] sm:$0xff]
        %v4679 = vld [vmem:[%s4626 + $0x1a0] sm:$0xff]
        %v4680 = vld [vmem:[%s4626 + $0x1a8] sm:$0xff]
        %v4681 = vld [vmem:[%s4626 + $0x1b0] sm:$0xff]
        %v4682 = vld [vmem:[%s4626 + $0x1b8] sm:$0xff]
        %v4683 = vld [vmem:[%s4626 + $0x1c0] sm:$0xff]
        %v4684 = vld [vmem:[%s4626 + $0x1c8] sm:$0xff]
        %v4685 = vld [vmem:[%s4626 + $0x1d0] sm:$0xff]
        %v4686 = vld [vmem:[%s4626 + $0x1d8] sm:$0xff]
        %v4687 = vld [vmem:[%s4626 + $0x1e0] sm:$0xff]
        %v4688 = vld [vmem:[%s4626 + $0x1e8] sm:$0xff]
        %v4689 = vld [vmem:[%s4626 + $0x1f0] sm:$0xff]
        %v4690 = vld [vmem:[%s4626 + $0x1f8] sm:$0xff]
        %4691 = vmatpush.msra.mxu0 %v4657
        %4692 = vmatpush.msra.mxu0 %v4655
        %4693 = vmatpush.msra.mxu0 %v4653
        %4694 = vmatpush.msra.mxu0 %v4651
        %4695 = vmatpush.msra.mxu0 %v4649
        %4696 = vmatpush.msra.mxu0 %v4647
        %4697 = vmatpush.msra.mxu0 %v4645
        %4698 = vmatpush.msra.mxu0 %v4643
        %4699 = vmatpush.msra.mxu0 %v4641
        %4700 = vmatpush.msra.mxu0 %v4639
        %4701 = vmatpush.msra.mxu0 %v4637
        %4702 = vmatpush.msra.mxu0 %v4635
        %4703 = vmatpush.msra.mxu0 %v4633
        %4704 = vmatpush.msra.mxu0 %v4631
        %4705 = vmatpush.msra.mxu0 %v4629
        %4706 = vmatpush.msra.mxu0 %v4627
        %4707 = vmatmul.f32.gmra.mxu0 %v3985
        %v4708 = vpop.f32.mrf.mxu0
        %v4709 = vadd.f32 0.0, %v4708
        %4710 = vdwg.mxu0
        %4711 = vmatpush.msra.mxu0 %v4689
        %4712 = vmatpush.msra.mxu0 %v4687
        %4713 = vmatpush.msra.mxu0 %v4685
        %4714 = vmatpush.msra.mxu0 %v4683
        %4715 = vmatpush.msra.mxu0 %v4681
        %4716 = vmatpush.msra.mxu0 %v4679
        %4717 = vmatpush.msra.mxu0 %v4677
        %4718 = vmatpush.msra.mxu0 %v4675
        %4719 = vmatpush.msra.mxu0 %v4673
        %4720 = vmatpush.msra.mxu0 %v4671
        %4721 = vmatpush.msra.mxu0 %v4669
        %4722 = vmatpush.msra.mxu0 %v4667
        %4723 = vmatpush.msra.mxu0 %v4665
        %4724 = vmatpush.msra.mxu0 %v4663
        %4725 = vmatpush.msra.mxu0 %v4661
        %4726 = vmatpush.msra.mxu0 %v4659
        %4727 = vmatmul.f32.gmra.mxu0 %v4029
        %v4728 = vpop.f32.mrf.mxu0
        %v4729 = vadd.f32 %v4709, %v4728
        %4730 = vdwg.mxu0
        %4731 = vmatpush.msra.mxu0 %v4658
        %4732 = vmatpush.msra.mxu0 %v4656
        %4733 = vmatpush.msra.mxu0 %v4654
        %4734 = vmatpush.msra.mxu0 %v4652
        %4735 = vmatpush.msra.mxu0 %v4650
        %4736 = vmatpush.msra.mxu0 %v4648
        %4737 = vmatpush.msra.mxu0 %v4646
        %4738 = vmatpush.msra.mxu0 %v4644
        %4739 = vmatpush.msra.mxu0 %v4642
        %4740 = vmatpush.msra.mxu0 %v4640
        %4741 = vmatpush.msra.mxu0 %v4638
        %4742 = vmatpush.msra.mxu0 %v4636
        %4743 = vmatpush.msra.mxu0 %v4634
        %4744 = vmatpush.msra.mxu0 %v4632
        %4745 = vmatpush.msra.mxu0 %v4630
        %4746 = vmatpush.msra.mxu0 %v4628
        %4747 = vmatmul.f32.gmra.mxu0 %v3985
        %v4748 = vpop.f32.mrf.mxu0
        %v4749 = vadd.f32 0.0, %v4748
        %4750 = vdwg.mxu0
        %4751 = vmatpush.msra.mxu0 %v4690
        %4752 = vmatpush.msra.mxu0 %v4688
        %4753 = vmatpush.msra.mxu0 %v4686
        %4754 = vmatpush.msra.mxu0 %v4684
        %4755 = vmatpush.msra.mxu0 %v4682
        %4756 = vmatpush.msra.mxu0 %v4680
        %4757 = vmatpush.msra.mxu0 %v4678
        %4758 = vmatpush.msra.mxu0 %v4676
        %4759 = vmatpush.msra.mxu0 %v4674
        %4760 = vmatpush.msra.mxu0 %v4672
        %4761 = vmatpush.msra.mxu0 %v4670
        %4762 = vmatpush.msra.mxu0 %v4668
        %4763 = vmatpush.msra.mxu0 %v4666
        %4764 = vmatpush.msra.mxu0 %v4664
        %4765 = vmatpush.msra.mxu0 %v4662
        %4766 = vmatpush.msra.mxu0 %v4660
        %4767 = vmatmul.f32.gmra.mxu0 %v4029
        %v4768 = vpop.f32.mrf.mxu0
        %v4769 = vadd.f32 %v4749, %v4768
        %4770 = vdwg.mxu0
        %v4771 = vadd.f32 %v4624, %v4729
        %v4772 = vadd.f32 %v4625, %v4769
        %s4773 = scalar_lea.vmem [#allocation11], 2560
        %v4774 = vld [vmem:[%s4773] sm:$0xff]
        %v4775 = vld [vmem:[%s4773 + $0x8] sm:$0xff]
        %v4776 = vld [vmem:[%s4773 + $0x10] sm:$0xff]
        %v4777 = vld [vmem:[%s4773 + $0x18] sm:$0xff]
        %v4778 = vld [vmem:[%s4773 + $0x20] sm:$0xff]
        %v4779 = vld [vmem:[%s4773 + $0x28] sm:$0xff]
        %v4780 = vld [vmem:[%s4773 + $0x30] sm:$0xff]
        %v4781 = vld [vmem:[%s4773 + $0x38] sm:$0xff]
        %v4782 = vld [vmem:[%s4773 + $0x40] sm:$0xff]
        %v4783 = vld [vmem:[%s4773 + $0x48] sm:$0xff]
        %v4784 = vld [vmem:[%s4773 + $0x50] sm:$0xff]
        %v4785 = vld [vmem:[%s4773 + $0x58] sm:$0xff]
        %v4786 = vld [vmem:[%s4773 + $0x60] sm:$0xff]
        %v4787 = vld [vmem:[%s4773 + $0x68] sm:$0xff]
        %v4788 = vld [vmem:[%s4773 + $0x70] sm:$0xff]
        %v4789 = vld [vmem:[%s4773 + $0x78] sm:$0xff]
        %v4790 = vld [vmem:[%s4773 + $0x80] sm:$0xff]
        %v4791 = vld [vmem:[%s4773 + $0x88] sm:$0xff]
        %v4792 = vld [vmem:[%s4773 + $0x90] sm:$0xff]
        %v4793 = vld [vmem:[%s4773 + $0x98] sm:$0xff]
        %v4794 = vld [vmem:[%s4773 + $0xa0] sm:$0xff]
        %v4795 = vld [vmem:[%s4773 + $0xa8] sm:$0xff]
        %v4796 = vld [vmem:[%s4773 + $0xb0] sm:$0xff]
        %v4797 = vld [vmem:[%s4773 + $0xb8] sm:$0xff]
        %v4798 = vld [vmem:[%s4773 + $0xc0] sm:$0xff]
        %v4799 = vld [vmem:[%s4773 + $0xc8] sm:$0xff]
        %v4800 = vld [vmem:[%s4773 + $0xd0] sm:$0xff]
        %v4801 = vld [vmem:[%s4773 + $0xd8] sm:$0xff]
        %v4802 = vld [vmem:[%s4773 + $0xe0] sm:$0xff]
        %v4803 = vld [vmem:[%s4773 + $0xe8] sm:$0xff]
        %v4804 = vld [vmem:[%s4773 + $0xf0] sm:$0xff]
        %v4805 = vld [vmem:[%s4773 + $0xf8] sm:$0xff]
        %v4806 = vld [vmem:[%s4773 + $0x100] sm:$0xff]
        %v4807 = vld [vmem:[%s4773 + $0x108] sm:$0xff]
        %v4808 = vld [vmem:[%s4773 + $0x110] sm:$0xff]
        %v4809 = vld [vmem:[%s4773 + $0x118] sm:$0xff]
        %v4810 = vld [vmem:[%s4773 + $0x120] sm:$0xff]
        %v4811 = vld [vmem:[%s4773 + $0x128] sm:$0xff]
        %v4812 = vld [vmem:[%s4773 + $0x130] sm:$0xff]
        %v4813 = vld [vmem:[%s4773 + $0x138] sm:$0xff]
        %v4814 = vld [vmem:[%s4773 + $0x140] sm:$0xff]
        %v4815 = vld [vmem:[%s4773 + $0x148] sm:$0xff]
        %v4816 = vld [vmem:[%s4773 + $0x150] sm:$0xff]
        %v4817 = vld [vmem:[%s4773 + $0x158] sm:$0xff]
        %v4818 = vld [vmem:[%s4773 + $0x160] sm:$0xff]
        %v4819 = vld [vmem:[%s4773 + $0x168] sm:$0xff]
        %v4820 = vld [vmem:[%s4773 + $0x170] sm:$0xff]
        %v4821 = vld [vmem:[%s4773 + $0x178] sm:$0xff]
        %v4822 = vld [vmem:[%s4773 + $0x180] sm:$0xff]
        %v4823 = vld [vmem:[%s4773 + $0x188] sm:$0xff]
        %v4824 = vld [vmem:[%s4773 + $0x190] sm:$0xff]
        %v4825 = vld [vmem:[%s4773 + $0x198] sm:$0xff]
        %v4826 = vld [vmem:[%s4773 + $0x1a0] sm:$0xff]
        %v4827 = vld [vmem:[%s4773 + $0x1a8] sm:$0xff]
        %v4828 = vld [vmem:[%s4773 + $0x1b0] sm:$0xff]
        %v4829 = vld [vmem:[%s4773 + $0x1b8] sm:$0xff]
        %v4830 = vld [vmem:[%s4773 + $0x1c0] sm:$0xff]
        %v4831 = vld [vmem:[%s4773 + $0x1c8] sm:$0xff]
        %v4832 = vld [vmem:[%s4773 + $0x1d0] sm:$0xff]
        %v4833 = vld [vmem:[%s4773 + $0x1d8] sm:$0xff]
        %v4834 = vld [vmem:[%s4773 + $0x1e0] sm:$0xff]
        %v4835 = vld [vmem:[%s4773 + $0x1e8] sm:$0xff]
        %v4836 = vld [vmem:[%s4773 + $0x1f0] sm:$0xff]
        %v4837 = vld [vmem:[%s4773 + $0x1f8] sm:$0xff]
        %4838 = vmatpush.msra.mxu0 %v4804
        %4839 = vmatpush.msra.mxu0 %v4802
        %4840 = vmatpush.msra.mxu0 %v4800
        %4841 = vmatpush.msra.mxu0 %v4798
        %4842 = vmatpush.msra.mxu0 %v4796
        %4843 = vmatpush.msra.mxu0 %v4794
        %4844 = vmatpush.msra.mxu0 %v4792
        %4845 = vmatpush.msra.mxu0 %v4790
        %4846 = vmatpush.msra.mxu0 %v4788
        %4847 = vmatpush.msra.mxu0 %v4786
        %4848 = vmatpush.msra.mxu0 %v4784
        %4849 = vmatpush.msra.mxu0 %v4782
        %4850 = vmatpush.msra.mxu0 %v4780
        %4851 = vmatpush.msra.mxu0 %v4778
        %4852 = vmatpush.msra.mxu0 %v4776
        %4853 = vmatpush.msra.mxu0 %v4774
        %4854 = vmatmul.f32.gmra.mxu0 %v3988
        %v4855 = vpop.f32.mrf.mxu0
        %v4856 = vadd.f32 0.0, %v4855
        %4857 = vdwg.mxu0
        %4858 = vmatpush.msra.mxu0 %v4836
        %4859 = vmatpush.msra.mxu0 %v4834
        %4860 = vmatpush.msra.mxu0 %v4832
        %4861 = vmatpush.msra.mxu0 %v4830
        %4862 = vmatpush.msra.mxu0 %v4828
        %4863 = vmatpush.msra.mxu0 %v4826
        %4864 = vmatpush.msra.mxu0 %v4824
        %4865 = vmatpush.msra.mxu0 %v4822
        %4866 = vmatpush.msra.mxu0 %v4820
        %4867 = vmatpush.msra.mxu0 %v4818
        %4868 = vmatpush.msra.mxu0 %v4816
        %4869 = vmatpush.msra.mxu0 %v4814
        %4870 = vmatpush.msra.mxu0 %v4812
        %4871 = vmatpush.msra.mxu0 %v4810
        %4872 = vmatpush.msra.mxu0 %v4808
        %4873 = vmatpush.msra.mxu0 %v4806
        %4874 = vmatmul.f32.gmra.mxu0 %v4032
        %v4875 = vpop.f32.mrf.mxu0
        %v4876 = vadd.f32 %v4856, %v4875
        %4877 = vdwg.mxu0
        %4878 = vmatpush.msra.mxu0 %v4805
        %4879 = vmatpush.msra.mxu0 %v4803
        %4880 = vmatpush.msra.mxu0 %v4801
        %4881 = vmatpush.msra.mxu0 %v4799
        %4882 = vmatpush.msra.mxu0 %v4797
        %4883 = vmatpush.msra.mxu0 %v4795
        %4884 = vmatpush.msra.mxu0 %v4793
        %4885 = vmatpush.msra.mxu0 %v4791
        %4886 = vmatpush.msra.mxu0 %v4789
        %4887 = vmatpush.msra.mxu0 %v4787
        %4888 = vmatpush.msra.mxu0 %v4785
        %4889 = vmatpush.msra.mxu0 %v4783
        %4890 = vmatpush.msra.mxu0 %v4781
        %4891 = vmatpush.msra.mxu0 %v4779
        %4892 = vmatpush.msra.mxu0 %v4777
        %4893 = vmatpush.msra.mxu0 %v4775
        %4894 = vmatmul.f32.gmra.mxu0 %v3988
        %v4895 = vpop.f32.mrf.mxu0
        %v4896 = vadd.f32 0.0, %v4895
        %4897 = vdwg.mxu0
        %4898 = vmatpush.msra.mxu0 %v4837
        %4899 = vmatpush.msra.mxu0 %v4835
        %4900 = vmatpush.msra.mxu0 %v4833
        %4901 = vmatpush.msra.mxu0 %v4831
        %4902 = vmatpush.msra.mxu0 %v4829
        %4903 = vmatpush.msra.mxu0 %v4827
        %4904 = vmatpush.msra.mxu0 %v4825
        %4905 = vmatpush.msra.mxu0 %v4823
        %4906 = vmatpush.msra.mxu0 %v4821
        %4907 = vmatpush.msra.mxu0 %v4819
        %4908 = vmatpush.msra.mxu0 %v4817
        %4909 = vmatpush.msra.mxu0 %v4815
        %4910 = vmatpush.msra.mxu0 %v4813
        %4911 = vmatpush.msra.mxu0 %v4811
        %4912 = vmatpush.msra.mxu0 %v4809
        %4913 = vmatpush.msra.mxu0 %v4807
        %4914 = vmatmul.f32.gmra.mxu0 %v4032
        %v4915 = vpop.f32.mrf.mxu0
        %v4916 = vadd.f32 %v4896, %v4915
        %4917 = vdwg.mxu0
        %v4918 = vadd.f32 %v4771, %v4876
        %v4919 = vadd.f32 %v4772, %v4916
        %s4920 = scalar_lea.vmem [#allocation11], 3072
        %v4921 = vld [vmem:[%s4920] sm:$0xff]
        %v4922 = vld [vmem:[%s4920 + $0x8] sm:$0xff]
        %v4923 = vld [vmem:[%s4920 + $0x10] sm:$0xff]
        %v4924 = vld [vmem:[%s4920 + $0x18] sm:$0xff]
        %v4925 = vld [vmem:[%s4920 + $0x20] sm:$0xff]
        %v4926 = vld [vmem:[%s4920 + $0x28] sm:$0xff]
        %v4927 = vld [vmem:[%s4920 + $0x30] sm:$0xff]
        %v4928 = vld [vmem:[%s4920 + $0x38] sm:$0xff]
        %v4929 = vld [vmem:[%s4920 + $0x40] sm:$0xff]
        %v4930 = vld [vmem:[%s4920 + $0x48] sm:$0xff]
        %v4931 = vld [vmem:[%s4920 + $0x50] sm:$0xff]
        %v4932 = vld [vmem:[%s4920 + $0x58] sm:$0xff]
        %v4933 = vld [vmem:[%s4920 + $0x60] sm:$0xff]
        %v4934 = vld [vmem:[%s4920 + $0x68] sm:$0xff]
        %v4935 = vld [vmem:[%s4920 + $0x70] sm:$0xff]
        %v4936 = vld [vmem:[%s4920 + $0x78] sm:$0xff]
        %v4937 = vld [vmem:[%s4920 + $0x80] sm:$0xff]
        %v4938 = vld [vmem:[%s4920 + $0x88] sm:$0xff]
        %v4939 = vld [vmem:[%s4920 + $0x90] sm:$0xff]
        %v4940 = vld [vmem:[%s4920 + $0x98] sm:$0xff]
        %v4941 = vld [vmem:[%s4920 + $0xa0] sm:$0xff]
        %v4942 = vld [vmem:[%s4920 + $0xa8] sm:$0xff]
        %v4943 = vld [vmem:[%s4920 + $0xb0] sm:$0xff]
        %v4944 = vld [vmem:[%s4920 + $0xb8] sm:$0xff]
        %v4945 = vld [vmem:[%s4920 + $0xc0] sm:$0xff]
        %v4946 = vld [vmem:[%s4920 + $0xc8] sm:$0xff]
        %v4947 = vld [vmem:[%s4920 + $0xd0] sm:$0xff]
        %v4948 = vld [vmem:[%s4920 + $0xd8] sm:$0xff]
        %v4949 = vld [vmem:[%s4920 + $0xe0] sm:$0xff]
        %v4950 = vld [vmem:[%s4920 + $0xe8] sm:$0xff]
        %v4951 = vld [vmem:[%s4920 + $0xf0] sm:$0xff]
        %v4952 = vld [vmem:[%s4920 + $0xf8] sm:$0xff]
        %v4953 = vld [vmem:[%s4920 + $0x100] sm:$0xff]
        %v4954 = vld [vmem:[%s4920 + $0x108] sm:$0xff]
        %v4955 = vld [vmem:[%s4920 + $0x110] sm:$0xff]
        %v4956 = vld [vmem:[%s4920 + $0x118] sm:$0xff]
        %v4957 = vld [vmem:[%s4920 + $0x120] sm:$0xff]
        %v4958 = vld [vmem:[%s4920 + $0x128] sm:$0xff]
        %v4959 = vld [vmem:[%s4920 + $0x130] sm:$0xff]
        %v4960 = vld [vmem:[%s4920 + $0x138] sm:$0xff]
        %v4961 = vld [vmem:[%s4920 + $0x140] sm:$0xff]
        %v4962 = vld [vmem:[%s4920 + $0x148] sm:$0xff]
        %v4963 = vld [vmem:[%s4920 + $0x150] sm:$0xff]
        %v4964 = vld [vmem:[%s4920 + $0x158] sm:$0xff]
        %v4965 = vld [vmem:[%s4920 + $0x160] sm:$0xff]
        %v4966 = vld [vmem:[%s4920 + $0x168] sm:$0xff]
        %v4967 = vld [vmem:[%s4920 + $0x170] sm:$0xff]
        %v4968 = vld [vmem:[%s4920 + $0x178] sm:$0xff]
        %v4969 = vld [vmem:[%s4920 + $0x180] sm:$0xff]
        %v4970 = vld [vmem:[%s4920 + $0x188] sm:$0xff]
        %v4971 = vld [vmem:[%s4920 + $0x190] sm:$0xff]
        %v4972 = vld [vmem:[%s4920 + $0x198] sm:$0xff]
        %v4973 = vld [vmem:[%s4920 + $0x1a0] sm:$0xff]
        %v4974 = vld [vmem:[%s4920 + $0x1a8] sm:$0xff]
        %v4975 = vld [vmem:[%s4920 + $0x1b0] sm:$0xff]
        %v4976 = vld [vmem:[%s4920 + $0x1b8] sm:$0xff]
        %v4977 = vld [vmem:[%s4920 + $0x1c0] sm:$0xff]
        %v4978 = vld [vmem:[%s4920 + $0x1c8] sm:$0xff]
        %v4979 = vld [vmem:[%s4920 + $0x1d0] sm:$0xff]
        %v4980 = vld [vmem:[%s4920 + $0x1d8] sm:$0xff]
        %v4981 = vld [vmem:[%s4920 + $0x1e0] sm:$0xff]
        %v4982 = vld [vmem:[%s4920 + $0x1e8] sm:$0xff]
        %v4983 = vld [vmem:[%s4920 + $0x1f0] sm:$0xff]
        %v4984 = vld [vmem:[%s4920 + $0x1f8] sm:$0xff]
        %4985 = vmatpush.msra.mxu0 %v4951
        %4986 = vmatpush.msra.mxu0 %v4949
        %4987 = vmatpush.msra.mxu0 %v4947
        %4988 = vmatpush.msra.mxu0 %v4945
        %4989 = vmatpush.msra.mxu0 %v4943
        %4990 = vmatpush.msra.mxu0 %v4941
        %4991 = vmatpush.msra.mxu0 %v4939
        %4992 = vmatpush.msra.mxu0 %v4937
        %4993 = vmatpush.msra.mxu0 %v4935
        %4994 = vmatpush.msra.mxu0 %v4933
        %4995 = vmatpush.msra.mxu0 %v4931
        %4996 = vmatpush.msra.mxu0 %v4929
        %4997 = vmatpush.msra.mxu0 %v4927
        %4998 = vmatpush.msra.mxu0 %v4925
        %4999 = vmatpush.msra.mxu0 %v4923
        %5000 = vmatpush.msra.mxu0 %v4921
        %5001 = vmatmul.f32.gmra.mxu0 %v3991
        %v5002 = vpop.f32.mrf.mxu0
        %v5003 = vadd.f32 0.0, %v5002
        %5004 = vdwg.mxu0
        %5005 = vmatpush.msra.mxu0 %v4983
        %5006 = vmatpush.msra.mxu0 %v4981
        %5007 = vmatpush.msra.mxu0 %v4979
        %5008 = vmatpush.msra.mxu0 %v4977
        %5009 = vmatpush.msra.mxu0 %v4975
        %5010 = vmatpush.msra.mxu0 %v4973
        %5011 = vmatpush.msra.mxu0 %v4971
        %5012 = vmatpush.msra.mxu0 %v4969
        %5013 = vmatpush.msra.mxu0 %v4967
        %5014 = vmatpush.msra.mxu0 %v4965
        %5015 = vmatpush.msra.mxu0 %v4963
        %5016 = vmatpush.msra.mxu0 %v4961
        %5017 = vmatpush.msra.mxu0 %v4959
        %5018 = vmatpush.msra.mxu0 %v4957
        %5019 = vmatpush.msra.mxu0 %v4955
        %5020 = vmatpush.msra.mxu0 %v4953
        %5021 = vmatmul.f32.gmra.mxu0 %v4035
        %v5022 = vpop.f32.mrf.mxu0
        %v5023 = vadd.f32 %v5003, %v5022
        %5024 = vdwg.mxu0
        %5025 = vmatpush.msra.mxu0 %v4952
        %5026 = vmatpush.msra.mxu0 %v4950
        %5027 = vmatpush.msra.mxu0 %v4948
        %5028 = vmatpush.msra.mxu0 %v4946
        %5029 = vmatpush.msra.mxu0 %v4944
        %5030 = vmatpush.msra.mxu0 %v4942
        %5031 = vmatpush.msra.mxu0 %v4940
        %5032 = vmatpush.msra.mxu0 %v4938
        %5033 = vmatpush.msra.mxu0 %v4936
        %5034 = vmatpush.msra.mxu0 %v4934
        %5035 = vmatpush.msra.mxu0 %v4932
        %5036 = vmatpush.msra.mxu0 %v4930
        %5037 = vmatpush.msra.mxu0 %v4928
        %5038 = vmatpush.msra.mxu0 %v4926
        %5039 = vmatpush.msra.mxu0 %v4924
        %5040 = vmatpush.msra.mxu0 %v4922
        %5041 = vmatmul.f32.gmra.mxu0 %v3991
        %v5042 = vpop.f32.mrf.mxu0
        %v5043 = vadd.f32 0.0, %v5042
        %5044 = vdwg.mxu0
        %5045 = vmatpush.msra.mxu0 %v4984
        %5046 = vmatpush.msra.mxu0 %v4982
        %5047 = vmatpush.msra.mxu0 %v4980
        %5048 = vmatpush.msra.mxu0 %v4978
        %5049 = vmatpush.msra.mxu0 %v4976
        %5050 = vmatpush.msra.mxu0 %v4974
        %5051 = vmatpush.msra.mxu0 %v4972
        %5052 = vmatpush.msra.mxu0 %v4970
        %5053 = vmatpush.msra.mxu0 %v4968
        %5054 = vmatpush.msra.mxu0 %v4966
        %5055 = vmatpush.msra.mxu0 %v4964
        %5056 = vmatpush.msra.mxu0 %v4962
        %5057 = vmatpush.msra.mxu0 %v4960
        %5058 = vmatpush.msra.mxu0 %v4958
        %5059 = vmatpush.msra.mxu0 %v4956
        %5060 = vmatpush.msra.mxu0 %v4954
        %5061 = vmatmul.f32.gmra.mxu0 %v4035
        %v5062 = vpop.f32.mrf.mxu0
        %v5063 = vadd.f32 %v5043, %v5062
        %5064 = vdwg.mxu0
        %v5065 = vadd.f32 %v4918, %v5023
        %v5066 = vadd.f32 %v4919, %v5063
        %s5067 = scalar_lea.vmem [#allocation11], 3584
        %v5068 = vld [vmem:[%s5067] sm:$0xff]
        %v5069 = vld [vmem:[%s5067 + $0x8] sm:$0xff]
        %v5070 = vld [vmem:[%s5067 + $0x10] sm:$0xff]
        %v5071 = vld [vmem:[%s5067 + $0x18] sm:$0xff]
        %v5072 = vld [vmem:[%s5067 + $0x20] sm:$0xff]
        %v5073 = vld [vmem:[%s5067 + $0x28] sm:$0xff]
        %v5074 = vld [vmem:[%s5067 + $0x30] sm:$0xff]
        %v5075 = vld [vmem:[%s5067 + $0x38] sm:$0xff]
        %v5076 = vld [vmem:[%s5067 + $0x40] sm:$0xff]
        %v5077 = vld [vmem:[%s5067 + $0x48] sm:$0xff]
        %v5078 = vld [vmem:[%s5067 + $0x50] sm:$0xff]
        %v5079 = vld [vmem:[%s5067 + $0x58] sm:$0xff]
        %v5080 = vld [vmem:[%s5067 + $0x60] sm:$0xff]
        %v5081 = vld [vmem:[%s5067 + $0x68] sm:$0xff]
        %v5082 = vld [vmem:[%s5067 + $0x70] sm:$0xff]
        %v5083 = vld [vmem:[%s5067 + $0x78] sm:$0xff]
        %v5084 = vld [vmem:[%s5067 + $0x80] sm:$0xff]
        %v5085 = vld [vmem:[%s5067 + $0x88] sm:$0xff]
        %v5086 = vld [vmem:[%s5067 + $0x90] sm:$0xff]
        %v5087 = vld [vmem:[%s5067 + $0x98] sm:$0xff]
        %v5088 = vld [vmem:[%s5067 + $0xa0] sm:$0xff]
        %v5089 = vld [vmem:[%s5067 + $0xa8] sm:$0xff]
        %v5090 = vld [vmem:[%s5067 + $0xb0] sm:$0xff]
        %v5091 = vld [vmem:[%s5067 + $0xb8] sm:$0xff]
        %v5092 = vld [vmem:[%s5067 + $0xc0] sm:$0xff]
        %v5093 = vld [vmem:[%s5067 + $0xc8] sm:$0xff]
        %v5094 = vld [vmem:[%s5067 + $0xd0] sm:$0xff]
        %v5095 = vld [vmem:[%s5067 + $0xd8] sm:$0xff]
        %v5096 = vld [vmem:[%s5067 + $0xe0] sm:$0xff]
        %v5097 = vld [vmem:[%s5067 + $0xe8] sm:$0xff]
        %v5098 = vld [vmem:[%s5067 + $0xf0] sm:$0xff]
        %v5099 = vld [vmem:[%s5067 + $0xf8] sm:$0xff]
        %v5100 = vld [vmem:[%s5067 + $0x100] sm:$0xff]
        %v5101 = vld [vmem:[%s5067 + $0x108] sm:$0xff]
        %v5102 = vld [vmem:[%s5067 + $0x110] sm:$0xff]
        %v5103 = vld [vmem:[%s5067 + $0x118] sm:$0xff]
        %v5104 = vld [vmem:[%s5067 + $0x120] sm:$0xff]
        %v5105 = vld [vmem:[%s5067 + $0x128] sm:$0xff]
        %v5106 = vld [vmem:[%s5067 + $0x130] sm:$0xff]
        %v5107 = vld [vmem:[%s5067 + $0x138] sm:$0xff]
        %v5108 = vld [vmem:[%s5067 + $0x140] sm:$0xff]
        %v5109 = vld [vmem:[%s5067 + $0x148] sm:$0xff]
        %v5110 = vld [vmem:[%s5067 + $0x150] sm:$0xff]
        %v5111 = vld [vmem:[%s5067 + $0x158] sm:$0xff]
        %v5112 = vld [vmem:[%s5067 + $0x160] sm:$0xff]
        %v5113 = vld [vmem:[%s5067 + $0x168] sm:$0xff]
        %v5114 = vld [vmem:[%s5067 + $0x170] sm:$0xff]
        %v5115 = vld [vmem:[%s5067 + $0x178] sm:$0xff]
        %v5116 = vld [vmem:[%s5067 + $0x180] sm:$0xff]
        %v5117 = vld [vmem:[%s5067 + $0x188] sm:$0xff]
        %v5118 = vld [vmem:[%s5067 + $0x190] sm:$0xff]
        %v5119 = vld [vmem:[%s5067 + $0x198] sm:$0xff]
        %v5120 = vld [vmem:[%s5067 + $0x1a0] sm:$0xff]
        %v5121 = vld [vmem:[%s5067 + $0x1a8] sm:$0xff]
        %v5122 = vld [vmem:[%s5067 + $0x1b0] sm:$0xff]
        %v5123 = vld [vmem:[%s5067 + $0x1b8] sm:$0xff]
        %v5124 = vld [vmem:[%s5067 + $0x1c0] sm:$0xff]
        %v5125 = vld [vmem:[%s5067 + $0x1c8] sm:$0xff]
        %v5126 = vld [vmem:[%s5067 + $0x1d0] sm:$0xff]
        %v5127 = vld [vmem:[%s5067 + $0x1d8] sm:$0xff]
        %v5128 = vld [vmem:[%s5067 + $0x1e0] sm:$0xff]
        %v5129 = vld [vmem:[%s5067 + $0x1e8] sm:$0xff]
        %v5130 = vld [vmem:[%s5067 + $0x1f0] sm:$0xff]
        %v5131 = vld [vmem:[%s5067 + $0x1f8] sm:$0xff]
        %5132 = vmatpush.msra.mxu0 %v5098
        %5133 = vmatpush.msra.mxu0 %v5096
        %5134 = vmatpush.msra.mxu0 %v5094
        %5135 = vmatpush.msra.mxu0 %v5092
        %5136 = vmatpush.msra.mxu0 %v5090
        %5137 = vmatpush.msra.mxu0 %v5088
        %5138 = vmatpush.msra.mxu0 %v5086
        %5139 = vmatpush.msra.mxu0 %v5084
        %5140 = vmatpush.msra.mxu0 %v5082
        %5141 = vmatpush.msra.mxu0 %v5080
        %5142 = vmatpush.msra.mxu0 %v5078
        %5143 = vmatpush.msra.mxu0 %v5076
        %5144 = vmatpush.msra.mxu0 %v5074
        %5145 = vmatpush.msra.mxu0 %v5072
        %5146 = vmatpush.msra.mxu0 %v5070
        %5147 = vmatpush.msra.mxu0 %v5068
        %5148 = vmatmul.f32.gmra.mxu0 %v3994
        %v5149 = vpop.f32.mrf.mxu0
        %v5150 = vadd.f32 0.0, %v5149
        %5151 = vdwg.mxu0
        %5152 = vmatpush.msra.mxu0 %v5130
        %5153 = vmatpush.msra.mxu0 %v5128
        %5154 = vmatpush.msra.mxu0 %v5126
        %5155 = vmatpush.msra.mxu0 %v5124
        %5156 = vmatpush.msra.mxu0 %v5122
        %5157 = vmatpush.msra.mxu0 %v5120
        %5158 = vmatpush.msra.mxu0 %v5118
        %5159 = vmatpush.msra.mxu0 %v5116
        %5160 = vmatpush.msra.mxu0 %v5114
        %5161 = vmatpush.msra.mxu0 %v5112
        %5162 = vmatpush.msra.mxu0 %v5110
        %5163 = vmatpush.msra.mxu0 %v5108
        %5164 = vmatpush.msra.mxu0 %v5106
        %5165 = vmatpush.msra.mxu0 %v5104
        %5166 = vmatpush.msra.mxu0 %v5102
        %5167 = vmatpush.msra.mxu0 %v5100
        %5168 = vmatmul.f32.gmra.mxu0 %v4038
        %v5169 = vpop.f32.mrf.mxu0
        %v5170 = vadd.f32 %v5150, %v5169
        %5171 = vdwg.mxu0
        %5172 = vmatpush.msra.mxu0 %v5099
        %5173 = vmatpush.msra.mxu0 %v5097
        %5174 = vmatpush.msra.mxu0 %v5095
        %5175 = vmatpush.msra.mxu0 %v5093
        %5176 = vmatpush.msra.mxu0 %v5091
        %5177 = vmatpush.msra.mxu0 %v5089
        %5178 = vmatpush.msra.mxu0 %v5087
        %5179 = vmatpush.msra.mxu0 %v5085
        %5180 = vmatpush.msra.mxu0 %v5083
        %5181 = vmatpush.msra.mxu0 %v5081
        %5182 = vmatpush.msra.mxu0 %v5079
        %5183 = vmatpush.msra.mxu0 %v5077
        %5184 = vmatpush.msra.mxu0 %v5075
        %5185 = vmatpush.msra.mxu0 %v5073
        %5186 = vmatpush.msra.mxu0 %v5071
        %5187 = vmatpush.msra.mxu0 %v5069
        %5188 = vmatmul.f32.gmra.mxu0 %v3994
        %v5189 = vpop.f32.mrf.mxu0
        %v5190 = vadd.f32 0.0, %v5189
        %5191 = vdwg.mxu0
        %5192 = vmatpush.msra.mxu0 %v5131
        %5193 = vmatpush.msra.mxu0 %v5129
        %5194 = vmatpush.msra.mxu0 %v5127
        %5195 = vmatpush.msra.mxu0 %v5125
        %5196 = vmatpush.msra.mxu0 %v5123
        %5197 = vmatpush.msra.mxu0 %v5121
        %5198 = vmatpush.msra.mxu0 %v5119
        %5199 = vmatpush.msra.mxu0 %v5117
        %5200 = vmatpush.msra.mxu0 %v5115
        %5201 = vmatpush.msra.mxu0 %v5113
        %5202 = vmatpush.msra.mxu0 %v5111
        %5203 = vmatpush.msra.mxu0 %v5109
        %5204 = vmatpush.msra.mxu0 %v5107
        %5205 = vmatpush.msra.mxu0 %v5105
        %5206 = vmatpush.msra.mxu0 %v5103
        %5207 = vmatpush.msra.mxu0 %v5101
        %5208 = vmatmul.f32.gmra.mxu0 %v4038
        %v5209 = vpop.f32.mrf.mxu0
        %v5210 = vadd.f32 %v5190, %v5209
        %5211 = vdwg.mxu0
        %v5212 = vadd.f32 %v5065, %v5170
        %v5213 = vadd.f32 %v5066, %v5210
        %s5214 = scalar_lea.vmem [#allocation11], 4096
        %v5215 = vld [vmem:[%s5214] sm:$0xff]
        %v5216 = vld [vmem:[%s5214 + $0x8] sm:$0xff]
        %v5217 = vld [vmem:[%s5214 + $0x10] sm:$0xff]
        %v5218 = vld [vmem:[%s5214 + $0x18] sm:$0xff]
        %v5219 = vld [vmem:[%s5214 + $0x20] sm:$0xff]
        %v5220 = vld [vmem:[%s5214 + $0x28] sm:$0xff]
        %v5221 = vld [vmem:[%s5214 + $0x30] sm:$0xff]
        %v5222 = vld [vmem:[%s5214 + $0x38] sm:$0xff]
        %v5223 = vld [vmem:[%s5214 + $0x40] sm:$0xff]
        %v5224 = vld [vmem:[%s5214 + $0x48] sm:$0xff]
        %v5225 = vld [vmem:[%s5214 + $0x50] sm:$0xff]
        %v5226 = vld [vmem:[%s5214 + $0x58] sm:$0xff]
        %v5227 = vld [vmem:[%s5214 + $0x60] sm:$0xff]
        %v5228 = vld [vmem:[%s5214 + $0x68] sm:$0xff]
        %v5229 = vld [vmem:[%s5214 + $0x70] sm:$0xff]
        %v5230 = vld [vmem:[%s5214 + $0x78] sm:$0xff]
        %v5231 = vld [vmem:[%s5214 + $0x80] sm:$0xff]
        %v5232 = vld [vmem:[%s5214 + $0x88] sm:$0xff]
        %v5233 = vld [vmem:[%s5214 + $0x90] sm:$0xff]
        %v5234 = vld [vmem:[%s5214 + $0x98] sm:$0xff]
        %v5235 = vld [vmem:[%s5214 + $0xa0] sm:$0xff]
        %v5236 = vld [vmem:[%s5214 + $0xa8] sm:$0xff]
        %v5237 = vld [vmem:[%s5214 + $0xb0] sm:$0xff]
        %v5238 = vld [vmem:[%s5214 + $0xb8] sm:$0xff]
        %v5239 = vld [vmem:[%s5214 + $0xc0] sm:$0xff]
        %v5240 = vld [vmem:[%s5214 + $0xc8] sm:$0xff]
        %v5241 = vld [vmem:[%s5214 + $0xd0] sm:$0xff]
        %v5242 = vld [vmem:[%s5214 + $0xd8] sm:$0xff]
        %v5243 = vld [vmem:[%s5214 + $0xe0] sm:$0xff]
        %v5244 = vld [vmem:[%s5214 + $0xe8] sm:$0xff]
        %v5245 = vld [vmem:[%s5214 + $0xf0] sm:$0xff]
        %v5246 = vld [vmem:[%s5214 + $0xf8] sm:$0xff]
        %v5247 = vld [vmem:[%s5214 + $0x100] sm:$0xff]
        %v5248 = vld [vmem:[%s5214 + $0x108] sm:$0xff]
        %v5249 = vld [vmem:[%s5214 + $0x110] sm:$0xff]
        %v5250 = vld [vmem:[%s5214 + $0x118] sm:$0xff]
        %v5251 = vld [vmem:[%s5214 + $0x120] sm:$0xff]
        %v5252 = vld [vmem:[%s5214 + $0x128] sm:$0xff]
        %v5253 = vld [vmem:[%s5214 + $0x130] sm:$0xff]
        %v5254 = vld [vmem:[%s5214 + $0x138] sm:$0xff]
        %v5255 = vld [vmem:[%s5214 + $0x140] sm:$0xff]
        %v5256 = vld [vmem:[%s5214 + $0x148] sm:$0xff]
        %v5257 = vld [vmem:[%s5214 + $0x150] sm:$0xff]
        %v5258 = vld [vmem:[%s5214 + $0x158] sm:$0xff]
        %v5259 = vld [vmem:[%s5214 + $0x160] sm:$0xff]
        %v5260 = vld [vmem:[%s5214 + $0x168] sm:$0xff]
        %v5261 = vld [vmem:[%s5214 + $0x170] sm:$0xff]
        %v5262 = vld [vmem:[%s5214 + $0x178] sm:$0xff]
        %v5263 = vld [vmem:[%s5214 + $0x180] sm:$0xff]
        %v5264 = vld [vmem:[%s5214 + $0x188] sm:$0xff]
        %v5265 = vld [vmem:[%s5214 + $0x190] sm:$0xff]
        %v5266 = vld [vmem:[%s5214 + $0x198] sm:$0xff]
        %v5267 = vld [vmem:[%s5214 + $0x1a0] sm:$0xff]
        %v5268 = vld [vmem:[%s5214 + $0x1a8] sm:$0xff]
        %v5269 = vld [vmem:[%s5214 + $0x1b0] sm:$0xff]
        %v5270 = vld [vmem:[%s5214 + $0x1b8] sm:$0xff]
        %v5271 = vld [vmem:[%s5214 + $0x1c0] sm:$0xff]
        %v5272 = vld [vmem:[%s5214 + $0x1c8] sm:$0xff]
        %v5273 = vld [vmem:[%s5214 + $0x1d0] sm:$0xff]
        %v5274 = vld [vmem:[%s5214 + $0x1d8] sm:$0xff]
        %v5275 = vld [vmem:[%s5214 + $0x1e0] sm:$0xff]
        %v5276 = vld [vmem:[%s5214 + $0x1e8] sm:$0xff]
        %v5277 = vld [vmem:[%s5214 + $0x1f0] sm:$0xff]
        %v5278 = vld [vmem:[%s5214 + $0x1f8] sm:$0xff]
        %5279 = vmatpush.msra.mxu0 %v5245
        %5280 = vmatpush.msra.mxu0 %v5243
        %5281 = vmatpush.msra.mxu0 %v5241
        %5282 = vmatpush.msra.mxu0 %v5239
        %5283 = vmatpush.msra.mxu0 %v5237
        %5284 = vmatpush.msra.mxu0 %v5235
        %5285 = vmatpush.msra.mxu0 %v5233
        %5286 = vmatpush.msra.mxu0 %v5231
        %5287 = vmatpush.msra.mxu0 %v5229
        %5288 = vmatpush.msra.mxu0 %v5227
        %5289 = vmatpush.msra.mxu0 %v5225
        %5290 = vmatpush.msra.mxu0 %v5223
        %5291 = vmatpush.msra.mxu0 %v5221
        %5292 = vmatpush.msra.mxu0 %v5219
        %5293 = vmatpush.msra.mxu0 %v5217
        %5294 = vmatpush.msra.mxu0 %v5215
        %5295 = vmatmul.f32.gmra.mxu0 %v3997
        %v5296 = vpop.f32.mrf.mxu0
        %v5297 = vadd.f32 0.0, %v5296
        %5298 = vdwg.mxu0
        %5299 = vmatpush.msra.mxu0 %v5277
        %5300 = vmatpush.msra.mxu0 %v5275
        %5301 = vmatpush.msra.mxu0 %v5273
        %5302 = vmatpush.msra.mxu0 %v5271
        %5303 = vmatpush.msra.mxu0 %v5269
        %5304 = vmatpush.msra.mxu0 %v5267
        %5305 = vmatpush.msra.mxu0 %v5265
        %5306 = vmatpush.msra.mxu0 %v5263
        %5307 = vmatpush.msra.mxu0 %v5261
        %5308 = vmatpush.msra.mxu0 %v5259
        %5309 = vmatpush.msra.mxu0 %v5257
        %5310 = vmatpush.msra.mxu0 %v5255
        %5311 = vmatpush.msra.mxu0 %v5253
        %5312 = vmatpush.msra.mxu0 %v5251
        %5313 = vmatpush.msra.mxu0 %v5249
        %5314 = vmatpush.msra.mxu0 %v5247
        %5315 = vmatmul.f32.gmra.mxu0 %v4041
        %v5316 = vpop.f32.mrf.mxu0
        %v5317 = vadd.f32 %v5297, %v5316
        %5318 = vdwg.mxu0
        %5319 = vmatpush.msra.mxu0 %v5246
        %5320 = vmatpush.msra.mxu0 %v5244
        %5321 = vmatpush.msra.mxu0 %v5242
        %5322 = vmatpush.msra.mxu0 %v5240
        %5323 = vmatpush.msra.mxu0 %v5238
        %5324 = vmatpush.msra.mxu0 %v5236
        %5325 = vmatpush.msra.mxu0 %v5234
        %5326 = vmatpush.msra.mxu0 %v5232
        %5327 = vmatpush.msra.mxu0 %v5230
        %5328 = vmatpush.msra.mxu0 %v5228
        %5329 = vmatpush.msra.mxu0 %v5226
        %5330 = vmatpush.msra.mxu0 %v5224
        %5331 = vmatpush.msra.mxu0 %v5222
        %5332 = vmatpush.msra.mxu0 %v5220
        %5333 = vmatpush.msra.mxu0 %v5218
        %5334 = vmatpush.msra.mxu0 %v5216
        %5335 = vmatmul.f32.gmra.mxu0 %v3997
        %v5336 = vpop.f32.mrf.mxu0
        %v5337 = vadd.f32 0.0, %v5336
        %5338 = vdwg.mxu0
        %5339 = vmatpush.msra.mxu0 %v5278
        %5340 = vmatpush.msra.mxu0 %v5276
        %5341 = vmatpush.msra.mxu0 %v5274
        %5342 = vmatpush.msra.mxu0 %v5272
        %5343 = vmatpush.msra.mxu0 %v5270
        %5344 = vmatpush.msra.mxu0 %v5268
        %5345 = vmatpush.msra.mxu0 %v5266
        %5346 = vmatpush.msra.mxu0 %v5264
        %5347 = vmatpush.msra.mxu0 %v5262
        %5348 = vmatpush.msra.mxu0 %v5260
        %5349 = vmatpush.msra.mxu0 %v5258
        %5350 = vmatpush.msra.mxu0 %v5256
        %5351 = vmatpush.msra.mxu0 %v5254
        %5352 = vmatpush.msra.mxu0 %v5252
        %5353 = vmatpush.msra.mxu0 %v5250
        %5354 = vmatpush.msra.mxu0 %v5248
        %5355 = vmatmul.f32.gmra.mxu0 %v4041
        %v5356 = vpop.f32.mrf.mxu0
        %v5357 = vadd.f32 %v5337, %v5356
        %5358 = vdwg.mxu0
        %v5359 = vadd.f32 %v5212, %v5317
        %v5360 = vadd.f32 %v5213, %v5357
        %s5361 = sld [smem:[#allocation2 + $0x3]]
        %v5362 = vstv %s5361
        %v5363 = vmul.f32 %v5362, %v5359
        %v5364 = vmul.f32 %v5362, %v5360
        %s5365 = sld [smem:[#allocation5 + $0x3]]
        %v5366 = vstv %s5365
        %v5367 = vadd.f32 %v5363, %v5366
        %v5368 = vadd.f32 %v5364, %v5366
        %v5369 = vtanh.pop %v5367
        %v5370 = vtanh.pop %v5368
        %5371 = vst [vmem:[%s480] sm:$0xff] %v5369
        %5372 = vst [vmem:[%s480 + $0x8] sm:$0xff] %v5370
        %p5373 = scmp.lt.s32.totalorder %s27, 1
        %s5374 = scalar_select %p5373, %s27, 1
        %s5375 = smul.addr %s5374, 2
        %s5376 = smul.addr %s5375, 8
        %s5377 = scalar_lea.vmem %s11, %s5376
        // Predicated region
        $region89: #{_lambda_.1} parent=63 // pred_check
          %p5378 = pneg %p281
        $region90: #{_lambda_.1} parent=63 // pred_check_branch
          %5380 = sbr.rel (%p5378) target = $region92
        $region91: #{_lambda_.1} parent=63 // pred_region
          _
        $region92: #{_lambda_.1} parent=63 // pred_fallthru
          _
      $region64: #{_lambda_.1} parent=5 // pred_fallthru
        _
      %p5381 = scmp.le.s32.totalorder 2, %s22
      // Predicated region
      $region93: #{_lambda_.1} parent=5 // pred_check
        %p5382 = pneg %p5381
      $region94: #{_lambda_.1} parent=5 // pred_check_branch
        %5384 = sbr.rel (%p5382) target = $region96
      $region95: #{_lambda_.1} parent=5 // pred_region
        %s5385 = ssub.s32 %s22, 2
        // Predicated region
        $region97: #{_lambda_.1} parent=95 // pred_check
          %p5386 = pneg %p287
        $region98: #{_lambda_.1} parent=95 // pred_check_branch
          %5388 = sbr.rel (%p5386) target = $region100
        $region99: #{_lambda_.1} parent=95 // pred_region
          %p5389 = scmp.lt.s32.totalorder %s28, 1
          %s5390 = scalar_select %p5389, %s28, 1
          %s5391 = smul.addr %s5390, 2
          %s5392 = smul.addr %s5391, 8
          %s5393 = scalar_lea.vmem %s11, %s5392
        $region100: #{_lambda_.1} parent=95 // pred_fallthru
          _
      $region96: #{_lambda_.1} parent=5 // pred_fallthru
        _
    $region6: #{_lambda_.1} parent=1 // loop_footer
      %s26 = sadd.s32 1, %s22
    $region7: #{_lambda_.1} parent=1 // loop_footer_branch
      %21 = sbr.rel target = $region3
    $region8: #{_lambda_.1} parent=1 // loop_exit
      _
    %5394 = vsyncpa [#allocation3], 1
    %s5395 = scalar_lea.sflag [#allocation3], 1
    %5396 = vsyncpa %s5395, 1
    %5397 = vsyncpa [#allocation9], 1
    %5398 = vsyncpa [#allocation12], 1
    %5399 = vsyncpa [#allocation4], 1
    %s5400 = scalar_lea.sflag [#allocation4], 1
    %5401 = vsyncpa %s5400, 1
    %5402 = vsyncpa [#allocation6], 1

</llo_original>
